<compile_context>
chip_gen: v7x
topology: tpu7x:2x2x1
jax: 0.10.0
libtpu: 0.0.40
codegen_flags: <defaults>
</compile_context>

<pallas_src>
import functools

import jax
import jax.numpy as jnp
from jax import lax
from jax.experimental import pallas as pl
from jax.experimental.pallas import tpu as pltpu


def _wavenet_kernel(n_layers, n_channels, d_i, T,
                    y_ref, c_ref, t_ref,
                    wstart_ref, bstart_ref,
                    wlayer_ref,
                    wtime_ref, bconst_ref,
                    wrs_ref, brs_ref,
                    wend_ref, bend_ref,
                    out_ref):
    b = pl.program_id(0)
    nc = n_channels
    f32 = jnp.float32
    bf16 = jnp.bfloat16

    t_scalar = t_ref[b]                        # per-batch time scalar (SMEM)

    y = y_ref[0].astype(bf16)                  # (n_in, T)
    c = c_ref[0]                               # (n_mel, T), f32 (cast with the stack)

    # start: 1x1 conv == channel matmul (bf16 operands, f32 accumulation)
    audio = jnp.dot(wstart_ref[...], y, preferred_element_type=f32) + bstart_ref[...]
    output = jnp.zeros((nc, T), f32)

    lane = lax.broadcasted_iota(jnp.int32, (nc, T), 1)

    for i in range(n_layers):
        d = d_i ** i
        # dilated conv, kernel_size=3, "same" padding: taps at t-d, t, t+d (zero pad)
        if d < T:
            x_m = jnp.where(lane >= d,
                            pltpu.roll(audio, shift=d, axis=1), 0.0)        # x[t-d]
            x_p = jnp.where(lane < T - d,
                            pltpu.roll(audio, shift=T - d, axis=1), 0.0)    # x[t+d]
        else:
            # dilation reaches entirely into the zero padding -> both taps are zero
            x_m = jnp.zeros_like(audio)
            x_p = jnp.zeros_like(audio)

        # fused 3-tap + conditioning matmul: single MXU push per layer,
        # K = 3*nc + n_mel.  Pieces are f32 8-row aligned; one cast to bf16.
        x_stack = jnp.concatenate([x_m, audio, x_p, c], axis=0).astype(bf16)
        in_act = jnp.dot(wlayer_ref[i], x_stack, preferred_element_type=f32)

        # combined bias: bin + btime + bcond folded at wrap time, + wtime * t here
        in_act = in_act + (wtime_ref[i] * t_scalar + bconst_ref[i])

        # fused_add_tanh_sigmoid_multiply_with_t gated activation (EUP)
        acts = jnp.tanh(in_act[:nc, :]) * jax.nn.sigmoid(in_act[nc:, :])

        # res/skip 1x1 conv
        rs = jnp.dot(wrs_ref[i], acts.astype(bf16),
                     preferred_element_type=f32) + brs_ref[i]
        audio = audio + rs[:nc, :]       # zero for last layer (padded weights)
        output = output + rs[nc:, :]

    out = (jnp.dot(wend_ref[...], output.astype(bf16), preferred_element_type=f32)
           + bend_ref[...])
    out_ref[0] = out.astype(out_ref.dtype)


def _make_pallas_call(B, n_in, n_mel, T, nl, nc, d_i, weights, single_buffer_weights):
    kernel = functools.partial(_wavenet_kernel, nl, nc, d_i, T)

    def weight_spec(arr):
        nd = arr.ndim
        if single_buffer_weights:
            # Constant index_map across the batch grid: nothing to double-buffer,
            # so a single VMEM buffer halves the resident weight footprint.
            return pl.BlockSpec(arr.shape, lambda b: (0,) * nd,
                                pipeline_mode=pl.Buffered(1))
        return pl.BlockSpec(arr.shape, lambda b: (0,) * nd)

    in_specs = ([pl.BlockSpec((1, n_in, T), lambda b: (b, 0, 0)),
                 pl.BlockSpec((1, n_mel, T), lambda b: (b, 0, 0)),
                 pl.BlockSpec(memory_space=pltpu.MemorySpace.SMEM)]
                + [weight_spec(w) for w in weights])

    grid_spec = pltpu.PrefetchScalarGridSpec(
        num_scalar_prefetch=0,
        grid=(B,),
        in_specs=in_specs,
        out_specs=pl.BlockSpec((1, n_in, T), lambda b: (b, 0, 0)),
    )

    return pl.pallas_call(
        kernel,
        out_shape=jax.ShapeDtypeStruct((B, n_in, T), jnp.float32),
        grid_spec=grid_spec,
        compiler_params=pltpu.CompilerParams(
            dimension_semantics=("parallel",),
            vmem_limit_bytes=48 * 1024 * 1024,
        ),
    )


def odenet_forward(params, y, c, t):
    B, n_in, T = y.shape
    n_mel = c.shape[1]
    nl = params["n_layers"]
    nc = params["n_channels"]
    d_i = params["d_i"]
    bf16 = jnp.bfloat16

    # Fold/reshape weights into MXU-friendly bf16 operands:
    #   win:    (nl, 3, 2nc, nc) -> (nl, 2nc, 3nc)          fused 3-tap weight
    #   wcond:  (2nc*nl, n_mel)  -> (nl, 2nc, n_mel)         per-layer conditioning
    #   wlayer: concat along K   -> (nl, 2nc, 3nc + n_mel)   single per-layer matmul
    #   bconst = bin + btime + bcond                         (constants, folded once)
    win_f = params["win"].transpose(0, 2, 1, 3).reshape(nl, 2 * nc, 3 * nc)
    wcond_r = params["wcond"].reshape(nl, 2 * nc, n_mel)
    wlayer = jnp.concatenate([win_f, wcond_r], axis=2).astype(bf16)
    bconst = (params["bcond"].reshape(nl, 2 * nc, 1)
              + params["bin"] + params["btime"]).astype(jnp.float32)

    weights = [
        params["wstart"].astype(bf16), params["bstart"],
        wlayer,
        params["wtime"], bconst,
        params["wrs"].astype(bf16), params["brs"],
        params["wend"].astype(bf16), params["bend"],
    ]

    try:
        call = _make_pallas_call(B, n_in, n_mel, T, nl, nc, d_i, weights,
                                 single_buffer_weights=True)
        return call(y, c, t, *weights)
    except Exception:
        # pl.Buffered(1) not supported by this jax/libtpu combo -> default buffering
        call = _make_pallas_call(B, n_in, n_mel, T, nl, nc, d_i, weights,
                                 single_buffer_weights=False)
        return call(y, c, t, *weights)


def init_params(key, n_in, n_mel, d_i, n_layers, n_channels):
    nc, nl = n_channels, n_layers
    keys = jax.random.split(key, 10)
    s = 0.1
    p = dict(
        wstart=s * jax.random.normal(keys[0], (nc, n_in), jnp.float32),
        bstart=s * jax.random.normal(keys[1], (nc, 1), jnp.float32),
        wcond=s * jax.random.normal(keys[2], (2 * nc * nl, n_mel), jnp.float32),
        bcond=s * jax.random.normal(keys[3], (2 * nc * nl, 1), jnp.float32),
        # dilated conv weights, organized as (layer, tap, C_out, C_in)
        win=s * jax.random.normal(keys[4], (nl, 3, 2 * nc, nc), jnp.float32),
        bin=s * jax.random.normal(keys[5], (nl, 2 * nc, 1), jnp.float32),
        wtime=s * jax.random.normal(keys[6], (nl, 2 * nc, 1), jnp.float32),
        btime=s * jax.random.normal(keys[7], (nl, 2 * nc, 1), jnp.float32),
        wrs=s * jax.random.normal(keys[8], (nl, 2 * nc, nc), jnp.float32),
        brs=s * jax.random.normal(keys[9], (nl, 2 * nc, 1), jnp.float32),
        # `end` conv is zero-initialized in the PyTorch module
        wend=jnp.zeros((n_in, nc), jnp.float32),
        bend=jnp.zeros((n_in, 1), jnp.float32),
    )
    # Last layer's res_skip conv only has nc output channels and feeds `output`
    # exclusively: store it in the upper nc rows, zero the lower nc rows so the
    # uniform in-kernel update `audio += rs[:nc]` becomes a no-op for that layer.
    # (If loading a real PyTorch checkpoint, place its last-layer weight the same way.)
    p["wrs"] = p["wrs"].at[nl - 1, :nc, :].set(0.0)
    p["brs"] = p["brs"].at[nl - 1, :nc, :].set(0.0)
    p["n_layers"], p["n_channels"], p["d_i"] = nl, nc, d_i
    return p


def odenet_reference(params, y, c, t):
    """Pure-JAX f32 reference mirroring the PyTorch forward (for validation)."""
    nc, nl, d_i = params["n_channels"], params["n_layers"], params["d_i"]
    T = y.shape[-1]
    mm = lambda w, x: jnp.einsum("oi,bit->bot", w, x)
    audio = mm(params["wstart"], y) + params["bstart"][None]
    spect = mm(params["wcond"], c) + params["bcond"][None]
    output = jnp.zeros_like(audio)
    for i in range(nl):
        d = d_i ** i
        pad = jnp.pad(audio, ((0, 0), (0, 0), (d, d)))
        x_m = pad[:, :, :T]
        x_p = pad[:, :, 2 * d:]
        in_act = (mm(params["win"][i, 0], x_m)
                  + mm(params["win"][i, 1], audio)
                  + mm(params["win"][i, 2], x_p)
                  + params["bin"][i][None]
                  + spect[:, 2 * nc * i:2 * nc * (i + 1), :]
                  + (params["wtime"][i][None] * t[:, None, None]
                     + params["btime"][i][None]))
        acts = jnp.tanh(in_act[:, :nc]) * jax.nn.sigmoid(in_act[:, nc:])
        rs = mm(params["wrs"][i], acts) + params["brs"][i][None]
        audio = audio + rs[:, :nc]
        output = output + rs[:, nc:]
    return mm(params["wend"], output) + params["bend"][None]


if __name__ == "__main__":
    B, n_in, n_mel, T = 2, 4, 8, 128
    d_i, n_layers, n_channels = 2, 3, 32

    key = jax.random.PRNGKey(0)
    kp, ky, kc, kt, ke = jax.random.split(key, 5)
    params = init_params(kp, n_in, n_mel, d_i, n_layers, n_channels)

    # The module zero-inits the `end` conv (so the true output at init is all-zero);
    # use small non-zero end weights in the test so the numerical check is non-trivial.
    params["wend"] = 0.1 * jax.random.normal(ke, (n_in, n_channels), jnp.float32)
    params["bend"] = 0.1 * jax.random.normal(jax.random.fold_in(ke, 1),
                                             (n_in, 1), jnp.float32)

    y = jax.random.normal(ky, (B, n_in, T), jnp.float32)     # audio / ODE state
    c = jax.random.normal(kc, (B, n_mel, T), jnp.float32)    # conditioning (mel)
    t = jax.random.normal(kt, (B,), jnp.float32)             # PyTorch t is (B,1); squeezed

    out = odenet_forward(params, y, c, t)
    out = jax.block_until_ready(out)

    ref = odenet_reference(params, y, c, t)
    assert out.shape == (B, n_in, T)
    assert bool(jnp.all(jnp.isfinite(out)))
    # bf16 matmuls (f32 accumulation) in the kernel vs pure-f32 reference:
    # tolerance loosened accordingly.
    assert bool(jnp.allclose(out, ref, atol=2e-2, rtol=2e-2))
    print("KERNEL_OK")
</pallas_src>

<mosaic_0001>
module attributes {stable_mosaic.version = 11 : i64} {
  func.func @_wavenet_kernel(%arg0: i32, %arg1: memref<1x4x128xf32, #tpu.memory_space<vmem>>, %arg2: memref<1x8x128xf32, #tpu.memory_space<vmem>>, %arg3: memref<2xf32, #tpu.memory_space<smem>>, %arg4: memref<32x4xbf16, #tpu.memory_space<vmem>>, %arg5: memref<32x1xf32, #tpu.memory_space<vmem>>, %arg6: memref<3x64x104xbf16, #tpu.memory_space<vmem>>, %arg7: memref<3x64x1xf32, #tpu.memory_space<vmem>>, %arg8: memref<3x64x1xf32, #tpu.memory_space<vmem>>, %arg9: memref<3x64x32xbf16, #tpu.memory_space<vmem>>, %arg10: memref<3x64x1xf32, #tpu.memory_space<vmem>>, %arg11: memref<4x32xbf16, #tpu.memory_space<vmem>>, %arg12: memref<4x1xf32, #tpu.memory_space<vmem>>, %arg13: memref<1x4x128xf32, #tpu.memory_space<vmem>>) attributes {dimension_semantics = [#tpu.dimension_semantics<parallel>], iteration_bounds = array<i64: 2>, scalar_prefetch = 0 : i64, scratch_operands = 0 : i64, tpu.core_type = #tpu.core_type<tc>, window_params = [{transform_indices = @transform_0, window_bounds = array<i64: 1, 4, 128>}, {transform_indices = @transform_1, window_bounds = array<i64: 1, 8, 128>}, {transform_indices = @transform_2, window_bounds = array<i64: 2>}, {pipeline_mode = #tpu.pipeline_mode<synchronous>, transform_indices = @transform_3, window_bounds = array<i64: 32, 4>}, {pipeline_mode = #tpu.pipeline_mode<synchronous>, transform_indices = @transform_4, window_bounds = array<i64: 32, 1>}, {pipeline_mode = #tpu.pipeline_mode<synchronous>, transform_indices = @transform_5, window_bounds = array<i64: 3, 64, 104>}, {pipeline_mode = #tpu.pipeline_mode<synchronous>, transform_indices = @transform_6, window_bounds = array<i64: 3, 64, 1>}, {pipeline_mode = #tpu.pipeline_mode<synchronous>, transform_indices = @transform_7, window_bounds = array<i64: 3, 64, 1>}, {pipeline_mode = #tpu.pipeline_mode<synchronous>, transform_indices = @transform_8, window_bounds = array<i64: 3, 64, 32>}, {pipeline_mode = #tpu.pipeline_mode<synchronous>, transform_indices = @transform_9, window_bounds = array<i64: 3, 64, 1>}, {pipeline_mode = #tpu.pipeline_mode<synchronous>, transform_indices = @transform_10, window_bounds = array<i64: 4, 32>}, {pipeline_mode = #tpu.pipeline_mode<synchronous>, transform_indices = @transform_11, window_bounds = array<i64: 4, 1>}, {transform_indices = @transform_12, window_bounds = array<i64: 1, 4, 128>}]} {
    %0 = arith.index_cast %arg0 : i32 to index
    %1 = memref.load %arg3[%0] : memref<2xf32, #tpu.memory_space<smem>>
    %c0 = arith.constant 0 : index
    %c0_0 = arith.constant 0 : index
    %c0_1 = arith.constant 0 : index
    %2 = vector.load %arg1[%c0, %c0_0, %c0_1] : memref<1x4x128xf32, #tpu.memory_space<vmem>>, vector<1x4x128xf32>
    %3 = vector.shape_cast %2 : vector<1x4x128xf32> to vector<4x128xf32>
    %4 = arith.truncf %3 : vector<4x128xf32> to vector<4x128xbf16>
    %c0_2 = arith.constant 0 : index
    %c0_3 = arith.constant 0 : index
    %c0_4 = arith.constant 0 : index
    %5 = vector.load %arg2[%c0_2, %c0_3, %c0_4] : memref<1x8x128xf32, #tpu.memory_space<vmem>>, vector<1x8x128xf32>
    %6 = vector.shape_cast %5 : vector<1x8x128xf32> to vector<8x128xf32>
    %c0_5 = arith.constant 0 : index
    %c0_6 = arith.constant 0 : index
    %7 = vector.load %arg4[%c0_5, %c0_6] : memref<32x4xbf16, #tpu.memory_space<vmem>>, vector<32x4xbf16>
    %cst = arith.constant dense<0.000000e+00> : vector<32x128xf32>
    %8 = tpu.matmul %7, %4, %cst {dimension_numbers = #tpu.dot_dimension_numbers<[1], [0], [0], [1], [0, 0, 1, 1], [], []>} : vector<32x4xbf16>, vector<4x128xbf16>, vector<32x128xf32> -> vector<32x128xf32>
    %c0_7 = arith.constant 0 : index
    %c0_8 = arith.constant 0 : index
    %9 = vector.load %arg5[%c0_7, %c0_8] : memref<32x1xf32, #tpu.memory_space<vmem>>, vector<32x1xf32>
    %10 = vector.broadcast %9 : vector<32x1xf32> to vector<32x128xf32>
    %11 = arith.addf %8, %10 : vector<32x128xf32>
    %cst_9 = arith.constant 0.000000e+00 : f32
    %12 = vector.broadcast %cst_9 : f32 to vector<32x128xf32>
    %13 = tpu.iota {dimensions = array<i32: 1>} : vector<32x128xi32>
    %c1_i32 = arith.constant 1 : i32
    %14 = vector.broadcast %c1_i32 : i32 to vector<32x128xi32>
    %15 = arith.cmpi sge, %13, %14 : vector<32x128xi32>
    %c1_i32_10 = arith.constant 1 : i32
    %16 = tpu.dynamic_rotate %11 by %c1_i32_10 dim 1 : vector<32x128xf32>, i32 -> vector<32x128xf32>
    %cst_11 = arith.constant 0.000000e+00 : f32
    %17 = vector.broadcast %cst_11 : f32 to vector<32x128xf32>
    %18 = arith.select %15, %16, %17 : vector<32x128xi1>, vector<32x128xf32>
    %c127_i32 = arith.constant 127 : i32
    %19 = vector.broadcast %c127_i32 : i32 to vector<32x128xi32>
    %20 = arith.cmpi slt, %13, %19 : vector<32x128xi32>
    %c127_i32_12 = arith.constant 127 : i32
    %21 = tpu.dynamic_rotate %11 by %c127_i32_12 dim 1 : vector<32x128xf32>, i32 -> vector<32x128xf32>
    %cst_13 = arith.constant 0.000000e+00 : f32
    %22 = vector.broadcast %cst_13 : f32 to vector<32x128xf32>
    %23 = arith.select %20, %21, %22 : vector<32x128xi1>, vector<32x128xf32>
    %24 = tpu.concatenate %18, %11, %23, %6 in 0 : vector<32x128xf32>, vector<32x128xf32>, vector<32x128xf32>, vector<8x128xf32> -> vector<104x128xf32>
    %25 = arith.truncf %24 : vector<104x128xf32> to vector<104x128xbf16>
    %c0_14 = arith.constant 0 : index
    %c0_15 = arith.constant 0 : index
    %c0_16 = arith.constant 0 : index
    %26 = vector.load %arg6[%c0_14, %c0_15, %c0_16] : memref<3x64x104xbf16, #tpu.memory_space<vmem>>, vector<1x64x104xbf16>
    %27 = vector.shape_cast %26 : vector<1x64x104xbf16> to vector<64x104xbf16>
    %cst_17 = arith.constant dense<0.000000e+00> : vector<64x128xf32>
    %28 = tpu.matmul %27, %25, %cst_17 {dimension_numbers = #tpu.dot_dimension_numbers<[1], [0], [0], [1], [0, 0, 1, 1], [], []>} : vector<64x104xbf16>, vector<104x128xbf16>, vector<64x128xf32> -> vector<64x128xf32>
    %c0_18 = arith.constant 0 : index
    %c0_19 = arith.constant 0 : index
    %c0_20 = arith.constant 0 : index
    %29 = vector.load %arg7[%c0_18, %c0_19, %c0_20] : memref<3x64x1xf32, #tpu.memory_space<vmem>>, vector<1x64x1xf32>
    %30 = vector.shape_cast %29 : vector<1x64x1xf32> to vector<64x1xf32>
    %31 = vector.broadcast %1 : f32 to vector<64x1xf32>
    %32 = arith.mulf %30, %31 : vector<64x1xf32>
    %c0_21 = arith.constant 0 : index
    %c0_22 = arith.constant 0 : index
    %c0_23 = arith.constant 0 : index
    %33 = vector.load %arg8[%c0_21, %c0_22, %c0_23] : memref<3x64x1xf32, #tpu.memory_space<vmem>>, vector<1x64x1xf32>
    %34 = vector.shape_cast %33 : vector<1x64x1xf32> to vector<64x1xf32>
    %35 = arith.addf %32, %34 : vector<64x1xf32>
    %36 = vector.broadcast %35 : vector<64x1xf32> to vector<64x128xf32>
    %37 = arith.addf %28, %36 : vector<64x128xf32>
    %38 = vector.extract_strided_slice %37 {offsets = [0, 0], sizes = [32, 128], strides = [1, 1]} : vector<64x128xf32> to vector<32x128xf32>
    %39 = math.tanh %38 : vector<32x128xf32>
    %40 = vector.extract_strided_slice %37 {offsets = [32, 0], sizes = [32, 128], strides = [1, 1]} : vector<64x128xf32> to vector<32x128xf32>
    %41 = arith.negf %40 : vector<32x128xf32>
    %42 = math.exp %41 : vector<32x128xf32>
    %cst_24 = arith.constant 1.000000e+00 : f32
    %43 = vector.broadcast %cst_24 : f32 to vector<32x128xf32>
    %44 = arith.addf %43, %42 : vector<32x128xf32>
    %45 = arith.divf %43, %44 : vector<32x128xf32>
    %46 = arith.mulf %39, %45 : vector<32x128xf32>
    %c0_25 = arith.constant 0 : index
    %c0_26 = arith.constant 0 : index
    %c0_27 = arith.constant 0 : index
    %47 = vector.load %arg9[%c0_25, %c0_26, %c0_27] : memref<3x64x32xbf16, #tpu.memory_space<vmem>>, vector<1x64x32xbf16>
    %48 = vector.shape_cast %47 : vector<1x64x32xbf16> to vector<64x32xbf16>
    %49 = arith.truncf %46 : vector<32x128xf32> to vector<32x128xbf16>
    %cst_28 = arith.constant dense<0.000000e+00> : vector<64x128xf32>
    %50 = tpu.matmul %48, %49, %cst_28 {dimension_numbers = #tpu.dot_dimension_numbers<[1], [0], [0], [1], [0, 0, 1, 1], [], []>} : vector<64x32xbf16>, vector<32x128xbf16>, vector<64x128xf32> -> vector<64x128xf32>
    %c0_29 = arith.constant 0 : index
    %c0_30 = arith.constant 0 : index
    %c0_31 = arith.constant 0 : index
    %51 = vector.load %arg10[%c0_29, %c0_30, %c0_31] : memref<3x64x1xf32, #tpu.memory_space<vmem>>, vector<1x64x1xf32>
    %52 = vector.shape_cast %51 : vector<1x64x1xf32> to vector<64x1xf32>
    %53 = vector.broadcast %52 : vector<64x1xf32> to vector<64x128xf32>
    %54 = arith.addf %50, %53 : vector<64x128xf32>
    %55 = vector.extract_strided_slice %54 {offsets = [0, 0], sizes = [32, 128], strides = [1, 1]} : vector<64x128xf32> to vector<32x128xf32>
    %56 = arith.addf %11, %55 : vector<32x128xf32>
    %57 = vector.extract_strided_slice %54 {offsets = [32, 0], sizes = [32, 128], strides = [1, 1]} : vector<64x128xf32> to vector<32x128xf32>
    %58 = arith.addf %12, %57 : vector<32x128xf32>
    %c2_i32 = arith.constant 2 : i32
    %59 = vector.broadcast %c2_i32 : i32 to vector<32x128xi32>
    %60 = arith.cmpi sge, %13, %59 : vector<32x128xi32>
    %c2_i32_32 = arith.constant 2 : i32
    %61 = tpu.dynamic_rotate %56 by %c2_i32_32 dim 1 : vector<32x128xf32>, i32 -> vector<32x128xf32>
    %cst_33 = arith.constant 0.000000e+00 : f32
    %62 = vector.broadcast %cst_33 : f32 to vector<32x128xf32>
    %63 = arith.select %60, %61, %62 : vector<32x128xi1>, vector<32x128xf32>
    %c126_i32 = arith.constant 126 : i32
    %64 = vector.broadcast %c126_i32 : i32 to vector<32x128xi32>
    %65 = arith.cmpi slt, %13, %64 : vector<32x128xi32>
    %c126_i32_34 = arith.constant 126 : i32
    %66 = tpu.dynamic_rotate %56 by %c126_i32_34 dim 1 : vector<32x128xf32>, i32 -> vector<32x128xf32>
    %cst_35 = arith.constant 0.000000e+00 : f32
    %67 = vector.broadcast %cst_35 : f32 to vector<32x128xf32>
    %68 = arith.select %65, %66, %67 : vector<32x128xi1>, vector<32x128xf32>
    %69 = tpu.concatenate %63, %56, %68, %6 in 0 : vector<32x128xf32>, vector<32x128xf32>, vector<32x128xf32>, vector<8x128xf32> -> vector<104x128xf32>
    %70 = arith.truncf %69 : vector<104x128xf32> to vector<104x128xbf16>
    %c1 = arith.constant 1 : index
    %c0_36 = arith.constant 0 : index
    %c0_37 = arith.constant 0 : index
    %71 = vector.load %arg6[%c1, %c0_36, %c0_37] : memref<3x64x104xbf16, #tpu.memory_space<vmem>>, vector<1x64x104xbf16>
    %72 = vector.shape_cast %71 : vector<1x64x104xbf16> to vector<64x104xbf16>
    %cst_38 = arith.constant dense<0.000000e+00> : vector<64x128xf32>
    %73 = tpu.matmul %72, %70, %cst_38 {dimension_numbers = #tpu.dot_dimension_numbers<[1], [0], [0], [1], [0, 0, 1, 1], [], []>} : vector<64x104xbf16>, vector<104x128xbf16>, vector<64x128xf32> -> vector<64x128xf32>
    %c1_39 = arith.constant 1 : index
    %c0_40 = arith.constant 0 : index
    %c0_41 = arith.constant 0 : index
    %74 = vector.load %arg7[%c1_39, %c0_40, %c0_41] : memref<3x64x1xf32, #tpu.memory_space<vmem>>, vector<1x64x1xf32>
    %75 = vector.shape_cast %74 : vector<1x64x1xf32> to vector<64x1xf32>
    %76 = vector.broadcast %1 : f32 to vector<64x1xf32>
    %77 = arith.mulf %75, %76 : vector<64x1xf32>
    %c1_42 = arith.constant 1 : index
    %c0_43 = arith.constant 0 : index
    %c0_44 = arith.constant 0 : index
    %78 = vector.load %arg8[%c1_42, %c0_43, %c0_44] : memref<3x64x1xf32, #tpu.memory_space<vmem>>, vector<1x64x1xf32>
    %79 = vector.shape_cast %78 : vector<1x64x1xf32> to vector<64x1xf32>
    %80 = arith.addf %77, %79 : vector<64x1xf32>
    %81 = vector.broadcast %80 : vector<64x1xf32> to vector<64x128xf32>
    %82 = arith.addf %73, %81 : vector<64x128xf32>
    %83 = vector.extract_strided_slice %82 {offsets = [0, 0], sizes = [32, 128], strides = [1, 1]} : vector<64x128xf32> to vector<32x128xf32>
    %84 = math.tanh %83 : vector<32x128xf32>
    %85 = vector.extract_strided_slice %82 {offsets = [32, 0], sizes = [32, 128], strides = [1, 1]} : vector<64x128xf32> to vector<32x128xf32>
    %86 = arith.negf %85 : vector<32x128xf32>
    %87 = math.exp %86 : vector<32x128xf32>
    %cst_45 = arith.constant 1.000000e+00 : f32
    %88 = vector.broadcast %cst_45 : f32 to vector<32x128xf32>
    %89 = arith.addf %88, %87 : vector<32x128xf32>
    %90 = arith.divf %88, %89 : vector<32x128xf32>
    %91 = arith.mulf %84, %90 : vector<32x128xf32>
    %c1_46 = arith.constant 1 : index
    %c0_47 = arith.constant 0 : index
    %c0_48 = arith.constant 0 : index
    %92 = vector.load %arg9[%c1_46, %c0_47, %c0_48] : memref<3x64x32xbf16, #tpu.memory_space<vmem>>, vector<1x64x32xbf16>
    %93 = vector.shape_cast %92 : vector<1x64x32xbf16> to vector<64x32xbf16>
    %94 = arith.truncf %91 : vector<32x128xf32> to vector<32x128xbf16>
    %cst_49 = arith.constant dense<0.000000e+00> : vector<64x128xf32>
    %95 = tpu.matmul %93, %94, %cst_49 {dimension_numbers = #tpu.dot_dimension_numbers<[1], [0], [0], [1], [0, 0, 1, 1], [], []>} : vector<64x32xbf16>, vector<32x128xbf16>, vector<64x128xf32> -> vector<64x128xf32>
    %c1_50 = arith.constant 1 : index
    %c0_51 = arith.constant 0 : index
    %c0_52 = arith.constant 0 : index
    %96 = vector.load %arg10[%c1_50, %c0_51, %c0_52] : memref<3x64x1xf32, #tpu.memory_space<vmem>>, vector<1x64x1xf32>
    %97 = vector.shape_cast %96 : vector<1x64x1xf32> to vector<64x1xf32>
    %98 = vector.broadcast %97 : vector<64x1xf32> to vector<64x128xf32>
    %99 = arith.addf %95, %98 : vector<64x128xf32>
    %100 = vector.extract_strided_slice %99 {offsets = [0, 0], sizes = [32, 128], strides = [1, 1]} : vector<64x128xf32> to vector<32x128xf32>
    %101 = arith.addf %56, %100 : vector<32x128xf32>
    %102 = vector.extract_strided_slice %99 {offsets = [32, 0], sizes = [32, 128], strides = [1, 1]} : vector<64x128xf32> to vector<32x128xf32>
    %103 = arith.addf %58, %102 : vector<32x128xf32>
    %c4_i32 = arith.constant 4 : i32
    %104 = vector.broadcast %c4_i32 : i32 to vector<32x128xi32>
    %105 = arith.cmpi sge, %13, %104 : vector<32x128xi32>
    %c4_i32_53 = arith.constant 4 : i32
    %106 = tpu.dynamic_rotate %101 by %c4_i32_53 dim 1 : vector<32x128xf32>, i32 -> vector<32x128xf32>
    %cst_54 = arith.constant 0.000000e+00 : f32
    %107 = vector.broadcast %cst_54 : f32 to vector<32x128xf32>
    %108 = arith.select %105, %106, %107 : vector<32x128xi1>, vector<32x128xf32>
    %c124_i32 = arith.constant 124 : i32
    %109 = vector.broadcast %c124_i32 : i32 to vector<32x128xi32>
    %110 = arith.cmpi slt, %13, %109 : vector<32x128xi32>
    %c124_i32_55 = arith.constant 124 : i32
    %111 = tpu.dynamic_rotate %101 by %c124_i32_55 dim 1 : vector<32x128xf32>, i32 -> vector<32x128xf32>
    %cst_56 = arith.constant 0.000000e+00 : f32
    %112 = vector.broadcast %cst_56 : f32 to vector<32x128xf32>
    %113 = arith.select %110, %111, %112 : vector<32x128xi1>, vector<32x128xf32>
    %114 = tpu.concatenate %108, %101, %113, %6 in 0 : vector<32x128xf32>, vector<32x128xf32>, vector<32x128xf32>, vector<8x128xf32> -> vector<104x128xf32>
    %115 = arith.truncf %114 : vector<104x128xf32> to vector<104x128xbf16>
    %c2 = arith.constant 2 : index
    %c0_57 = arith.constant 0 : index
    %c0_58 = arith.constant 0 : index
    %116 = vector.load %arg6[%c2, %c0_57, %c0_58] : memref<3x64x104xbf16, #tpu.memory_space<vmem>>, vector<1x64x104xbf16>
    %117 = vector.shape_cast %116 : vector<1x64x104xbf16> to vector<64x104xbf16>
    %cst_59 = arith.constant dense<0.000000e+00> : vector<64x128xf32>
    %118 = tpu.matmul %117, %115, %cst_59 {dimension_numbers = #tpu.dot_dimension_numbers<[1], [0], [0], [1], [0, 0, 1, 1], [], []>} : vector<64x104xbf16>, vector<104x128xbf16>, vector<64x128xf32> -> vector<64x128xf32>
    %c2_60 = arith.constant 2 : index
    %c0_61 = arith.constant 0 : index
    %c0_62 = arith.constant 0 : index
    %119 = vector.load %arg7[%c2_60, %c0_61, %c0_62] : memref<3x64x1xf32, #tpu.memory_space<vmem>>, vector<1x64x1xf32>
    %120 = vector.shape_cast %119 : vector<1x64x1xf32> to vector<64x1xf32>
    %121 = vector.broadcast %1 : f32 to vector<64x1xf32>
    %122 = arith.mulf %120, %121 : vector<64x1xf32>
    %c2_63 = arith.constant 2 : index
    %c0_64 = arith.constant 0 : index
    %c0_65 = arith.constant 0 : index
    %123 = vector.load %arg8[%c2_63, %c0_64, %c0_65] : memref<3x64x1xf32, #tpu.memory_space<vmem>>, vector<1x64x1xf32>
    %124 = vector.shape_cast %123 : vector<1x64x1xf32> to vector<64x1xf32>
    %125 = arith.addf %122, %124 : vector<64x1xf32>
    %126 = vector.broadcast %125 : vector<64x1xf32> to vector<64x128xf32>
    %127 = arith.addf %118, %126 : vector<64x128xf32>
    %128 = vector.extract_strided_slice %127 {offsets = [0, 0], sizes = [32, 128], strides = [1, 1]} : vector<64x128xf32> to vector<32x128xf32>
    %129 = math.tanh %128 : vector<32x128xf32>
    %130 = vector.extract_strided_slice %127 {offsets = [32, 0], sizes = [32, 128], strides = [1, 1]} : vector<64x128xf32> to vector<32x128xf32>
    %131 = arith.negf %130 : vector<32x128xf32>
    %132 = math.exp %131 : vector<32x128xf32>
    %cst_66 = arith.constant 1.000000e+00 : f32
    %133 = vector.broadcast %cst_66 : f32 to vector<32x128xf32>
    %134 = arith.addf %133, %132 : vector<32x128xf32>
    %135 = arith.divf %133, %134 : vector<32x128xf32>
    %136 = arith.mulf %129, %135 : vector<32x128xf32>
    %c2_67 = arith.constant 2 : index
    %c0_68 = arith.constant 0 : index
    %c0_69 = arith.constant 0 : index
    %137 = vector.load %arg9[%c2_67, %c0_68, %c0_69] : memref<3x64x32xbf16, #tpu.memory_space<vmem>>, vector<1x64x32xbf16>
    %138 = vector.shape_cast %137 : vector<1x64x32xbf16> to vector<64x32xbf16>
    %139 = arith.truncf %136 : vector<32x128xf32> to vector<32x128xbf16>
    %cst_70 = arith.constant dense<0.000000e+00> : vector<64x128xf32>
    %140 = tpu.matmul %138, %139, %cst_70 {dimension_numbers = #tpu.dot_dimension_numbers<[1], [0], [0], [1], [0, 0, 1, 1], [], []>} : vector<64x32xbf16>, vector<32x128xbf16>, vector<64x128xf32> -> vector<64x128xf32>
    %c2_71 = arith.constant 2 : index
    %c0_72 = arith.constant 0 : index
    %c0_73 = arith.constant 0 : index
    %141 = vector.load %arg10[%c2_71, %c0_72, %c0_73] : memref<3x64x1xf32, #tpu.memory_space<vmem>>, vector<1x64x1xf32>
    %142 = vector.shape_cast %141 : vector<1x64x1xf32> to vector<64x1xf32>
    %143 = vector.broadcast %142 : vector<64x1xf32> to vector<64x128xf32>
    %144 = arith.addf %140, %143 : vector<64x128xf32>
    %145 = vector.extract_strided_slice %144 {offsets = [32, 0], sizes = [32, 128], strides = [1, 1]} : vector<64x128xf32> to vector<32x128xf32>
    %146 = arith.addf %103, %145 : vector<32x128xf32>
    %c0_74 = arith.constant 0 : index
    %c0_75 = arith.constant 0 : index
    %147 = vector.load %arg11[%c0_74, %c0_75] : memref<4x32xbf16, #tpu.memory_space<vmem>>, vector<4x32xbf16>
    %148 = arith.truncf %146 : vector<32x128xf32> to vector<32x128xbf16>
    %cst_76 = arith.constant dense<0.000000e+00> : vector<4x128xf32>
    %149 = tpu.matmul %147, %148, %cst_76 {dimension_numbers = #tpu.dot_dimension_numbers<[1], [0], [0], [1], [0, 0, 1, 1], [], []>} : vector<4x32xbf16>, vector<32x128xbf16>, vector<4x128xf32> -> vector<4x128xf32>
    %c0_77 = arith.constant 0 : index
    %c0_78 = arith.constant 0 : index
    %150 = vector.load %arg12[%c0_77, %c0_78] : memref<4x1xf32, #tpu.memory_space<vmem>>, vector<4x1xf32>
    %151 = vector.broadcast %150 : vector<4x1xf32> to vector<4x128xf32>
    %152 = arith.addf %149, %151 : vector<4x128xf32>
    %c0_79 = arith.constant 0 : index
    %c0_80 = arith.constant 0 : index
    %c0_81 = arith.constant 0 : index
    %153 = vector.load %arg13[%c0_79, %c0_80, %c0_81] : memref<1x4x128xf32, #tpu.memory_space<vmem>>, vector<1x4x128xf32>
    %154 = vector.shape_cast %153 : vector<1x4x128xf32> to vector<4x128xf32>
    %155 = vector.shape_cast %152 : vector<4x128xf32> to vector<1x4x128xf32>
    tpu.vector_store %arg13[%c0_79, %c0_80, %c0_81], %155 {strides = array<i32>} : memref<1x4x128xf32, #tpu.memory_space<vmem>>, vector<1x4x128xf32>,
    return
  }
  func.func @transform_0(%arg0: i32) -> (i32, i32, i32) {
    %c0_i32 = arith.constant 0 : i32
    %c0_i32_0 = arith.constant 0 : i32
    %c0_i32_1 = arith.constant 0 : i32
    return %arg0, %c0_i32, %c0_i32_0 : i32, i32, i32
  }
  func.func @transform_1(%arg0: i32) -> (i32, i32, i32) {
    %c0_i32 = arith.constant 0 : i32
    %c0_i32_0 = arith.constant 0 : i32
    %c0_i32_1 = arith.constant 0 : i32
    return %arg0, %c0_i32, %c0_i32_0 : i32, i32, i32
  }
  func.func @transform_2(%arg0: i32) -> i32 {
    %c0_i32 = arith.constant 0 : i32
    %c0_i32_0 = arith.constant 0 : i32
    return %c0_i32 : i32
  }
  func.func @transform_3(%arg0: i32) -> (i32, i32) {
    %c0_i32 = arith.constant 0 : i32
    %c0_i32_0 = arith.constant 0 : i32
    %c0_i32_1 = arith.constant 0 : i32
    return %c0_i32, %c0_i32_0 : i32, i32
  }
  func.func @transform_4(%arg0: i32) -> (i32, i32) {
    %c0_i32 = arith.constant 0 : i32
    %c0_i32_0 = arith.constant 0 : i32
    %c0_i32_1 = arith.constant 0 : i32
    return %c0_i32, %c0_i32_0 : i32, i32
  }
  func.func @transform_5(%arg0: i32) -> (i32, i32, i32) {
    %c0_i32 = arith.constant 0 : i32
    %c0_i32_0 = arith.constant 0 : i32
    %c0_i32_1 = arith.constant 0 : i32
    %c0_i32_2 = arith.constant 0 : i32
    return %c0_i32, %c0_i32_0, %c0_i32_1 : i32, i32, i32
  }
  func.func @transform_6(%arg0: i32) -> (i32, i32, i32) {
    %c0_i32 = arith.constant 0 : i32
    %c0_i32_0 = arith.constant 0 : i32
    %c0_i32_1 = arith.constant 0 : i32
    %c0_i32_2 = arith.constant 0 : i32
    return %c0_i32, %c0_i32_0, %c0_i32_1 : i32, i32, i32
  }
  func.func @transform_7(%arg0: i32) -> (i32, i32, i32) {
    %c0_i32 = arith.constant 0 : i32
    %c0_i32_0 = arith.constant 0 : i32
    %c0_i32_1 = arith.constant 0 : i32
    %c0_i32_2 = arith.constant 0 : i32
    return %c0_i32, %c0_i32_0, %c0_i32_1 : i32, i32, i32
  }
  func.func @transform_8(%arg0: i32) -> (i32, i32, i32) {
    %c0_i32 = arith.constant 0 : i32
    %c0_i32_0 = arith.constant 0 : i32
    %c0_i32_1 = arith.constant 0 : i32
    %c0_i32_2 = arith.constant 0 : i32
    return %c0_i32, %c0_i32_0, %c0_i32_1 : i32, i32, i32
  }
  func.func @transform_9(%arg0: i32) -> (i32, i32, i32) {
    %c0_i32 = arith.constant 0 : i32
    %c0_i32_0 = arith.constant 0 : i32
    %c0_i32_1 = arith.constant 0 : i32
    %c0_i32_2 = arith.constant 0 : i32
    return %c0_i32, %c0_i32_0, %c0_i32_1 : i32, i32, i32
  }
  func.func @transform_10(%arg0: i32) -> (i32, i32) {
    %c0_i32 = arith.constant 0 : i32
    %c0_i32_0 = arith.constant 0 : i32
    %c0_i32_1 = arith.constant 0 : i32
    return %c0_i32, %c0_i32_0 : i32, i32
  }
  func.func @transform_11(%arg0: i32) -> (i32, i32) {
    %c0_i32 = arith.constant 0 : i32
    %c0_i32_0 = arith.constant 0 : i32
    %c0_i32_1 = arith.constant 0 : i32
    return %c0_i32, %c0_i32_0 : i32, i32
  }
  func.func @transform_12(%arg0: i32) -> (i32, i32, i32) {
    %c0_i32 = arith.constant 0 : i32
    %c0_i32_0 = arith.constant 0 : i32
    %c0_i32_1 = arith.constant 0 : i32
    return %arg0, %c0_i32, %c0_i32_0 : i32, i32, i32
  }
}

module attributes {stable_mosaic.version = 11 : i64} {
  func.func @_wavenet_kernel(%arg0: i32, %arg1: memref<1x4x128xf32, #tpu.memory_space<vmem>>, %arg2: memref<1x8x128xf32, #tpu.memory_space<vmem>>, %arg3: memref<2xf32, #tpu.memory_space<smem>>, %arg4: memref<32x4xbf16, #tpu.memory_space<vmem>>, %arg5: memref<32x1xf32, #tpu.memory_space<vmem>>, %arg6: memref<3x64x104xbf16, #tpu.memory_space<vmem>>, %arg7: memref<3x64x1xf32, #tpu.memory_space<vmem>>, %arg8: memref<3x64x1xf32, #tpu.memory_space<vmem>>, %arg9: memref<3x64x32xbf16, #tpu.memory_space<vmem>>, %arg10: memref<3x64x1xf32, #tpu.memory_space<vmem>>, %arg11: memref<4x32xbf16, #tpu.memory_space<vmem>>, %arg12: memref<4x1xf32, #tpu.memory_space<vmem>>, %arg13: memref<1x4x128xf32, #tpu.memory_space<vmem>>) attributes {dimension_semantics = [#tpu.dimension_semantics<parallel>], iteration_bounds = array<i64: 2>, scalar_prefetch = 0 : i64, scratch_operands = 0 : i64, tpu.core_type = #tpu.core_type<tc>, window_params = [{transform_indices = @transform_0, window_bounds = array<i64: 1, 4, 128>}, {transform_indices = @transform_1, window_bounds = array<i64: 1, 8, 128>}, {transform_indices = @transform_2, window_bounds = array<i64: 2>}, {pipeline_mode = #tpu.pipeline_mode<synchronous>, transform_indices = @transform_3, window_bounds = array<i64: 32, 4>}, {pipeline_mode = #tpu.pipeline_mode<synchronous>, transform_indices = @transform_4, window_bounds = array<i64: 32, 1>}, {pipeline_mode = #tpu.pipeline_mode<synchronous>, transform_indices = @transform_5, window_bounds = array<i64: 3, 64, 104>}, {pipeline_mode = #tpu.pipeline_mode<synchronous>, transform_indices = @transform_6, window_bounds = array<i64: 3, 64, 1>}, {pipeline_mode = #tpu.pipeline_mode<synchronous>, transform_indices = @transform_7, window_bounds = array<i64: 3, 64, 1>}, {pipeline_mode = #tpu.pipeline_mode<synchronous>, transform_indices = @transform_8, window_bounds = array<i64: 3, 64, 32>}, {pipeline_mode = #tpu.pipeline_mode<synchronous>, transform_indices = @transform_9, window_bounds = array<i64: 3, 64, 1>}, {pipeline_mode = #tpu.pipeline_mode<synchronous>, transform_indices = @transform_10, window_bounds = array<i64: 4, 32>}, {pipeline_mode = #tpu.pipeline_mode<synchronous>, transform_indices = @transform_11, window_bounds = array<i64: 4, 1>}, {transform_indices = @transform_12, window_bounds = array<i64: 1, 4, 128>}]} {
    %0 = arith.index_cast %arg0 : i32 to index
    %1 = memref.load %arg3[%0] : memref<2xf32, #tpu.memory_space<smem>>
    %c0 = arith.constant 0 : index
    %c0_0 = arith.constant 0 : index
    %c0_1 = arith.constant 0 : index
    %2 = vector.load %arg1[%c0, %c0_0, %c0_1] : memref<1x4x128xf32, #tpu.memory_space<vmem>>, vector<1x4x128xf32>
    %3 = vector.shape_cast %2 : vector<1x4x128xf32> to vector<4x128xf32>
    %4 = arith.truncf %3 : vector<4x128xf32> to vector<4x128xbf16>
    %c0_2 = arith.constant 0 : index
    %c0_3 = arith.constant 0 : index
    %c0_4 = arith.constant 0 : index
    %5 = vector.load %arg2[%c0_2, %c0_3, %c0_4] : memref<1x8x128xf32, #tpu.memory_space<vmem>>, vector<1x8x128xf32>
    %6 = vector.shape_cast %5 : vector<1x8x128xf32> to vector<8x128xf32>
    %c0_5 = arith.constant 0 : index
    %c0_6 = arith.constant 0 : index
    %7 = vector.load %arg4[%c0_5, %c0_6] : memref<32x4xbf16, #tpu.memory_space<vmem>>, vector<32x4xbf16>
    %cst = arith.constant dense<0.000000e+00> : vector<32x128xf32>
    %8 = tpu.matmul %7, %4, %cst {dimension_numbers = #tpu.dot_dimension_numbers<[1], [0], [0], [1], [0, 0, 1, 1], [], []>} : vector<32x4xbf16>, vector<4x128xbf16>, vector<32x128xf32> -> vector<32x128xf32>
    %c0_7 = arith.constant 0 : index
    %c0_8 = arith.constant 0 : index
    %9 = vector.load %arg5[%c0_7, %c0_8] : memref<32x1xf32, #tpu.memory_space<vmem>>, vector<32x1xf32>
    %10 = vector.broadcast %9 : vector<32x1xf32> to vector<32x128xf32>
    %11 = arith.addf %8, %10 : vector<32x128xf32>
    %cst_9 = arith.constant 0.000000e+00 : f32
    %12 = vector.broadcast %cst_9 : f32 to vector<32x128xf32>
    %13 = tpu.iota {dimensions = array<i32: 1>} : vector<32x128xi32>
    %c1_i32 = arith.constant 1 : i32
    %14 = vector.broadcast %c1_i32 : i32 to vector<32x128xi32>
    %15 = arith.cmpi sge, %13, %14 : vector<32x128xi32>
    %c1_i32_10 = arith.constant 1 : i32
    %16 = tpu.dynamic_rotate %11 by %c1_i32_10 dim 1 : vector<32x128xf32>, i32 -> vector<32x128xf32>
    %cst_11 = arith.constant 0.000000e+00 : f32
    %17 = vector.broadcast %cst_11 : f32 to vector<32x128xf32>
    %18 = arith.select %15, %16, %17 : vector<32x128xi1>, vector<32x128xf32>
    %c127_i32 = arith.constant 127 : i32
    %19 = vector.broadcast %c127_i32 : i32 to vector<32x128xi32>
    %20 = arith.cmpi slt, %13, %19 : vector<32x128xi32>
    %c127_i32_12 = arith.constant 127 : i32
    %21 = tpu.dynamic_rotate %11 by %c127_i32_12 dim 1 : vector<32x128xf32>, i32 -> vector<32x128xf32>
    %cst_13 = arith.constant 0.000000e+00 : f32
    %22 = vector.broadcast %cst_13 : f32 to vector<32x128xf32>
    %23 = arith.select %20, %21, %22 : vector<32x128xi1>, vector<32x128xf32>
    %24 = tpu.concatenate %18, %11, %23, %6 in 0 : vector<32x128xf32>, vector<32x128xf32>, vector<32x128xf32>, vector<8x128xf32> -> vector<104x128xf32>
    %25 = arith.truncf %24 : vector<104x128xf32> to vector<104x128xbf16>
    %c0_14 = arith.constant 0 : index
    %c0_15 = arith.constant 0 : index
    %c0_16 = arith.constant 0 : index
    %26 = vector.load %arg6[%c0_14, %c0_15, %c0_16] : memref<3x64x104xbf16, #tpu.memory_space<vmem>>, vector<1x64x104xbf16>
    %27 = vector.shape_cast %26 : vector<1x64x104xbf16> to vector<64x104xbf16>
    %cst_17 = arith.constant dense<0.000000e+00> : vector<64x128xf32>
    %28 = tpu.matmul %27, %25, %cst_17 {dimension_numbers = #tpu.dot_dimension_numbers<[1], [0], [0], [1], [0, 0, 1, 1], [], []>} : vector<64x104xbf16>, vector<104x128xbf16>, vector<64x128xf32> -> vector<64x128xf32>
    %c0_18 = arith.constant 0 : index
    %c0_19 = arith.constant 0 : index
    %c0_20 = arith.constant 0 : index
    %29 = vector.load %arg7[%c0_18, %c0_19, %c0_20] : memref<3x64x1xf32, #tpu.memory_space<vmem>>, vector<1x64x1xf32>
    %30 = vector.shape_cast %29 : vector<1x64x1xf32> to vector<64x1xf32>
    %31 = vector.broadcast %1 : f32 to vector<64x1xf32>
    %32 = arith.mulf %30, %31 : vector<64x1xf32>
    %c0_21 = arith.constant 0 : index
    %c0_22 = arith.constant 0 : index
    %c0_23 = arith.constant 0 : index
    %33 = vector.load %arg8[%c0_21, %c0_22, %c0_23] : memref<3x64x1xf32, #tpu.memory_space<vmem>>, vector<1x64x1xf32>
    %34 = vector.shape_cast %33 : vector<1x64x1xf32> to vector<64x1xf32>
    %35 = arith.addf %32, %34 : vector<64x1xf32>
    %36 = vector.broadcast %35 : vector<64x1xf32> to vector<64x128xf32>
    %37 = arith.addf %28, %36 : vector<64x128xf32>
    %38 = vector.extract_strided_slice %37 {offsets = [0, 0], sizes = [32, 128], strides = [1, 1]} : vector<64x128xf32> to vector<32x128xf32>
    %39 = math.tanh %38 : vector<32x128xf32>
    %40 = vector.extract_strided_slice %37 {offsets = [32, 0], sizes = [32, 128], strides = [1, 1]} : vector<64x128xf32> to vector<32x128xf32>
    %41 = arith.negf %40 : vector<32x128xf32>
    %42 = math.exp %41 : vector<32x128xf32>
    %cst_24 = arith.constant 1.000000e+00 : f32
    %43 = vector.broadcast %cst_24 : f32 to vector<32x128xf32>
    %44 = arith.addf %43, %42 : vector<32x128xf32>
    %45 = arith.divf %43, %44 : vector<32x128xf32>
    %46 = arith.mulf %39, %45 : vector<32x128xf32>
    %c0_25 = arith.constant 0 : index
    %c0_26 = arith.constant 0 : index
    %c0_27 = arith.constant 0 : index
    %47 = vector.load %arg9[%c0_25, %c0_26, %c0_27] : memref<3x64x32xbf16, #tpu.memory_space<vmem>>, vector<1x64x32xbf16>
    %48 = vector.shape_cast %47 : vector<1x64x32xbf16> to vector<64x32xbf16>
    %49 = arith.truncf %46 : vector<32x128xf32> to vector<32x128xbf16>
    %cst_28 = arith.constant dense<0.000000e+00> : vector<64x128xf32>
    %50 = tpu.matmul %48, %49, %cst_28 {dimension_numbers = #tpu.dot_dimension_numbers<[1], [0], [0], [1], [0, 0, 1, 1], [], []>} : vector<64x32xbf16>, vector<32x128xbf16>, vector<64x128xf32> -> vector<64x128xf32>
    %c0_29 = arith.constant 0 : index
    %c0_30 = arith.constant 0 : index
    %c0_31 = arith.constant 0 : index
    %51 = vector.load %arg10[%c0_29, %c0_30, %c0_31] : memref<3x64x1xf32, #tpu.memory_space<vmem>>, vector<1x64x1xf32>
    %52 = vector.shape_cast %51 : vector<1x64x1xf32> to vector<64x1xf32>
    %53 = vector.broadcast %52 : vector<64x1xf32> to vector<64x128xf32>
    %54 = arith.addf %50, %53 : vector<64x128xf32>
    %55 = vector.extract_strided_slice %54 {offsets = [0, 0], sizes = [32, 128], strides = [1, 1]} : vector<64x128xf32> to vector<32x128xf32>
    %56 = arith.addf %11, %55 : vector<32x128xf32>
    %57 = vector.extract_strided_slice %54 {offsets = [32, 0], sizes = [32, 128], strides = [1, 1]} : vector<64x128xf32> to vector<32x128xf32>
    %58 = arith.addf %12, %57 : vector<32x128xf32>
    %c2_i32 = arith.constant 2 : i32
    %59 = vector.broadcast %c2_i32 : i32 to vector<32x128xi32>
    %60 = arith.cmpi sge, %13, %59 : vector<32x128xi32>
    %c2_i32_32 = arith.constant 2 : i32
    %61 = tpu.dynamic_rotate %56 by %c2_i32_32 dim 1 : vector<32x128xf32>, i32 -> vector<32x128xf32>
    %cst_33 = arith.constant 0.000000e+00 : f32
    %62 = vector.broadcast %cst_33 : f32 to vector<32x128xf32>
    %63 = arith.select %60, %61, %62 : vector<32x128xi1>, vector<32x128xf32>
    %c126_i32 = arith.constant 126 : i32
    %64 = vector.broadcast %c126_i32 : i32 to vector<32x128xi32>
    %65 = arith.cmpi slt, %13, %64 : vector<32x128xi32>
    %c126_i32_34 = arith.constant 126 : i32
    %66 = tpu.dynamic_rotate %56 by %c126_i32_34 dim 1 : vector<32x128xf32>, i32 -> vector<32x128xf32>
    %cst_35 = arith.constant 0.000000e+00 : f32
    %67 = vector.broadcast %cst_35 : f32 to vector<32x128xf32>
    %68 = arith.select %65, %66, %67 : vector<32x128xi1>, vector<32x128xf32>
    %69 = tpu.concatenate %63, %56, %68, %6 in 0 : vector<32x128xf32>, vector<32x128xf32>, vector<32x128xf32>, vector<8x128xf32> -> vector<104x128xf32>
    %70 = arith.truncf %69 : vector<104x128xf32> to vector<104x128xbf16>
    %c1 = arith.constant 1 : index
    %c0_36 = arith.constant 0 : index
    %c0_37 = arith.constant 0 : index
    %71 = vector.load %arg6[%c1, %c0_36, %c0_37] : memref<3x64x104xbf16, #tpu.memory_space<vmem>>, vector<1x64x104xbf16>
    %72 = vector.shape_cast %71 : vector<1x64x104xbf16> to vector<64x104xbf16>
    %cst_38 = arith.constant dense<0.000000e+00> : vector<64x128xf32>
    %73 = tpu.matmul %72, %70, %cst_38 {dimension_numbers = #tpu.dot_dimension_numbers<[1], [0], [0], [1], [0, 0, 1, 1], [], []>} : vector<64x104xbf16>, vector<104x128xbf16>, vector<64x128xf32> -> vector<64x128xf32>
    %c1_39 = arith.constant 1 : index
    %c0_40 = arith.constant 0 : index
    %c0_41 = arith.constant 0 : index
    %74 = vector.load %arg7[%c1_39, %c0_40, %c0_41] : memref<3x64x1xf32, #tpu.memory_space<vmem>>, vector<1x64x1xf32>
    %75 = vector.shape_cast %74 : vector<1x64x1xf32> to vector<64x1xf32>
    %76 = vector.broadcast %1 : f32 to vector<64x1xf32>
    %77 = arith.mulf %75, %76 : vector<64x1xf32>
    %c1_42 = arith.constant 1 : index
    %c0_43 = arith.constant 0 : index
    %c0_44 = arith.constant 0 : index
    %78 = vector.load %arg8[%c1_42, %c0_43, %c0_44] : memref<3x64x1xf32, #tpu.memory_space<vmem>>, vector<1x64x1xf32>
    %79 = vector.shape_cast %78 : vector<1x64x1xf32> to vector<64x1xf32>
    %80 = arith.addf %77, %79 : vector<64x1xf32>
    %81 = vector.broadcast %80 : vector<64x1xf32> to vector<64x128xf32>
    %82 = arith.addf %73, %81 : vector<64x128xf32>
    %83 = vector.extract_strided_slice %82 {offsets = [0, 0], sizes = [32, 128], strides = [1, 1]} : vector<64x128xf32> to vector<32x128xf32>
    %84 = math.tanh %83 : vector<32x128xf32>
    %85 = vector.extract_strided_slice %82 {offsets = [32, 0], sizes = [32, 128], strides = [1, 1]} : vector<64x128xf32> to vector<32x128xf32>
    %86 = arith.negf %85 : vector<32x128xf32>
    %87 = math.exp %86 : vector<32x128xf32>
    %cst_45 = arith.constant 1.000000e+00 : f32
    %88 = vector.broadcast %cst_45 : f32 to vector<32x128xf32>
    %89 = arith.addf %88, %87 : vector<32x128xf32>
    %90 = arith.divf %88, %89 : vector<32x128xf32>
    %91 = arith.mulf %84, %90 : vector<32x128xf32>
    %c1_46 = arith.constant 1 : index
    %c0_47 = arith.constant 0 : index
    %c0_48 = arith.constant 0 : index
    %92 = vector.load %arg9[%c1_46, %c0_47, %c0_48] : memref<3x64x32xbf16, #tpu.memory_space<vmem>>, vector<1x64x32xbf16>
    %93 = vector.shape_cast %92 : vector<1x64x32xbf16> to vector<64x32xbf16>
    %94 = arith.truncf %91 : vector<32x128xf32> to vector<32x128xbf16>
    %cst_49 = arith.constant dense<0.000000e+00> : vector<64x128xf32>
    %95 = tpu.matmul %93, %94, %cst_49 {dimension_numbers = #tpu.dot_dimension_numbers<[1], [0], [0], [1], [0, 0, 1, 1], [], []>} : vector<64x32xbf16>, vector<32x128xbf16>, vector<64x128xf32> -> vector<64x128xf32>
    %c1_50 = arith.constant 1 : index
    %c0_51 = arith.constant 0 : index
    %c0_52 = arith.constant 0 : index
    %96 = vector.load %arg10[%c1_50, %c0_51, %c0_52] : memref<3x64x1xf32, #tpu.memory_space<vmem>>, vector<1x64x1xf32>
    %97 = vector.shape_cast %96 : vector<1x64x1xf32> to vector<64x1xf32>
    %98 = vector.broadcast %97 : vector<64x1xf32> to vector<64x128xf32>
    %99 = arith.addf %95, %98 : vector<64x128xf32>
    %100 = vector.extract_strided_slice %99 {offsets = [0, 0], sizes = [32, 128], strides = [1, 1]} : vector<64x128xf32> to vector<32x128xf32>
    %101 = arith.addf %56, %100 : vector<32x128xf32>
    %102 = vector.extract_strided_slice %99 {offsets = [32, 0], sizes = [32, 128], strides = [1, 1]} : vector<64x128xf32> to vector<32x128xf32>
    %103 = arith.addf %58, %102 : vector<32x128xf32>
    %c4_i32 = arith.constant 4 : i32
    %104 = vector.broadcast %c4_i32 : i32 to vector<32x128xi32>
    %105 = arith.cmpi sge, %13, %104 : vector<32x128xi32>
    %c4_i32_53 = arith.constant 4 : i32
    %106 = tpu.dynamic_rotate %101 by %c4_i32_53 dim 1 : vector<32x128xf32>, i32 -> vector<32x128xf32>
    %cst_54 = arith.constant 0.000000e+00 : f32
    %107 = vector.broadcast %cst_54 : f32 to vector<32x128xf32>
    %108 = arith.select %105, %106, %107 : vector<32x128xi1>, vector<32x128xf32>
    %c124_i32 = arith.constant 124 : i32
    %109 = vector.broadcast %c124_i32 : i32 to vector<32x128xi32>
    %110 = arith.cmpi slt, %13, %109 : vector<32x128xi32>
    %c124_i32_55 = arith.constant 124 : i32
    %111 = tpu.dynamic_rotate %101 by %c124_i32_55 dim 1 : vector<32x128xf32>, i32 -> vector<32x128xf32>
    %cst_56 = arith.constant 0.000000e+00 : f32
    %112 = vector.broadcast %cst_56 : f32 to vector<32x128xf32>
    %113 = arith.select %110, %111, %112 : vector<32x128xi1>, vector<32x128xf32>
    %114 = tpu.concatenate %108, %101, %113, %6 in 0 : vector<32x128xf32>, vector<32x128xf32>, vector<32x128xf32>, vector<8x128xf32> -> vector<104x128xf32>
    %115 = arith.truncf %114 : vector<104x128xf32> to vector<104x128xbf16>
    %c2 = arith.constant 2 : index
    %c0_57 = arith.constant 0 : index
    %c0_58 = arith.constant 0 : index
    %116 = vector.load %arg6[%c2, %c0_57, %c0_58] : memref<3x64x104xbf16, #tpu.memory_space<vmem>>, vector<1x64x104xbf16>
    %117 = vector.shape_cast %116 : vector<1x64x104xbf16> to vector<64x104xbf16>
    %cst_59 = arith.constant dense<0.000000e+00> : vector<64x128xf32>
    %118 = tpu.matmul %117, %115, %cst_59 {dimension_numbers = #tpu.dot_dimension_numbers<[1], [0], [0], [1], [0, 0, 1, 1], [], []>} : vector<64x104xbf16>, vector<104x128xbf16>, vector<64x128xf32> -> vector<64x128xf32>
    %c2_60 = arith.constant 2 : index
    %c0_61 = arith.constant 0 : index
    %c0_62 = arith.constant 0 : index
    %119 = vector.load %arg7[%c2_60, %c0_61, %c0_62] : memref<3x64x1xf32, #tpu.memory_space<vmem>>, vector<1x64x1xf32>
    %120 = vector.shape_cast %119 : vector<1x64x1xf32> to vector<64x1xf32>
    %121 = vector.broadcast %1 : f32 to vector<64x1xf32>
    %122 = arith.mulf %120, %121 : vector<64x1xf32>
    %c2_63 = arith.constant 2 : index
    %c0_64 = arith.constant 0 : index
    %c0_65 = arith.constant 0 : index
    %123 = vector.load %arg8[%c2_63, %c0_64, %c0_65] : memref<3x64x1xf32, #tpu.memory_space<vmem>>, vector<1x64x1xf32>
    %124 = vector.shape_cast %123 : vector<1x64x1xf32> to vector<64x1xf32>
    %125 = arith.addf %122, %124 : vector<64x1xf32>
    %126 = vector.broadcast %125 : vector<64x1xf32> to vector<64x128xf32>
    %127 = arith.addf %118, %126 : vector<64x128xf32>
    %128 = vector.extract_strided_slice %127 {offsets = [0, 0], sizes = [32, 128], strides = [1, 1]} : vector<64x128xf32> to vector<32x128xf32>
    %129 = math.tanh %128 : vector<32x128xf32>
    %130 = vector.extract_strided_slice %127 {offsets = [32, 0], sizes = [32, 128], strides = [1, 1]} : vector<64x128xf32> to vector<32x128xf32>
    %131 = arith.negf %130 : vector<32x128xf32>
    %132 = math.exp %131 : vector<32x128xf32>
    %cst_66 = arith.constant 1.000000e+00 : f32
    %133 = vector.broadcast %cst_66 : f32 to vector<32x128xf32>
    %134 = arith.addf %133, %132 : vector<32x128xf32>
    %135 = arith.divf %133, %134 : vector<32x128xf32>
    %136 = arith.mulf %129, %135 : vector<32x128xf32>
    %c2_67 = arith.constant 2 : index
    %c0_68 = arith.constant 0 : index
    %c0_69 = arith.constant 0 : index
    %137 = vector.load %arg9[%c2_67, %c0_68, %c0_69] : memref<3x64x32xbf16, #tpu.memory_space<vmem>>, vector<1x64x32xbf16>
    %138 = vector.shape_cast %137 : vector<1x64x32xbf16> to vector<64x32xbf16>
    %139 = arith.truncf %136 : vector<32x128xf32> to vector<32x128xbf16>
    %cst_70 = arith.constant dense<0.000000e+00> : vector<64x128xf32>
    %140 = tpu.matmul %138, %139, %cst_70 {dimension_numbers = #tpu.dot_dimension_numbers<[1], [0], [0], [1], [0, 0, 1, 1], [], []>} : vector<64x32xbf16>, vector<32x128xbf16>, vector<64x128xf32> -> vector<64x128xf32>
    %c2_71 = arith.constant 2 : index
    %c0_72 = arith.constant 0 : index
    %c0_73 = arith.constant 0 : index
    %141 = vector.load %arg10[%c2_71, %c0_72, %c0_73] : memref<3x64x1xf32, #tpu.memory_space<vmem>>, vector<1x64x1xf32>
    %142 = vector.shape_cast %141 : vector<1x64x1xf32> to vector<64x1xf32>
    %143 = vector.broadcast %142 : vector<64x1xf32> to vector<64x128xf32>
    %144 = arith.addf %140, %143 : vector<64x128xf32>
    %145 = vector.extract_strided_slice %144 {offsets = [32, 0], sizes = [32, 128], strides = [1, 1]} : vector<64x128xf32> to vector<32x128xf32>
    %146 = arith.addf %103, %145 : vector<32x128xf32>
    %c0_74 = arith.constant 0 : index
    %c0_75 = arith.constant 0 : index
    %147 = vector.load %arg11[%c0_74, %c0_75] : memref<4x32xbf16, #tpu.memory_space<vmem>>, vector<4x32xbf16>
    %148 = arith.truncf %146 : vector<32x128xf32> to vector<32x128xbf16>
    %cst_76 = arith.constant dense<0.000000e+00> : vector<4x128xf32>
    %149 = tpu.matmul %147, %148, %cst_76 {dimension_numbers = #tpu.dot_dimension_numbers<[1], [0], [0], [1], [0, 0, 1, 1], [], []>} : vector<4x32xbf16>, vector<32x128xbf16>, vector<4x128xf32> -> vector<4x128xf32>
    %c0_77 = arith.constant 0 : index
    %c0_78 = arith.constant 0 : index
    %150 = vector.load %arg12[%c0_77, %c0_78] : memref<4x1xf32, #tpu.memory_space<vmem>>, vector<4x1xf32>
    %151 = vector.broadcast %150 : vector<4x1xf32> to vector<4x128xf32>
    %152 = arith.addf %149, %151 : vector<4x128xf32>
    %c0_79 = arith.constant 0 : index
    %c0_80 = arith.constant 0 : index
    %c0_81 = arith.constant 0 : index
    %153 = vector.load %arg13[%c0_79, %c0_80, %c0_81] : memref<1x4x128xf32, #tpu.memory_space<vmem>>, vector<1x4x128xf32>
    %154 = vector.shape_cast %153 : vector<1x4x128xf32> to vector<4x128xf32>
    %155 = vector.shape_cast %152 : vector<4x128xf32> to vector<1x4x128xf32>
    tpu.vector_store %arg13[%c0_79, %c0_80, %c0_81], %155 {strides = array<i32>} : memref<1x4x128xf32, #tpu.memory_space<vmem>>, vector<1x4x128xf32>,
    return
  }
  func.func @transform_0(%arg0: i32) -> (i32, i32, i32) {
    %c0_i32 = arith.constant 0 : i32
    %c0_i32_0 = arith.constant 0 : i32
    %c0_i32_1 = arith.constant 0 : i32
    return %arg0, %c0_i32, %c0_i32_0 : i32, i32, i32
  }
  func.func @transform_1(%arg0: i32) -> (i32, i32, i32) {
    %c0_i32 = arith.constant 0 : i32
    %c0_i32_0 = arith.constant 0 : i32
    %c0_i32_1 = arith.constant 0 : i32
    return %arg0, %c0_i32, %c0_i32_0 : i32, i32, i32
  }
  func.func @transform_2(%arg0: i32) -> i32 {
    %c0_i32 = arith.constant 0 : i32
    %c0_i32_0 = arith.constant 0 : i32
    return %c0_i32 : i32
  }
  func.func @transform_3(%arg0: i32) -> (i32, i32) {
    %c0_i32 = arith.constant 0 : i32
    %c0_i32_0 = arith.constant 0 : i32
    %c0_i32_1 = arith.constant 0 : i32
    return %c0_i32, %c0_i32_0 : i32, i32
  }
  func.func @transform_4(%arg0: i32) -> (i32, i32) {
    %c0_i32 = arith.constant 0 : i32
    %c0_i32_0 = arith.constant 0 : i32
    %c0_i32_1 = arith.constant 0 : i32
    return %c0_i32, %c0_i32_0 : i32, i32
  }
  func.func @transform_5(%arg0: i32) -> (i32, i32, i32) {
    %c0_i32 = arith.constant 0 : i32
    %c0_i32_0 = arith.constant 0 : i32
    %c0_i32_1 = arith.constant 0 : i32
    %c0_i32_2 = arith.constant 0 : i32
    return %c0_i32, %c0_i32_0, %c0_i32_1 : i32, i32, i32
  }
  func.func @transform_6(%arg0: i32) -> (i32, i32, i32) {
    %c0_i32 = arith.constant 0 : i32
    %c0_i32_0 = arith.constant 0 : i32
    %c0_i32_1 = arith.constant 0 : i32
    %c0_i32_2 = arith.constant 0 : i32
    return %c0_i32, %c0_i32_0, %c0_i32_1 : i32, i32, i32
  }
  func.func @transform_7(%arg0: i32) -> (i32, i32, i32) {
    %c0_i32 = arith.constant 0 : i32
    %c0_i32_0 = arith.constant 0 : i32
    %c0_i32_1 = arith.constant 0 : i32
    %c0_i32_2 = arith.constant 0 : i32
    return %c0_i32, %c0_i32_0, %c0_i32_1 : i32, i32, i32
  }
  func.func @transform_8(%arg0: i32) -> (i32, i32, i32) {
    %c0_i32 = arith.constant 0 : i32
    %c0_i32_0 = arith.constant 0 : i32
    %c0_i32_1 = arith.constant 0 : i32
    %c0_i32_2 = arith.constant 0 : i32
    return %c0_i32, %c0_i32_0, %c0_i32_1 : i32, i32, i32
  }
  func.func @transform_9(%arg0: i32) -> (i32, i32, i32) {
    %c0_i32 = arith.constant 0 : i32
    %c0_i32_0 = arith.constant 0 : i32
    %c0_i32_1 = arith.constant 0 : i32
    %c0_i32_2 = arith.constant 0 : i32
    return %c0_i32, %c0_i32_0, %c0_i32_1 : i32, i32, i32
  }
  func.func @transform_10(%arg0: i32) -> (i32, i32) {
    %c0_i32 = arith.constant 0 : i32
    %c0_i32_0 = arith.constant 0 : i32
    %c0_i32_1 = arith.constant 0 : i32
    return %c0_i32, %c0_i32_0 : i32, i32
  }
  func.func @transform_11(%arg0: i32) -> (i32, i32) {
    %c0_i32 = arith.constant 0 : i32
    %c0_i32_0 = arith.constant 0 : i32
    %c0_i32_1 = arith.constant 0 : i32
    return %c0_i32, %c0_i32_0 : i32, i32
  }
  func.func @transform_12(%arg0: i32) -> (i32, i32, i32) {
    %c0_i32 = arith.constant 0 : i32
    %c0_i32_0 = arith.constant 0 : i32
    %c0_i32_1 = arith.constant 0 : i32
    return %arg0, %c0_i32, %c0_i32_0 : i32, i32, i32
  }
}

</mosaic_0001>

<llo_original>
// kernel: tpu_custom_call.1
$region0: #{tpu_custom_call.1}
  #allocation0 [shape = 'u32[]', space=smem, size = 0x4, offset = 0x4, fixed_abs, tag = 'smem constant byte address 0x4 - core index']
  #allocation1 [shape = 'u32[144,128]{1,0:T(1,128)}', space=vmem, size = 0x12000, scoped, tag = 'internal scratch']
  %s0 = inlined_call_operand.vmem [shape: f32[2,4,128], index: 0, kind: input, shape index: {}]
  %s1 = inlined_call_operand.vmem [shape: f32[2,8,128], index: 1, kind: input, shape index: {}]
  %s2 = inlined_call_operand.vmem [shape: f32[2], index: 2, kind: input, shape index: {}]
  %s3 = inlined_call_operand.vmem [shape: bf16[32,4], index: 3, kind: input, shape index: {}]
  %s4 = inlined_call_operand.vmem [shape: f32[32,1], index: 4, kind: input, shape index: {}]
  %s5 = inlined_call_operand.vmem [shape: bf16[3,64,104], index: 5, kind: input, shape index: {}]
  %s6 = inlined_call_operand.vmem [shape: f32[3,64,1], index: 6, kind: input, shape index: {}]
  %s7 = inlined_call_operand.vmem [shape: f32[3,64,1], index: 7, kind: input, shape index: {}]
  %s8 = inlined_call_operand.vmem [shape: bf16[3,64,32], index: 8, kind: input, shape index: {}]
  %s9 = inlined_call_operand.vmem [shape: f32[3,64,1], index: 9, kind: input, shape index: {}]
  %s10 = inlined_call_operand.vmem [shape: bf16[4,32], index: 10, kind: input, shape index: {}]
  %s11 = inlined_call_operand.vmem [shape: f32[4,1], index: 11, kind: input, shape index: {}]
  %s12 = inlined_call_operand.hbm [shape: f32[2,4,128], index: 12, kind: output, shape index: {}]
  %s13 = sld [smem:[#allocation0]]
  $region85: #{tpu_custom_call.1} parent=0
    _
  %s15 = ssub.s32 1, %s13
  %s16 = scalar_select 0, %s15, %s13
  $region1: #{tpu_custom_call.1} parent=0
    #allocation2 [shape = 'u8[512]{0}', space=smem, size = 0x200, scoped, tag = 'input window, operand 2, single buffered']
    #allocation3 [shape = 's32[2]{0}', space=sflag, size = 0x8, scoped, tag = 'scoped memory for tpu_custom_call.1']
    #allocation4 [shape = 's32[2]{0}', space=sflag, size = 0x8, scoped, tag = 'scoped memory for tpu_custom_call.1']
    #allocation5 [shape = 'u8[4096]{0}', space=vmem, size = 0x1000, scoped, tag = 'output window, operand 0']
    %17 = vsyncpa [#allocation4], 0
    %18 = vsyncpa [#allocation3], 0
    %s19 = scalar_lea.sflag [#allocation3], 1
    %20 = vsyncpa %s19, 0
    loop: start=0, step=1, limit=4
    $region2: #{tpu_custom_call.1} parent=1 // loop_pre_header
      _
    $region3: #{tpu_custom_call.1} parent=1 // loop_header
      %s22 = sphi 0, %s26
      %p23 = scmp.ge.s32.totalorder %s22, 4
      %s32 = sphi 0, %s34
      %s35 = sphi 0, %s32
      %s36 = sphi 0, %s35
      %s52 = sphi 0, %s36
      %s58 = sphi 0, %s60
      %s61 = sphi 0, %s58
      %s62 = sphi 0, %s61
      %s78 = sphi 0, %s62
      %s82 = sphi 0, %s82
      %s84 = sphi 0, %s82
      %s85 = sphi 0, %s84
      %s99 = sphi 0, %s85
      %s103 = sphi 0, %s103
      %s105 = sphi 0, %s103
      %s106 = sphi 0, %s105
      %s120 = sphi 0, %s106
      %s124 = sphi 0, %s124
      %s126 = sphi 0, %s124
      %s127 = sphi 0, %s126
      %s141 = sphi 0, %s127
      %s145 = sphi 0, %s145
      %s147 = sphi 0, %s145
      %s148 = sphi 0, %s147
      %s162 = sphi 0, %s148
      %s166 = sphi 0, %s166
      %s168 = sphi 0, %s166
      %s169 = sphi 0, %s168
      %s183 = sphi 0, %s169
      %s187 = sphi 0, %s187
      %s189 = sphi 0, %s187
      %s190 = sphi 0, %s189
      %s204 = sphi 0, %s190
      %s208 = sphi 0, %s208
      %s210 = sphi 0, %s208
      %s211 = sphi 0, %s210
      %s225 = sphi 0, %s211
      %s229 = sphi 0, %s229
      %s231 = sphi 0, %s229
      %s232 = sphi 0, %s231
      %s246 = sphi 0, %s232
      %s250 = sphi 0, %s250
      %s252 = sphi 0, %s250
      %s253 = sphi 0, %s252
      %s267 = sphi 0, %s253
      %s271 = sphi 0, %s271
      %s273 = sphi 0, %s271
      %s274 = sphi 0, %s273
      %s288 = sphi 0, %s274
      %s294 = sphi 0, %s296
      %s297 = sphi 0, %s294
      %s298 = sphi 0, %s297
      %s314 = sphi 0, %s298
    $region4: #{tpu_custom_call.1} parent=1 // loop_header_branch
      %25 = sbr.rel (%p23) target = $region8
    $region5: #{tpu_custom_call.1} parent=1 // loop_body
      %s27 = ssub.s32 %s22, 1
      %s28 = ssub.s32 %s22, 2
      %s29 = sadd.s32 %s22, 1
      %s30 = ssub.s32 %s22, %s29
      %p31 = scmp.eq.s32.totalorder %s30, 0
      %s33 = sadd.s32 %s32, 1
      %s34 = scalar_select %p31, %s32, %s33
      %p37 = pneg %p31
      %p38 = scmp.eq.s32.totalorder %s22, 1
      %p39 = por %p37, %p38
      %p40 = scmp.ne.s32.totalorder %s32, %s35
      %p41 = scmp.eq.s32.totalorder %s22, 0
      %p42 = por %p40, %p41
      %p43 = scmp.ne.s32.totalorder %s32, %s35
      %p44 = scmp.eq.s32.totalorder %s27, 1
      %p45 = por %p43, %p44
      %p46 = scmp.ne.s32.totalorder %s35, %s36
      %p47 = scmp.eq.s32.totalorder %s27, 0
      %p48 = por %p46, %p47
      %p49 = scmp.ne.s32.totalorder %s35, %s36
      %p50 = scmp.eq.s32.totalorder %s28, 1
      %p51 = por %p49, %p50
      %p53 = scmp.ne.s32.totalorder %s36, %s52
      %p54 = scmp.eq.s32.totalorder %s28, 0
      %p55 = por %p53, %p54
      %s56 = ssub.s32 %s22, %s29
      %p57 = scmp.eq.s32.totalorder %s56, 0
      %s59 = sadd.s32 %s58, 1
      %s60 = scalar_select %p57, %s58, %s59
      %p63 = pneg %p57
      %p64 = scmp.eq.s32.totalorder %s22, 1
      %p65 = por %p63, %p64
      %p66 = scmp.ne.s32.totalorder %s58, %s61
      %p67 = scmp.eq.s32.totalorder %s22, 0
      %p68 = por %p66, %p67
      %p69 = scmp.ne.s32.totalorder %s58, %s61
      %p70 = scmp.eq.s32.totalorder %s27, 1
      %p71 = por %p69, %p70
      %p72 = scmp.ne.s32.totalorder %s61, %s62
      %p73 = scmp.eq.s32.totalorder %s27, 0
      %p74 = por %p72, %p73
      %p75 = scmp.ne.s32.totalorder %s61, %s62
      %p76 = scmp.eq.s32.totalorder %s28, 1
      %p77 = por %p75, %p76
      %p79 = scmp.ne.s32.totalorder %s62, %s78
      %p80 = scmp.eq.s32.totalorder %s28, 0
      %p81 = por %p79, %p80
      %s83 = sadd.s32 %s82, 1
      %p86 = scmp.eq.s32.totalorder %s22, 1
      %p87 = scmp.ne.s32.totalorder %s82, %s84
      %p88 = scmp.eq.s32.totalorder %s22, 0
      %p89 = por %p87, %p88
      %p90 = scmp.ne.s32.totalorder %s82, %s84
      %p91 = scmp.eq.s32.totalorder %s27, 1
      %p92 = por %p90, %p91
      %p93 = scmp.ne.s32.totalorder %s84, %s85
      %p94 = scmp.eq.s32.totalorder %s27, 0
      %p95 = por %p93, %p94
      %p96 = scmp.ne.s32.totalorder %s84, %s85
      %p97 = scmp.eq.s32.totalorder %s28, 1
      %p98 = por %p96, %p97
      %p100 = scmp.ne.s32.totalorder %s85, %s99
      %p101 = scmp.eq.s32.totalorder %s28, 0
      %p102 = por %p100, %p101
      %s104 = sadd.s32 %s103, 1
      %p107 = scmp.eq.s32.totalorder %s22, 1
      %p108 = scmp.ne.s32.totalorder %s103, %s105
      %p109 = scmp.eq.s32.totalorder %s22, 0
      %p110 = por %p108, %p109
      %p111 = scmp.ne.s32.totalorder %s103, %s105
      %p112 = scmp.eq.s32.totalorder %s27, 1
      %p113 = por %p111, %p112
      %p114 = scmp.ne.s32.totalorder %s105, %s106
      %p115 = scmp.eq.s32.totalorder %s27, 0
      %p116 = por %p114, %p115
      %p117 = scmp.ne.s32.totalorder %s105, %s106
      %p118 = scmp.eq.s32.totalorder %s28, 1
      %p119 = por %p117, %p118
      %p121 = scmp.ne.s32.totalorder %s106, %s120
      %p122 = scmp.eq.s32.totalorder %s28, 0
      %p123 = por %p121, %p122
      %s125 = sadd.s32 %s124, 1
      %p128 = scmp.eq.s32.totalorder %s22, 1
      %p129 = scmp.ne.s32.totalorder %s124, %s126
      %p130 = scmp.eq.s32.totalorder %s22, 0
      %p131 = por %p129, %p130
      %p132 = scmp.ne.s32.totalorder %s124, %s126
      %p133 = scmp.eq.s32.totalorder %s27, 1
      %p134 = por %p132, %p133
      %p135 = scmp.ne.s32.totalorder %s126, %s127
      %p136 = scmp.eq.s32.totalorder %s27, 0
      %p137 = por %p135, %p136
      %p138 = scmp.ne.s32.totalorder %s126, %s127
      %p139 = scmp.eq.s32.totalorder %s28, 1
      %p140 = por %p138, %p139
      %p142 = scmp.ne.s32.totalorder %s127, %s141
      %p143 = scmp.eq.s32.totalorder %s28, 0
      %p144 = por %p142, %p143
      %s146 = sadd.s32 %s145, 1
      %p149 = scmp.eq.s32.totalorder %s22, 1
      %p150 = scmp.ne.s32.totalorder %s145, %s147
      %p151 = scmp.eq.s32.totalorder %s22, 0
      %p152 = por %p150, %p151
      %p153 = scmp.ne.s32.totalorder %s145, %s147
      %p154 = scmp.eq.s32.totalorder %s27, 1
      %p155 = por %p153, %p154
      %p156 = scmp.ne.s32.totalorder %s147, %s148
      %p157 = scmp.eq.s32.totalorder %s27, 0
      %p158 = por %p156, %p157
      %p159 = scmp.ne.s32.totalorder %s147, %s148
      %p160 = scmp.eq.s32.totalorder %s28, 1
      %p161 = por %p159, %p160
      %p163 = scmp.ne.s32.totalorder %s148, %s162
      %p164 = scmp.eq.s32.totalorder %s28, 0
      %p165 = por %p163, %p164
      %s167 = sadd.s32 %s166, 1
      %p170 = scmp.eq.s32.totalorder %s22, 1
      %p171 = scmp.ne.s32.totalorder %s166, %s168
      %p172 = scmp.eq.s32.totalorder %s22, 0
      %p173 = por %p171, %p172
      %p174 = scmp.ne.s32.totalorder %s166, %s168
      %p175 = scmp.eq.s32.totalorder %s27, 1
      %p176 = por %p174, %p175
      %p177 = scmp.ne.s32.totalorder %s168, %s169
      %p178 = scmp.eq.s32.totalorder %s27, 0
      %p179 = por %p177, %p178
      %p180 = scmp.ne.s32.totalorder %s168, %s169
      %p181 = scmp.eq.s32.totalorder %s28, 1
      %p182 = por %p180, %p181
      %p184 = scmp.ne.s32.totalorder %s169, %s183
      %p185 = scmp.eq.s32.totalorder %s28, 0
      %p186 = por %p184, %p185
      %s188 = sadd.s32 %s187, 1
      %p191 = scmp.eq.s32.totalorder %s22, 1
      %p192 = scmp.ne.s32.totalorder %s187, %s189
      %p193 = scmp.eq.s32.totalorder %s22, 0
      %p194 = por %p192, %p193
      %p195 = scmp.ne.s32.totalorder %s187, %s189
      %p196 = scmp.eq.s32.totalorder %s27, 1
      %p197 = por %p195, %p196
      %p198 = scmp.ne.s32.totalorder %s189, %s190
      %p199 = scmp.eq.s32.totalorder %s27, 0
      %p200 = por %p198, %p199
      %p201 = scmp.ne.s32.totalorder %s189, %s190
      %p202 = scmp.eq.s32.totalorder %s28, 1
      %p203 = por %p201, %p202
      %p205 = scmp.ne.s32.totalorder %s190, %s204
      %p206 = scmp.eq.s32.totalorder %s28, 0
      %p207 = por %p205, %p206
      %s209 = sadd.s32 %s208, 1
      %p212 = scmp.eq.s32.totalorder %s22, 1
      %p213 = scmp.ne.s32.totalorder %s208, %s210
      %p214 = scmp.eq.s32.totalorder %s22, 0
      %p215 = por %p213, %p214
      %p216 = scmp.ne.s32.totalorder %s208, %s210
      %p217 = scmp.eq.s32.totalorder %s27, 1
      %p218 = por %p216, %p217
      %p219 = scmp.ne.s32.totalorder %s210, %s211
      %p220 = scmp.eq.s32.totalorder %s27, 0
      %p221 = por %p219, %p220
      %p222 = scmp.ne.s32.totalorder %s210, %s211
      %p223 = scmp.eq.s32.totalorder %s28, 1
      %p224 = por %p222, %p223
      %p226 = scmp.ne.s32.totalorder %s211, %s225
      %p227 = scmp.eq.s32.totalorder %s28, 0
      %p228 = por %p226, %p227
      %s230 = sadd.s32 %s229, 1
      %p233 = scmp.eq.s32.totalorder %s22, 1
      %p234 = scmp.ne.s32.totalorder %s229, %s231
      %p235 = scmp.eq.s32.totalorder %s22, 0
      %p236 = por %p234, %p235
      %p237 = scmp.ne.s32.totalorder %s229, %s231
      %p238 = scmp.eq.s32.totalorder %s27, 1
      %p239 = por %p237, %p238
      %p240 = scmp.ne.s32.totalorder %s231, %s232
      %p241 = scmp.eq.s32.totalorder %s27, 0
      %p242 = por %p240, %p241
      %p243 = scmp.ne.s32.totalorder %s231, %s232
      %p244 = scmp.eq.s32.totalorder %s28, 1
      %p245 = por %p243, %p244
      %p247 = scmp.ne.s32.totalorder %s232, %s246
      %p248 = scmp.eq.s32.totalorder %s28, 0
      %p249 = por %p247, %p248
      %s251 = sadd.s32 %s250, 1
      %p254 = scmp.eq.s32.totalorder %s22, 1
      %p255 = scmp.ne.s32.totalorder %s250, %s252
      %p256 = scmp.eq.s32.totalorder %s22, 0
      %p257 = por %p255, %p256
      %p258 = scmp.ne.s32.totalorder %s250, %s252
      %p259 = scmp.eq.s32.totalorder %s27, 1
      %p260 = por %p258, %p259
      %p261 = scmp.ne.s32.totalorder %s252, %s253
      %p262 = scmp.eq.s32.totalorder %s27, 0
      %p263 = por %p261, %p262
      %p264 = scmp.ne.s32.totalorder %s252, %s253
      %p265 = scmp.eq.s32.totalorder %s28, 1
      %p266 = por %p264, %p265
      %p268 = scmp.ne.s32.totalorder %s253, %s267
      %p269 = scmp.eq.s32.totalorder %s28, 0
      %p270 = por %p268, %p269
      %s272 = sadd.s32 %s271, 1
      %p275 = scmp.eq.s32.totalorder %s22, 1
      %p276 = scmp.ne.s32.totalorder %s271, %s273
      %p277 = scmp.eq.s32.totalorder %s22, 0
      %p278 = por %p276, %p277
      %p279 = scmp.ne.s32.totalorder %s271, %s273
      %p280 = scmp.eq.s32.totalorder %s27, 1
      %p281 = por %p279, %p280
      %p282 = scmp.ne.s32.totalorder %s273, %s274
      %p283 = scmp.eq.s32.totalorder %s27, 0
      %p284 = por %p282, %p283
      %p285 = scmp.ne.s32.totalorder %s273, %s274
      %p286 = scmp.eq.s32.totalorder %s28, 1
      %p287 = por %p285, %p286
      %p289 = scmp.ne.s32.totalorder %s274, %s288
      %p290 = scmp.eq.s32.totalorder %s28, 0
      %p291 = por %p289, %p290
      %s292 = ssub.s32 %s22, %s29
      %p293 = scmp.eq.s32.totalorder %s292, 0
      %s295 = sadd.s32 %s294, 1
      %s296 = scalar_select %p293, %s294, %s295
      %p299 = pneg %p293
      %p300 = scmp.eq.s32.totalorder %s22, 1
      %p301 = por %p299, %p300
      %p302 = scmp.ne.s32.totalorder %s294, %s297
      %p303 = scmp.eq.s32.totalorder %s22, 0
      %p304 = por %p302, %p303
      %p305 = scmp.ne.s32.totalorder %s294, %s297
      %p306 = scmp.eq.s32.totalorder %s27, 1
      %p307 = por %p305, %p306
      %p308 = scmp.ne.s32.totalorder %s297, %s298
      %p309 = scmp.eq.s32.totalorder %s27, 0
      %p310 = por %p308, %p309
      %p311 = scmp.ne.s32.totalorder %s297, %s298
      %p312 = scmp.eq.s32.totalorder %s28, 1
      %p313 = por %p311, %p312
      %p315 = scmp.ne.s32.totalorder %s298, %s314
      %p316 = scmp.eq.s32.totalorder %s28, 0
      %p317 = por %p315, %p316
      %p318 = scmp.le.s32.totalorder 1, %s22
      %p319 = scmp.lt.s32.totalorder %s22, 3
      %p320 = pnand %p318, %p319
      %p321 = pneg %p320
      // Predicated region
      $region9: #{tpu_custom_call.1} parent=5 // pred_check
        _
      $region10: #{tpu_custom_call.1} parent=5 // pred_check_branch
        %323 = sbr.rel (%p320) target = $region12
      $region11: #{tpu_custom_call.1} parent=5 // pred_region
        %s324 = ssub.s32 %s22, 1
        // Predicated region
        $region13: #{tpu_custom_call.1} parent=11 // pred_check
          %p325 = pneg %p95
        $region14: #{tpu_custom_call.1} parent=11 // pred_check_branch
          %327 = sbr.rel (%p325) target = $region16
        $region15: #{tpu_custom_call.1} parent=11 // pred_region
          %s329 = ssub.s32 16, 16
          %330 = vsyncadd [#allocation4], %s329
          %s332 = sshll.u32 %s2, 4
          %s333 = int_to_ptr.vmem [resolvable:$true] %s332
          %335 = dma.vmem_to_smem %s333, 16, [#allocation2], [#allocation4]
        $region16: #{tpu_custom_call.1} parent=11 // pred_fallthru
          _
        // Predicated region
        $region17: #{tpu_custom_call.1} parent=11 // pred_check
          %p336 = pneg %p116
        $region18: #{tpu_custom_call.1} parent=11 // pred_check_branch
          %338 = sbr.rel (%p336) target = $region20
        $region19: #{tpu_custom_call.1} parent=11 // pred_region
          _
        $region20: #{tpu_custom_call.1} parent=11 // pred_fallthru
          _
        // Predicated region
        $region21: #{tpu_custom_call.1} parent=11 // pred_check
          %p339 = pneg %p137
        $region22: #{tpu_custom_call.1} parent=11 // pred_check_branch
          %341 = sbr.rel (%p339) target = $region24
        $region23: #{tpu_custom_call.1} parent=11 // pred_region
          _
        $region24: #{tpu_custom_call.1} parent=11 // pred_fallthru
          _
        // Predicated region
        $region25: #{tpu_custom_call.1} parent=11 // pred_check
          %p342 = pneg %p158
        $region26: #{tpu_custom_call.1} parent=11 // pred_check_branch
          %344 = sbr.rel (%p342) target = $region28
        $region27: #{tpu_custom_call.1} parent=11 // pred_region
          _
        $region28: #{tpu_custom_call.1} parent=11 // pred_fallthru
          _
        // Predicated region
        $region29: #{tpu_custom_call.1} parent=11 // pred_check
          %p345 = pneg %p179
        $region30: #{tpu_custom_call.1} parent=11 // pred_check_branch
          %347 = sbr.rel (%p345) target = $region32
        $region31: #{tpu_custom_call.1} parent=11 // pred_region
          _
        $region32: #{tpu_custom_call.1} parent=11 // pred_fallthru
          _
        // Predicated region
        $region33: #{tpu_custom_call.1} parent=11 // pred_check
          %p348 = pneg %p200
        $region34: #{tpu_custom_call.1} parent=11 // pred_check_branch
          %350 = sbr.rel (%p348) target = $region36
        $region35: #{tpu_custom_call.1} parent=11 // pred_region
          _
        $region36: #{tpu_custom_call.1} parent=11 // pred_fallthru
          _
        // Predicated region
        $region37: #{tpu_custom_call.1} parent=11 // pred_check
          %p351 = pneg %p221
        $region38: #{tpu_custom_call.1} parent=11 // pred_check_branch
          %353 = sbr.rel (%p351) target = $region40
        $region39: #{tpu_custom_call.1} parent=11 // pred_region
          _
        $region40: #{tpu_custom_call.1} parent=11 // pred_fallthru
          _
        // Predicated region
        $region41: #{tpu_custom_call.1} parent=11 // pred_check
          %p354 = pneg %p242
        $region42: #{tpu_custom_call.1} parent=11 // pred_check_branch
          %356 = sbr.rel (%p354) target = $region44
        $region43: #{tpu_custom_call.1} parent=11 // pred_region
          _
        $region44: #{tpu_custom_call.1} parent=11 // pred_fallthru
          _
        // Predicated region
        $region45: #{tpu_custom_call.1} parent=11 // pred_check
          %p357 = pneg %p263
        $region46: #{tpu_custom_call.1} parent=11 // pred_check_branch
          %359 = sbr.rel (%p357) target = $region48
        $region47: #{tpu_custom_call.1} parent=11 // pred_region
          _
        $region48: #{tpu_custom_call.1} parent=11 // pred_fallthru
          _
        // Predicated region
        $region49: #{tpu_custom_call.1} parent=11 // pred_check
          %p360 = pneg %p284
        $region50: #{tpu_custom_call.1} parent=11 // pred_check_branch
          %362 = sbr.rel (%p360) target = $region52
        $region51: #{tpu_custom_call.1} parent=11 // pred_region
          _
        $region52: #{tpu_custom_call.1} parent=11 // pred_fallthru
          _
      $region12: #{tpu_custom_call.1} parent=5 // pred_fallthru
        _
      %p363 = scmp.lt.s32.totalorder %s22, 2
      // Predicated region
      $region53: #{tpu_custom_call.1} parent=5 // pred_check
        %p364 = pneg %p363
      $region54: #{tpu_custom_call.1} parent=5 // pred_check_branch
        %366 = sbr.rel (%p364) target = $region56
      $region55: #{tpu_custom_call.1} parent=5 // pred_region
        // Predicated region
        $region57: #{tpu_custom_call.1} parent=55 // pred_check
          %p367 = pneg %p42
        $region58: #{tpu_custom_call.1} parent=55 // pred_check_branch
          %369 = sbr.rel (%p367) target = $region60
        $region59: #{tpu_custom_call.1} parent=55 // pred_region
          %p370 = scmp.lt.s32.totalorder %s22, 1
          %s371 = scalar_select %p370, %s22, 1
          %s372 = smul.addr %s371, 4
          %s373 = scalar_lea.vmem %s0, %s372
        $region60: #{tpu_custom_call.1} parent=55 // pred_fallthru
          _
        // Predicated region
        $region61: #{tpu_custom_call.1} parent=55 // pred_check
          %p374 = pneg %p68
        $region62: #{tpu_custom_call.1} parent=55 // pred_check_branch
          %376 = sbr.rel (%p374) target = $region64
        $region63: #{tpu_custom_call.1} parent=55 // pred_region
          %p377 = scmp.lt.s32.totalorder %s22, 1
          %s378 = scalar_select %p377, %s22, 1
          %s379 = smul.addr %s378, 8
          %s380 = scalar_lea.vmem %s1, %s379
        $region64: #{tpu_custom_call.1} parent=55 // pred_fallthru
          _
      $region56: #{tpu_custom_call.1} parent=5 // pred_fallthru
        _
      %p381 = scmp.le.s32.totalorder 1, %s22
      %p382 = scmp.lt.s32.totalorder %s22, 3
      %p383 = pnand %p381, %p382
      %p384 = pneg %p383
      // Predicated region
      $region65: #{tpu_custom_call.1} parent=5 // pred_check
        _
      $region66: #{tpu_custom_call.1} parent=5 // pred_check_branch
        %386 = sbr.rel (%p383) target = $region68
      $region67: #{tpu_custom_call.1} parent=5 // pred_region
        %s387 = ssub.s32 %s22, 1
        // Predicated region
        $region69: #{tpu_custom_call.1} parent=67 // pred_check
          %p388 = pneg %p95
        $region70: #{tpu_custom_call.1} parent=67 // pred_check_branch
          %390 = sbr.rel (%p388) target = $region72
        $region71: #{tpu_custom_call.1} parent=67 // pred_region
          %391 = dma.done [#allocation4], 16
        $region72: #{tpu_custom_call.1} parent=67 // pred_fallthru
          _
        %392 = sfence
        %p393 = scmp.lt.s32.totalorder %s27, 1
        %s394 = scalar_select %p393, %s27, 1
        %s395 = smul.addr %s394, 4
        %s396 = scalar_lea.vmem %s0, %s395
        %p397 = pneg %p48
        %p398 = pneg %p45
        %p399 = scmp.lt.s32.totalorder %s27, 1
        %s400 = scalar_select %p399, %s27, 1
        %s401 = smul.addr %s400, 8
        %s402 = scalar_lea.vmem %s1, %s401
        %p403 = pneg %p74
        %p404 = pneg %p71
        %p405 = pneg %p95
        %p406 = pneg %p92
        %p407 = pneg %p116
        %p408 = pneg %p113
        %p409 = pneg %p137
        %p410 = pneg %p134
        %p411 = pneg %p158
        %p412 = pneg %p155
        %p413 = pneg %p179
        %p414 = pneg %p176
        %p415 = pneg %p200
        %p416 = pneg %p197
        %p417 = pneg %p221
        %p418 = pneg %p218
        %p419 = pneg %p242
        %p420 = pneg %p239
        %p421 = pneg %p263
        %p422 = pneg %p260
        %p423 = pneg %p284
        %p424 = pneg %p281
        %p425 = pneg %p310
        %p426 = pneg %p307
        %s427 = sand.u32 %s297, 1
        %s428 = scalar_lea.sflag [#allocation3], %s427
        %s429 = sand.u32 %s297, 1
        %s430 = smul.addr %s429, 4
        %s431 = scalar_lea.vmem [#allocation5], %s430
        %p432 = scmp.lt.s32.totalorder %s27, 1
        %s433 = scalar_select %p432, %s27, 1
        %s434 = smul.addr %s433, 4
        %s435 = scalar_lea.vmem %s0, %s434
        %p436 = scmp.lt.s32.totalorder %s27, 1
        %s437 = scalar_select %p436, %s27, 1
        %s438 = smul.addr %s437, 8
        %s439 = scalar_lea.vmem %s1, %s438
        %s441 = sld [smem:[#allocation2 + %s27]]
        %v442 = vld [vmem:[%s435] sm:$0xf]
        %v443 = vpack.c.bf16 %v442, %v442
        %v444 = vld [vmem:[%s439] sm:$0xff]
        %v445 = vld [vmem:[%s3] sm:$0xf]
        %v446 = vld [vmem:[%s3 + $0x4] sm:$0xf]
        %v447 = vld [vmem:[%s3 + $0x8] sm:$0xf]
        %v448 = vld [vmem:[%s3 + $0xc] sm:$0xf]
        %v449 = vld [vmem:[%s4] sm:$0xff]
        %v450 = vld [vmem:[%s4 + $0x8] sm:$0xff]
        %v451 = vld [vmem:[%s4 + $0x10] sm:$0xff]
        %v452 = vld [vmem:[%s4 + $0x18] sm:$0xff]
        %454 = vset.pattern.permute.xlu0 0
        %455 = vperm.xlu0 %454, %v449
        %v456 = vpop.permute.xlu0 %455
        %459 = vset.pattern.permute.xlu0 0
        %460 = vperm.xlu0 %459, %v450
        %v461 = vpop.permute.xlu0 %460
        %464 = vset.pattern.permute.xlu0 0
        %465 = vperm.xlu0 %464, %v451
        %v466 = vpop.permute.xlu0 %465
        %469 = vset.pattern.permute.xlu0 0
        %470 = vperm.xlu0 %469, %v452
        %v471 = vpop.permute.xlu0 %470
        %v477 = vunpack.c.l.b16 %v445
        %v478 = vunpack.c.l.b16 %v446
        %v479 = vunpack.c.l.b16 %v447
        %v480 = vunpack.c.l.b16 %v448
        %v481 = vpack.c.b16 %v478, %v477
        %v482 = vpack.c.b16 %v480, %v479
        %vm483 = vcmask 31744
        %v485 = vsel %vm483, %v481, 0
        %v488 = vsel %vm483, %v482, 0
        %vm490 = vcmask 1041408
        %v492 = vsel %vm490, %v443, 0
        %494 = vmatprep.subr.bf16.mxu0 0
        %495 = vmatpush1.bf16.msra.mxu0 %v492
        %496 = vmatprep.subr.bf16.mxu0 0
        %497 = vmatpush1.bf16.msra.mxu0 0
        %498 = vmatprep.subr.bf16.mxu0 0
        %499 = vmatpush1.bf16.msra.mxu0 0
        %500 = vmatprep.subr.bf16.mxu0 0
        %501 = vmatpush1.bf16.msra.mxu0 0
        %502 = vmatprep.subr.bf16.mxu0 0
        %503 = vmatpush1.bf16.msra.mxu0 0
        %504 = vmatprep.subr.bf16.mxu0 0
        %505 = vmatpush1.bf16.msra.mxu0 0
        %506 = vmatprep.subr.bf16.mxu0 0
        %507 = vmatpush1.bf16.msra.mxu0 0
        %508 = vmatprep.subr.bf16.mxu0 0
        %509 = vmatpush1.bf16.msra.mxu0 0
        %510 = vmatprep.subr.bf16.mxu0 0
        %511 = vmatpush1.bf16.msra.mxu0 0
        %512 = vmatprep.subr.bf16.mxu0 0
        %513 = vmatpush1.bf16.msra.mxu0 0
        %514 = vmatprep.subr.bf16.mxu0 0
        %515 = vmatpush1.bf16.msra.mxu0 0
        %516 = vmatprep.subr.bf16.mxu0 0
        %517 = vmatpush1.bf16.msra.mxu0 0
        %518 = vmatprep.subr.bf16.mxu0 0
        %519 = vmatpush1.bf16.msra.mxu0 0
        %520 = vmatprep.subr.bf16.mxu0 0
        %521 = vmatpush1.bf16.msra.mxu0 0
        %522 = vmatprep.subr.bf16.mxu0 0
        %523 = vmatpush1.bf16.msra.mxu0 0
        %524 = vmatprep.subr.bf16.mxu0 0
        %525 = vmatpush1.bf16.msra.mxu0 0
        %526 = vmatprep.mubr.bf16.mxu0 0
        %527 = vmatmul.mubr.bf16.gmra.mrb[0].mxu0 %v485
        %v528 = vpop.f32.mrb[0].mxu0
        %v529 = vadd.f32 %v456, %v528
        %v530 = vpop.f32.mrb[0].mxu0
        %v531 = vpop.f32.mrb[0].mxu0
        %v532 = vadd.f32 %v461, %v531
        %v533 = vpop.f32.mrb[0].mxu0
        %534 = vmatprep.mubr.bf16.mxu0 0
        %535 = vmatmul.mubr.bf16.gmra.mrb[0].mxu0 %v488
        %v536 = vpop.f32.mrb[0].mxu0
        %v537 = vadd.f32 %v466, %v536
        %v538 = vpop.f32.mrb[0].mxu0
        %v539 = vpop.f32.mrb[0].mxu0
        %v540 = vadd.f32 %v471, %v539
        %v541 = vpop.f32.mrb[0].mxu0
        %542 = vdwg.mxu0
        %v543 = vlaneseq
        %v544 = vand.u32 %v543, 127
        %vm545 = vcmp.ge.s32.totalorder %v544, 1
        %546 = vrot.lane.b32.xlu0 %v529, 1
        %v547 = vpop.permute.xlu0 %546
        %548 = vrot.lane.b32.xlu0 %v532, 1
        %v549 = vpop.permute.xlu0 %548
        %550 = vrot.lane.b32.xlu0 %v537, 1
        %v551 = vpop.permute.xlu0 %550
        %552 = vrot.lane.b32.xlu0 %v540, 1
        %v553 = vpop.permute.xlu0 %552
        %v554 = vsel %vm545, %v547, 0.0
        %v555 = vsel %vm545, %v549, 0.0
        %v556 = vsel %vm545, %v551, 0.0
        %v557 = vsel %vm545, %v553, 0.0
        %vm558 = vcmp.lt.s32.totalorder %v544, 127
        %559 = vrot.lane.b32.xlu0 %v529, 127
        %v560 = vpop.permute.xlu0 %559
        %561 = vrot.lane.b32.xlu0 %v532, 127
        %v562 = vpop.permute.xlu0 %561
        %563 = vrot.lane.b32.xlu0 %v537, 127
        %v564 = vpop.permute.xlu0 %563
        %565 = vrot.lane.b32.xlu0 %v540, 127
        %v566 = vpop.permute.xlu0 %565
        %v567 = vsel %vm558, %v560, 0.0
        %v568 = vsel %vm558, %v562, 0.0
        %v569 = vsel %vm558, %v564, 0.0
        %v570 = vsel %vm558, %v566, 0.0
        %v571 = vpack.c.bf16 %v555, %v554
        %v572 = vpack.c.bf16 %v557, %v556
        %v573 = vpack.c.bf16 %v532, %v529
        %v574 = vpack.c.bf16 %v540, %v537
        %v575 = vpack.c.bf16 %v568, %v567
        %v576 = vpack.c.bf16 %v570, %v569
        %v577 = vpack.c.bf16 %v444, %v444
        %v578 = vld [vmem:[%s5] sm:$0xf]
        %v579 = vld [vmem:[%s5 + $0x4] sm:$0xf]
        %v580 = vld [vmem:[%s5 + $0x8] sm:$0xf]
        %v581 = vld [vmem:[%s5 + $0xc] sm:$0xf]
        %v582 = vld [vmem:[%s5 + $0x10] sm:$0xf]
        %v583 = vld [vmem:[%s5 + $0x14] sm:$0xf]
        %v584 = vld [vmem:[%s5 + $0x18] sm:$0xf]
        %v585 = vld [vmem:[%s5 + $0x1c] sm:$0xf]
        %v586 = vld [vmem:[%s6] sm:$0xff]
        %v587 = vld [vmem:[%s6 + $0x8] sm:$0xff]
        %v588 = vld [vmem:[%s6 + $0x10] sm:$0xff]
        %v589 = vld [vmem:[%s6 + $0x18] sm:$0xff]
        %v590 = vld [vmem:[%s6 + $0x20] sm:$0xff]
        %v591 = vld [vmem:[%s6 + $0x28] sm:$0xff]
        %v592 = vld [vmem:[%s6 + $0x30] sm:$0xff]
        %v593 = vld [vmem:[%s6 + $0x38] sm:$0xff]
        %v594 = vstv %s441
        %v595 = vmul.f32 %v586, %v594
        %v596 = vmul.f32 %v587, %v594
        %v597 = vmul.f32 %v588, %v594
        %v598 = vmul.f32 %v589, %v594
        %v599 = vmul.f32 %v590, %v594
        %v600 = vmul.f32 %v591, %v594
        %v601 = vmul.f32 %v592, %v594
        %v602 = vmul.f32 %v593, %v594
        %v603 = vld [vmem:[%s7] sm:$0xff]
        %v604 = vld [vmem:[%s7 + $0x8] sm:$0xff]
        %v605 = vld [vmem:[%s7 + $0x10] sm:$0xff]
        %v606 = vld [vmem:[%s7 + $0x18] sm:$0xff]
        %v607 = vld [vmem:[%s7 + $0x20] sm:$0xff]
        %v608 = vld [vmem:[%s7 + $0x28] sm:$0xff]
        %v609 = vld [vmem:[%s7 + $0x30] sm:$0xff]
        %v610 = vld [vmem:[%s7 + $0x38] sm:$0xff]
        %v611 = vadd.f32 %v595, %v603
        %v612 = vadd.f32 %v596, %v604
        %v613 = vadd.f32 %v597, %v605
        %v614 = vadd.f32 %v598, %v606
        %v615 = vadd.f32 %v599, %v607
        %v616 = vadd.f32 %v600, %v608
        %v617 = vadd.f32 %v601, %v609
        %v618 = vadd.f32 %v602, %v610
        %620 = vset.pattern.permute.xlu0 0
        %621 = vperm.xlu0 %620, %v611
        %v622 = vpop.permute.xlu0 %621
        %625 = vset.pattern.permute.xlu0 0
        %626 = vperm.xlu0 %625, %v612
        %v627 = vpop.permute.xlu0 %626
        %630 = vset.pattern.permute.xlu0 0
        %631 = vperm.xlu0 %630, %v613
        %v632 = vpop.permute.xlu0 %631
        %635 = vset.pattern.permute.xlu0 0
        %636 = vperm.xlu0 %635, %v614
        %v637 = vpop.permute.xlu0 %636
        %640 = vset.pattern.permute.xlu0 0
        %641 = vperm.xlu0 %640, %v615
        %v642 = vpop.permute.xlu0 %641
        %645 = vset.pattern.permute.xlu0 0
        %646 = vperm.xlu0 %645, %v616
        %v647 = vpop.permute.xlu0 %646
        %650 = vset.pattern.permute.xlu0 0
        %651 = vperm.xlu0 %650, %v617
        %v652 = vpop.permute.xlu0 %651
        %655 = vset.pattern.permute.xlu0 0
        %656 = vperm.xlu0 %655, %v618
        %v657 = vpop.permute.xlu0 %656
        %v667 = vunpack.c.l.b16 %v578
        %v668 = vunpack.c.l.b16 %v579
        %v669 = vunpack.c.l.b16 %v580
        %v670 = vunpack.c.l.b16 %v581
        %v671 = vunpack.c.l.b16 %v582
        %v672 = vunpack.c.l.b16 %v583
        %v673 = vunpack.c.l.b16 %v584
        %v674 = vunpack.c.l.b16 %v585
        %v675 = vpack.c.b16 %v668, %v667
        %v676 = vpack.c.b16 %v670, %v669
        %v677 = vpack.c.b16 %v672, %v671
        %v678 = vpack.c.b16 %v674, %v673
        %vm679 = vcmask 850944
        %v681 = vsel %vm679, %v675, 0
        %v684 = vsel %vm679, %v676, 0
        %v687 = vsel %vm679, %v677, 0
        %v690 = vsel %vm679, %v678, 0
        %vm692 = vcmask 1043456
        %v694 = vsel %vm692, %v577, 0
        %696 = vmatprep.subr.bf16.mxu0 0
        %697 = vmatpush1.bf16.msra.mxu0 %v571
        %698 = vmatprep.subr.bf16.mxu0 0
        %699 = vmatpush1.bf16.msra.mxu0 %v572
        %700 = vmatprep.subr.bf16.mxu0 0
        %701 = vmatpush1.bf16.msra.mxu0 %v573
        %702 = vmatprep.subr.bf16.mxu0 0
        %703 = vmatpush1.bf16.msra.mxu0 %v574
        %704 = vmatprep.subr.bf16.mxu0 0
        %705 = vmatpush1.bf16.msra.mxu0 %v575
        %706 = vmatprep.subr.bf16.mxu0 0
        %707 = vmatpush1.bf16.msra.mxu0 %v576
        %708 = vmatprep.subr.bf16.mxu0 0
        %709 = vmatpush1.bf16.msra.mxu0 %v694
        %710 = vmatprep.subr.bf16.mxu0 0
        %711 = vmatpush1.bf16.msra.mxu0 0
        %712 = vmatprep.subr.bf16.mxu0 0
        %713 = vmatpush1.bf16.msra.mxu0 0
        %714 = vmatprep.subr.bf16.mxu0 0
        %715 = vmatpush1.bf16.msra.mxu0 0
        %716 = vmatprep.subr.bf16.mxu0 0
        %717 = vmatpush1.bf16.msra.mxu0 0
        %718 = vmatprep.subr.bf16.mxu0 0
        %719 = vmatpush1.bf16.msra.mxu0 0
        %720 = vmatprep.subr.bf16.mxu0 0
        %721 = vmatpush1.bf16.msra.mxu0 0
        %722 = vmatprep.subr.bf16.mxu0 0
        %723 = vmatpush1.bf16.msra.mxu0 0
        %724 = vmatprep.subr.bf16.mxu0 0
        %725 = vmatpush1.bf16.msra.mxu0 0
        %726 = vmatprep.subr.bf16.mxu0 0
        %727 = vmatpush1.bf16.msra.mxu0 0
        %728 = vmatprep.mubr.bf16.mxu0 0
        %729 = vmatmul.mubr.bf16.gmra.mrb[0].mxu0 %v681
        %v730 = vpop.f32.mrb[0].mxu0
        %v731 = vadd.f32 %v622, %v730
        %v732 = vpop.f32.mrb[0].mxu0
        %v733 = vpop.f32.mrb[0].mxu0
        %v734 = vadd.f32 %v627, %v733
        %v735 = vpop.f32.mrb[0].mxu0
        %736 = vmatprep.mubr.bf16.mxu0 0
        %737 = vmatmul.mubr.bf16.gmra.mrb[0].mxu0 %v684
        %v738 = vpop.f32.mrb[0].mxu0
        %v739 = vadd.f32 %v632, %v738
        %v740 = vpop.f32.mrb[0].mxu0
        %v741 = vpop.f32.mrb[0].mxu0
        %v742 = vadd.f32 %v637, %v741
        %v743 = vpop.f32.mrb[0].mxu0
        %744 = vmatprep.mubr.bf16.mxu0 0
        %745 = vmatmul.mubr.bf16.gmra.mrb[0].mxu0 %v687
        %v746 = vpop.f32.mrb[0].mxu0
        %v747 = vadd.f32 %v642, %v746
        %v748 = vpop.f32.mrb[0].mxu0
        %v749 = vpop.f32.mrb[0].mxu0
        %v750 = vadd.f32 %v647, %v749
        %v751 = vpop.f32.mrb[0].mxu0
        %752 = vmatprep.mubr.bf16.mxu0 0
        %753 = vmatmul.mubr.bf16.gmra.mrb[0].mxu0 %v690
        %v754 = vpop.f32.mrb[0].mxu0
        %v755 = vadd.f32 %v652, %v754
        %v756 = vpop.f32.mrb[0].mxu0
        %v757 = vpop.f32.mrb[0].mxu0
        %v758 = vadd.f32 %v657, %v757
        %v759 = vpop.f32.mrb[0].mxu0
        %760 = vdwg.mxu0
        %v761 = vtanh.pop %v731
        %v762 = vtanh.pop %v734
        %v763 = vtanh.pop %v739
        %v764 = vtanh.pop %v742
        %v765 = vxor.u32 %v747, 2147483648
        %v766 = vxor.u32 %v750, 2147483648
        %v767 = vxor.u32 %v755, 2147483648
        %v768 = vxor.u32 %v758, 2147483648
        %v769 = vmul.f32 %v765, 1.442695
        %v770 = vpow.pop %v769
        %v771 = vmul.f32 %v766, 1.442695
        %v772 = vpow.pop %v771
        %v773 = vmul.f32 %v767, 1.442695
        %v774 = vpow.pop %v773
        %v775 = vmul.f32 %v768, 1.442695
        %v776 = vpow.pop %v775
        %v777 = vadd.f32 %v770, 1.0
        %v778 = vadd.f32 %v772, 1.0
        %v779 = vadd.f32 %v774, 1.0
        %v780 = vadd.f32 %v776, 1.0
        %v781 = vrcp.pop %v777
        %v782 = vmul.f32 1.0, %v781
        %v783 = vrcp.pop %v778
        %v784 = vmul.f32 1.0, %v783
        %v785 = vrcp.pop %v779
        %v786 = vmul.f32 1.0, %v785
        %v787 = vrcp.pop %v780
        %v788 = vmul.f32 1.0, %v787
        %v789 = vmul.f32 %v761, %v782
        %v790 = vmul.f32 %v762, %v784
        %v791 = vmul.f32 %v763, %v786
        %v792 = vmul.f32 %v764, %v788
        %v793 = vld [vmem:[%s8] sm:$0xf]
        %v794 = vld [vmem:[%s8 + $0x4] sm:$0xf]
        %v795 = vld [vmem:[%s8 + $0x8] sm:$0xf]
        %v796 = vld [vmem:[%s8 + $0xc] sm:$0xf]
        %v797 = vld [vmem:[%s8 + $0x10] sm:$0xf]
        %v798 = vld [vmem:[%s8 + $0x14] sm:$0xf]
        %v799 = vld [vmem:[%s8 + $0x18] sm:$0xf]
        %v800 = vld [vmem:[%s8 + $0x1c] sm:$0xf]
        %v801 = vpack.c.bf16 %v790, %v789
        %v802 = vpack.c.bf16 %v792, %v791
        %v803 = vld [vmem:[%s9] sm:$0xff]
        %v804 = vld [vmem:[%s9 + $0x8] sm:$0xff]
        %v805 = vld [vmem:[%s9 + $0x10] sm:$0xff]
        %v806 = vld [vmem:[%s9 + $0x18] sm:$0xff]
        %v807 = vld [vmem:[%s9 + $0x20] sm:$0xff]
        %v808 = vld [vmem:[%s9 + $0x28] sm:$0xff]
        %v809 = vld [vmem:[%s9 + $0x30] sm:$0xff]
        %v810 = vld [vmem:[%s9 + $0x38] sm:$0xff]
        %812 = vset.pattern.permute.xlu0 0
        %813 = vperm.xlu0 %812, %v803
        %v814 = vpop.permute.xlu0 %813
        %817 = vset.pattern.permute.xlu0 0
        %818 = vperm.xlu0 %817, %v804
        %v819 = vpop.permute.xlu0 %818
        %822 = vset.pattern.permute.xlu0 0
        %823 = vperm.xlu0 %822, %v805
        %v824 = vpop.permute.xlu0 %823
        %827 = vset.pattern.permute.xlu0 0
        %828 = vperm.xlu0 %827, %v806
        %v829 = vpop.permute.xlu0 %828
        %832 = vset.pattern.permute.xlu0 0
        %833 = vperm.xlu0 %832, %v807
        %v834 = vpop.permute.xlu0 %833
        %837 = vset.pattern.permute.xlu0 0
        %838 = vperm.xlu0 %837, %v808
        %v839 = vpop.permute.xlu0 %838
        %842 = vset.pattern.permute.xlu0 0
        %843 = vperm.xlu0 %842, %v809
        %v844 = vpop.permute.xlu0 %843
        %847 = vset.pattern.permute.xlu0 0
        %848 = vperm.xlu0 %847, %v810
        %v849 = vpop.permute.xlu0 %848
        %v859 = vunpack.c.l.b16 %v793
        %v860 = vunpack.c.l.b16 %v794
        %v861 = vunpack.c.l.b16 %v795
        %v862 = vunpack.c.l.b16 %v796
        %v863 = vunpack.c.l.b16 %v797
        %v864 = vunpack.c.l.b16 %v798
        %v865 = vunpack.c.l.b16 %v799
        %v866 = vunpack.c.l.b16 %v800
        %v867 = vpack.c.b16 %v860, %v859
        %v868 = vpack.c.b16 %v862, %v861
        %v869 = vpack.c.b16 %v864, %v863
        %v870 = vpack.c.b16 %v866, %v865
        %vm871 = vcmask 261120
        %v873 = vsel %vm871, %v867, 0
        %v876 = vsel %vm871, %v868, 0
        %v879 = vsel %vm871, %v869, 0
        %v882 = vsel %vm871, %v870, 0
        %884 = vmatprep.subr.bf16.mxu0 0
        %885 = vmatpush1.bf16.msra.mxu0 %v801
        %886 = vmatprep.subr.bf16.mxu0 0
        %887 = vmatpush1.bf16.msra.mxu0 %v802
        %888 = vmatprep.subr.bf16.mxu0 0
        %889 = vmatpush1.bf16.msra.mxu0 0
        %890 = vmatprep.subr.bf16.mxu0 0
        %891 = vmatpush1.bf16.msra.mxu0 0
        %892 = vmatprep.subr.bf16.mxu0 0
        %893 = vmatpush1.bf16.msra.mxu0 0
        %894 = vmatprep.subr.bf16.mxu0 0
        %895 = vmatpush1.bf16.msra.mxu0 0
        %896 = vmatprep.subr.bf16.mxu0 0
        %897 = vmatpush1.bf16.msra.mxu0 0
        %898 = vmatprep.subr.bf16.mxu0 0
        %899 = vmatpush1.bf16.msra.mxu0 0
        %900 = vmatprep.subr.bf16.mxu0 0
        %901 = vmatpush1.bf16.msra.mxu0 0
        %902 = vmatprep.subr.bf16.mxu0 0
        %903 = vmatpush1.bf16.msra.mxu0 0
        %904 = vmatprep.subr.bf16.mxu0 0
        %905 = vmatpush1.bf16.msra.mxu0 0
        %906 = vmatprep.subr.bf16.mxu0 0
        %907 = vmatpush1.bf16.msra.mxu0 0
        %908 = vmatprep.subr.bf16.mxu0 0
        %909 = vmatpush1.bf16.msra.mxu0 0
        %910 = vmatprep.subr.bf16.mxu0 0
        %911 = vmatpush1.bf16.msra.mxu0 0
        %912 = vmatprep.subr.bf16.mxu0 0
        %913 = vmatpush1.bf16.msra.mxu0 0
        %914 = vmatprep.subr.bf16.mxu0 0
        %915 = vmatpush1.bf16.msra.mxu0 0
        %916 = vmatprep.mubr.bf16.mxu0 0
        %917 = vmatmul.mubr.bf16.gmra.mrb[0].mxu0 %v873
        %v918 = vpop.f32.mrb[0].mxu0
        %v919 = vadd.f32 %v814, %v918
        %v920 = vpop.f32.mrb[0].mxu0
        %v921 = vpop.f32.mrb[0].mxu0
        %v922 = vadd.f32 %v819, %v921
        %v923 = vpop.f32.mrb[0].mxu0
        %924 = vmatprep.mubr.bf16.mxu0 0
        %925 = vmatmul.mubr.bf16.gmra.mrb[0].mxu0 %v876
        %v926 = vpop.f32.mrb[0].mxu0
        %v927 = vadd.f32 %v824, %v926
        %v928 = vpop.f32.mrb[0].mxu0
        %v929 = vpop.f32.mrb[0].mxu0
        %v930 = vadd.f32 %v829, %v929
        %v931 = vpop.f32.mrb[0].mxu0
        %932 = vmatprep.mubr.bf16.mxu0 0
        %933 = vmatmul.mubr.bf16.gmra.mrb[0].mxu0 %v879
        %v934 = vpop.f32.mrb[0].mxu0
        %v935 = vadd.f32 %v834, %v934
        %v936 = vpop.f32.mrb[0].mxu0
        %v937 = vpop.f32.mrb[0].mxu0
        %v938 = vadd.f32 %v839, %v937
        %v939 = vpop.f32.mrb[0].mxu0
        %940 = vmatprep.mubr.bf16.mxu0 0
        %941 = vmatmul.mubr.bf16.gmra.mrb[0].mxu0 %v882
        %v942 = vpop.f32.mrb[0].mxu0
        %v943 = vadd.f32 %v844, %v942
        %v944 = vpop.f32.mrb[0].mxu0
        %v945 = vpop.f32.mrb[0].mxu0
        %v946 = vadd.f32 %v849, %v945
        %v947 = vpop.f32.mrb[0].mxu0
        %948 = vdwg.mxu0
        %v949 = vadd.f32 %v529, %v919
        %v950 = vadd.f32 %v532, %v922
        %v951 = vadd.f32 %v537, %v927
        %v952 = vadd.f32 %v540, %v930
        %v953 = vadd.f32 %v935, 0.0
        %v954 = vadd.f32 %v938, 0.0
        %v955 = vadd.f32 %v943, 0.0
        %v956 = vadd.f32 %v946, 0.0
        %vm957 = vcmp.ge.s32.totalorder %v544, 2
        %958 = vrot.lane.b32.xlu0 %v949, 2
        %v959 = vpop.permute.xlu0 %958
        %960 = vrot.lane.b32.xlu0 %v950, 2
        %v961 = vpop.permute.xlu0 %960
        %962 = vrot.lane.b32.xlu0 %v951, 2
        %v963 = vpop.permute.xlu0 %962
        %964 = vrot.lane.b32.xlu0 %v952, 2
        %v965 = vpop.permute.xlu0 %964
        %v966 = vsel %vm957, %v959, 0.0
        %v967 = vsel %vm957, %v961, 0.0
        %v968 = vsel %vm957, %v963, 0.0
        %v969 = vsel %vm957, %v965, 0.0
        %vm970 = vcmp.lt.s32.totalorder %v544, 126
        %971 = vrot.lane.b32.xlu0 %v949, 126
        %v972 = vpop.permute.xlu0 %971
        %973 = vrot.lane.b32.xlu0 %v950, 126
        %v974 = vpop.permute.xlu0 %973
        %975 = vrot.lane.b32.xlu0 %v951, 126
        %v976 = vpop.permute.xlu0 %975
        %977 = vrot.lane.b32.xlu0 %v952, 126
        %v978 = vpop.permute.xlu0 %977
        %v979 = vsel %vm970, %v972, 0.0
        %v980 = vsel %vm970, %v974, 0.0
        %v981 = vsel %vm970, %v976, 0.0
        %v982 = vsel %vm970, %v978, 0.0
        %v983 = vpack.c.bf16 %v967, %v966
        %v984 = vpack.c.bf16 %v969, %v968
        %v985 = vpack.c.bf16 %v950, %v949
        %v986 = vpack.c.bf16 %v952, %v951
        %v987 = vpack.c.bf16 %v980, %v979
        %v988 = vpack.c.bf16 %v982, %v981
        %s989 = scalar_lea.vmem %s5, 32
        %v990 = vld [vmem:[%s989] sm:$0xf]
        %v991 = vld [vmem:[%s989 + $0x4] sm:$0xf]
        %v992 = vld [vmem:[%s989 + $0x8] sm:$0xf]
        %v993 = vld [vmem:[%s989 + $0xc] sm:$0xf]
        %v994 = vld [vmem:[%s989 + $0x10] sm:$0xf]
        %v995 = vld [vmem:[%s989 + $0x14] sm:$0xf]
        %v996 = vld [vmem:[%s989 + $0x18] sm:$0xf]
        %v997 = vld [vmem:[%s989 + $0x1c] sm:$0xf]
        %s998 = scalar_lea.vmem %s6, 64
        %v999 = vld [vmem:[%s998] sm:$0xff]
        %v1000 = vld [vmem:[%s998 + $0x8] sm:$0xff]
        %v1001 = vld [vmem:[%s998 + $0x10] sm:$0xff]
        %v1002 = vld [vmem:[%s998 + $0x18] sm:$0xff]
        %v1003 = vld [vmem:[%s998 + $0x20] sm:$0xff]
        %v1004 = vld [vmem:[%s998 + $0x28] sm:$0xff]
        %v1005 = vld [vmem:[%s998 + $0x30] sm:$0xff]
        %v1006 = vld [vmem:[%s998 + $0x38] sm:$0xff]
        %v1007 = vmul.f32 %v999, %v594
        %v1008 = vmul.f32 %v1000, %v594
        %v1009 = vmul.f32 %v1001, %v594
        %v1010 = vmul.f32 %v1002, %v594
        %v1011 = vmul.f32 %v1003, %v594
        %v1012 = vmul.f32 %v1004, %v594
        %v1013 = vmul.f32 %v1005, %v594
        %v1014 = vmul.f32 %v1006, %v594
        %s1015 = scalar_lea.vmem %s7, 64
        %v1016 = vld [vmem:[%s1015] sm:$0xff]
        %v1017 = vld [vmem:[%s1015 + $0x8] sm:$0xff]
        %v1018 = vld [vmem:[%s1015 + $0x10] sm:$0xff]
        %v1019 = vld [vmem:[%s1015 + $0x18] sm:$0xff]
        %v1020 = vld [vmem:[%s1015 + $0x20] sm:$0xff]
        %v1021 = vld [vmem:[%s1015 + $0x28] sm:$0xff]
        %v1022 = vld [vmem:[%s1015 + $0x30] sm:$0xff]
        %v1023 = vld [vmem:[%s1015 + $0x38] sm:$0xff]
        %v1024 = vadd.f32 %v1007, %v1016
        %v1025 = vadd.f32 %v1008, %v1017
        %v1026 = vadd.f32 %v1009, %v1018
        %v1027 = vadd.f32 %v1010, %v1019
        %v1028 = vadd.f32 %v1011, %v1020
        %v1029 = vadd.f32 %v1012, %v1021
        %v1030 = vadd.f32 %v1013, %v1022
        %v1031 = vadd.f32 %v1014, %v1023
        %1033 = vset.pattern.permute.xlu0 0
        %1034 = vperm.xlu0 %1033, %v1024
        %v1035 = vpop.permute.xlu0 %1034
        %1038 = vset.pattern.permute.xlu0 0
        %1039 = vperm.xlu0 %1038, %v1025
        %v1040 = vpop.permute.xlu0 %1039
        %1043 = vset.pattern.permute.xlu0 0
        %1044 = vperm.xlu0 %1043, %v1026
        %v1045 = vpop.permute.xlu0 %1044
        %1048 = vset.pattern.permute.xlu0 0
        %1049 = vperm.xlu0 %1048, %v1027
        %v1050 = vpop.permute.xlu0 %1049
        %1053 = vset.pattern.permute.xlu0 0
        %1054 = vperm.xlu0 %1053, %v1028
        %v1055 = vpop.permute.xlu0 %1054
        %1058 = vset.pattern.permute.xlu0 0
        %1059 = vperm.xlu0 %1058, %v1029
        %v1060 = vpop.permute.xlu0 %1059
        %1063 = vset.pattern.permute.xlu0 0
        %1064 = vperm.xlu0 %1063, %v1030
        %v1065 = vpop.permute.xlu0 %1064
        %1068 = vset.pattern.permute.xlu0 0
        %1069 = vperm.xlu0 %1068, %v1031
        %v1070 = vpop.permute.xlu0 %1069
        %v1080 = vunpack.c.l.b16 %v990
        %v1081 = vunpack.c.l.b16 %v991
        %v1082 = vunpack.c.l.b16 %v992
        %v1083 = vunpack.c.l.b16 %v993
        %v1084 = vunpack.c.l.b16 %v994
        %v1085 = vunpack.c.l.b16 %v995
        %v1086 = vunpack.c.l.b16 %v996
        %v1087 = vunpack.c.l.b16 %v997
        %v1088 = vpack.c.b16 %v1081, %v1080
        %v1089 = vpack.c.b16 %v1083, %v1082
        %v1090 = vpack.c.b16 %v1085, %v1084
        %v1091 = vpack.c.b16 %v1087, %v1086
        %v1093 = vsel %vm679, %v1088, 0
        %v1096 = vsel %vm679, %v1089, 0
        %v1099 = vsel %vm679, %v1090, 0
        %v1102 = vsel %vm679, %v1091, 0
        %1104 = vmatprep.subr.bf16.mxu0 0
        %1105 = vmatpush1.bf16.msra.mxu0 %v983
        %1106 = vmatprep.subr.bf16.mxu0 0
        %1107 = vmatpush1.bf16.msra.mxu0 %v984
        %1108 = vmatprep.subr.bf16.mxu0 0
        %1109 = vmatpush1.bf16.msra.mxu0 %v985
        %1110 = vmatprep.subr.bf16.mxu0 0
        %1111 = vmatpush1.bf16.msra.mxu0 %v986
        %1112 = vmatprep.subr.bf16.mxu0 0
        %1113 = vmatpush1.bf16.msra.mxu0 %v987
        %1114 = vmatprep.subr.bf16.mxu0 0
        %1115 = vmatpush1.bf16.msra.mxu0 %v988
        %1116 = vmatprep.subr.bf16.mxu0 0
        %1117 = vmatpush1.bf16.msra.mxu0 %v694
        %1118 = vmatprep.subr.bf16.mxu0 0
        %1119 = vmatpush1.bf16.msra.mxu0 0
        %1120 = vmatprep.subr.bf16.mxu0 0
        %1121 = vmatpush1.bf16.msra.mxu0 0
        %1122 = vmatprep.subr.bf16.mxu0 0
        %1123 = vmatpush1.bf16.msra.mxu0 0
        %1124 = vmatprep.subr.bf16.mxu0 0
        %1125 = vmatpush1.bf16.msra.mxu0 0
        %1126 = vmatprep.subr.bf16.mxu0 0
        %1127 = vmatpush1.bf16.msra.mxu0 0
        %1128 = vmatprep.subr.bf16.mxu0 0
        %1129 = vmatpush1.bf16.msra.mxu0 0
        %1130 = vmatprep.subr.bf16.mxu0 0
        %1131 = vmatpush1.bf16.msra.mxu0 0
        %1132 = vmatprep.subr.bf16.mxu0 0
        %1133 = vmatpush1.bf16.msra.mxu0 0
        %1134 = vmatprep.subr.bf16.mxu0 0
        %1135 = vmatpush1.bf16.msra.mxu0 0
        %1136 = vmatprep.mubr.bf16.mxu0 0
        %1137 = vmatmul.mubr.bf16.gmra.mrb[0].mxu0 %v1093
        %v1138 = vpop.f32.mrb[0].mxu0
        %v1139 = vadd.f32 %v1035, %v1138
        %v1140 = vpop.f32.mrb[0].mxu0
        %v1141 = vpop.f32.mrb[0].mxu0
        %v1142 = vadd.f32 %v1040, %v1141
        %v1143 = vpop.f32.mrb[0].mxu0
        %1144 = vmatprep.mubr.bf16.mxu0 0
        %1145 = vmatmul.mubr.bf16.gmra.mrb[0].mxu0 %v1096
        %v1146 = vpop.f32.mrb[0].mxu0
        %v1147 = vadd.f32 %v1045, %v1146
        %v1148 = vpop.f32.mrb[0].mxu0
        %v1149 = vpop.f32.mrb[0].mxu0
        %v1150 = vadd.f32 %v1050, %v1149
        %v1151 = vpop.f32.mrb[0].mxu0
        %1152 = vmatprep.mubr.bf16.mxu0 0
        %1153 = vmatmul.mubr.bf16.gmra.mrb[0].mxu0 %v1099
        %v1154 = vpop.f32.mrb[0].mxu0
        %v1155 = vadd.f32 %v1055, %v1154
        %v1156 = vpop.f32.mrb[0].mxu0
        %v1157 = vpop.f32.mrb[0].mxu0
        %v1158 = vadd.f32 %v1060, %v1157
        %v1159 = vpop.f32.mrb[0].mxu0
        %1160 = vmatprep.mubr.bf16.mxu0 0
        %1161 = vmatmul.mubr.bf16.gmra.mrb[0].mxu0 %v1102
        %v1162 = vpop.f32.mrb[0].mxu0
        %v1163 = vadd.f32 %v1065, %v1162
        %v1164 = vpop.f32.mrb[0].mxu0
        %v1165 = vpop.f32.mrb[0].mxu0
        %v1166 = vadd.f32 %v1070, %v1165
        %v1167 = vpop.f32.mrb[0].mxu0
        %1168 = vdwg.mxu0
        %v1169 = vtanh.pop %v1139
        %v1170 = vtanh.pop %v1142
        %v1171 = vtanh.pop %v1147
        %v1172 = vtanh.pop %v1150
        %v1173 = vxor.u32 %v1155, 2147483648
        %v1174 = vxor.u32 %v1158, 2147483648
        %v1175 = vxor.u32 %v1163, 2147483648
        %v1176 = vxor.u32 %v1166, 2147483648
        %v1177 = vmul.f32 %v1173, 1.442695
        %v1178 = vpow.pop %v1177
        %v1179 = vmul.f32 %v1174, 1.442695
        %v1180 = vpow.pop %v1179
        %v1181 = vmul.f32 %v1175, 1.442695
        %v1182 = vpow.pop %v1181
        %v1183 = vmul.f32 %v1176, 1.442695
        %v1184 = vpow.pop %v1183
        %v1185 = vadd.f32 %v1178, 1.0
        %v1186 = vadd.f32 %v1180, 1.0
        %v1187 = vadd.f32 %v1182, 1.0
        %v1188 = vadd.f32 %v1184, 1.0
        %v1189 = vrcp.pop %v1185
        %v1190 = vmul.f32 1.0, %v1189
        %v1191 = vrcp.pop %v1186
        %v1192 = vmul.f32 1.0, %v1191
        %v1193 = vrcp.pop %v1187
        %v1194 = vmul.f32 1.0, %v1193
        %v1195 = vrcp.pop %v1188
        %v1196 = vmul.f32 1.0, %v1195
        %v1197 = vmul.f32 %v1169, %v1190
        %v1198 = vmul.f32 %v1170, %v1192
        %v1199 = vmul.f32 %v1171, %v1194
        %v1200 = vmul.f32 %v1172, %v1196
        %s1201 = scalar_lea.vmem %s8, 32
        %v1202 = vld [vmem:[%s1201] sm:$0xf]
        %v1203 = vld [vmem:[%s1201 + $0x4] sm:$0xf]
        %v1204 = vld [vmem:[%s1201 + $0x8] sm:$0xf]
        %v1205 = vld [vmem:[%s1201 + $0xc] sm:$0xf]
        %v1206 = vld [vmem:[%s1201 + $0x10] sm:$0xf]
        %v1207 = vld [vmem:[%s1201 + $0x14] sm:$0xf]
        %v1208 = vld [vmem:[%s1201 + $0x18] sm:$0xf]
        %v1209 = vld [vmem:[%s1201 + $0x1c] sm:$0xf]
        %v1210 = vpack.c.bf16 %v1198, %v1197
        %v1211 = vpack.c.bf16 %v1200, %v1199
        %s1212 = scalar_lea.vmem %s9, 64
        %v1213 = vld [vmem:[%s1212] sm:$0xff]
        %v1214 = vld [vmem:[%s1212 + $0x8] sm:$0xff]
        %v1215 = vld [vmem:[%s1212 + $0x10] sm:$0xff]
        %v1216 = vld [vmem:[%s1212 + $0x18] sm:$0xff]
        %v1217 = vld [vmem:[%s1212 + $0x20] sm:$0xff]
        %v1218 = vld [vmem:[%s1212 + $0x28] sm:$0xff]
        %v1219 = vld [vmem:[%s1212 + $0x30] sm:$0xff]
        %v1220 = vld [vmem:[%s1212 + $0x38] sm:$0xff]
        %1222 = vset.pattern.permute.xlu0 0
        %1223 = vperm.xlu0 %1222, %v1213
        %v1224 = vpop.permute.xlu0 %1223
        %1227 = vset.pattern.permute.xlu0 0
        %1228 = vperm.xlu0 %1227, %v1214
        %v1229 = vpop.permute.xlu0 %1228
        %1232 = vset.pattern.permute.xlu0 0
        %1233 = vperm.xlu0 %1232, %v1215
        %v1234 = vpop.permute.xlu0 %1233
        %1237 = vset.pattern.permute.xlu0 0
        %1238 = vperm.xlu0 %1237, %v1216
        %v1239 = vpop.permute.xlu0 %1238
        %1242 = vset.pattern.permute.xlu0 0
        %1243 = vperm.xlu0 %1242, %v1217
        %v1244 = vpop.permute.xlu0 %1243
        %1247 = vset.pattern.permute.xlu0 0
        %1248 = vperm.xlu0 %1247, %v1218
        %v1249 = vpop.permute.xlu0 %1248
        %1252 = vset.pattern.permute.xlu0 0
        %1253 = vperm.xlu0 %1252, %v1219
        %v1254 = vpop.permute.xlu0 %1253
        %1257 = vset.pattern.permute.xlu0 0
        %1258 = vperm.xlu0 %1257, %v1220
        %v1259 = vpop.permute.xlu0 %1258
        %v1269 = vunpack.c.l.b16 %v1202
        %v1270 = vunpack.c.l.b16 %v1203
        %v1271 = vunpack.c.l.b16 %v1204
        %v1272 = vunpack.c.l.b16 %v1205
        %v1273 = vunpack.c.l.b16 %v1206
        %v1274 = vunpack.c.l.b16 %v1207
        %v1275 = vunpack.c.l.b16 %v1208
        %v1276 = vunpack.c.l.b16 %v1209
        %v1277 = vpack.c.b16 %v1270, %v1269
        %v1278 = vpack.c.b16 %v1272, %v1271
        %v1279 = vpack.c.b16 %v1274, %v1273
        %v1280 = vpack.c.b16 %v1276, %v1275
        %v1282 = vsel %vm871, %v1277, 0
        %v1285 = vsel %vm871, %v1278, 0
        %v1288 = vsel %vm871, %v1279, 0
        %v1291 = vsel %vm871, %v1280, 0
        %1293 = vmatprep.subr.bf16.mxu0 0
        %1294 = vmatpush1.bf16.msra.mxu0 %v1210
        %1295 = vmatprep.subr.bf16.mxu0 0
        %1296 = vmatpush1.bf16.msra.mxu0 %v1211
        %1297 = vmatprep.subr.bf16.mxu0 0
        %1298 = vmatpush1.bf16.msra.mxu0 0
        %1299 = vmatprep.subr.bf16.mxu0 0
        %1300 = vmatpush1.bf16.msra.mxu0 0
        %1301 = vmatprep.subr.bf16.mxu0 0
        %1302 = vmatpush1.bf16.msra.mxu0 0
        %1303 = vmatprep.subr.bf16.mxu0 0
        %1304 = vmatpush1.bf16.msra.mxu0 0
        %1305 = vmatprep.subr.bf16.mxu0 0
        %1306 = vmatpush1.bf16.msra.mxu0 0
        %1307 = vmatprep.subr.bf16.mxu0 0
        %1308 = vmatpush1.bf16.msra.mxu0 0
        %1309 = vmatprep.subr.bf16.mxu0 0
        %1310 = vmatpush1.bf16.msra.mxu0 0
        %1311 = vmatprep.subr.bf16.mxu0 0
        %1312 = vmatpush1.bf16.msra.mxu0 0
        %1313 = vmatprep.subr.bf16.mxu0 0
        %1314 = vmatpush1.bf16.msra.mxu0 0
        %1315 = vmatprep.subr.bf16.mxu0 0
        %1316 = vmatpush1.bf16.msra.mxu0 0
        %1317 = vmatprep.subr.bf16.mxu0 0
        %1318 = vmatpush1.bf16.msra.mxu0 0
        %1319 = vmatprep.subr.bf16.mxu0 0
        %1320 = vmatpush1.bf16.msra.mxu0 0
        %1321 = vmatprep.subr.bf16.mxu0 0
        %1322 = vmatpush1.bf16.msra.mxu0 0
        %1323 = vmatprep.subr.bf16.mxu0 0
        %1324 = vmatpush1.bf16.msra.mxu0 0
        %1325 = vmatprep.mubr.bf16.mxu0 0
        %1326 = vmatmul.mubr.bf16.gmra.mrb[0].mxu0 %v1282
        %v1327 = vpop.f32.mrb[0].mxu0
        %v1328 = vadd.f32 %v1224, %v1327
        %v1329 = vpop.f32.mrb[0].mxu0
        %v1330 = vpop.f32.mrb[0].mxu0
        %v1331 = vadd.f32 %v1229, %v1330
        %v1332 = vpop.f32.mrb[0].mxu0
        %1333 = vmatprep.mubr.bf16.mxu0 0
        %1334 = vmatmul.mubr.bf16.gmra.mrb[0].mxu0 %v1285
        %v1335 = vpop.f32.mrb[0].mxu0
        %v1336 = vadd.f32 %v1234, %v1335
        %v1337 = vpop.f32.mrb[0].mxu0
        %v1338 = vpop.f32.mrb[0].mxu0
        %v1339 = vadd.f32 %v1239, %v1338
        %v1340 = vpop.f32.mrb[0].mxu0
        %1341 = vmatprep.mubr.bf16.mxu0 0
        %1342 = vmatmul.mubr.bf16.gmra.mrb[0].mxu0 %v1288
        %v1343 = vpop.f32.mrb[0].mxu0
        %v1344 = vadd.f32 %v1244, %v1343
        %v1345 = vpop.f32.mrb[0].mxu0
        %v1346 = vpop.f32.mrb[0].mxu0
        %v1347 = vadd.f32 %v1249, %v1346
        %v1348 = vpop.f32.mrb[0].mxu0
        %1349 = vmatprep.mubr.bf16.mxu0 0
        %1350 = vmatmul.mubr.bf16.gmra.mrb[0].mxu0 %v1291
        %v1351 = vpop.f32.mrb[0].mxu0
        %v1352 = vadd.f32 %v1254, %v1351
        %v1353 = vpop.f32.mrb[0].mxu0
        %v1354 = vpop.f32.mrb[0].mxu0
        %v1355 = vadd.f32 %v1259, %v1354
        %v1356 = vpop.f32.mrb[0].mxu0
        %1357 = vdwg.mxu0
        %v1358 = vadd.f32 %v949, %v1328
        %v1359 = vadd.f32 %v950, %v1331
        %v1360 = vadd.f32 %v951, %v1336
        %v1361 = vadd.f32 %v952, %v1339
        %v1362 = vadd.f32 %v953, %v1344
        %v1363 = vadd.f32 %v954, %v1347
        %v1364 = vadd.f32 %v955, %v1352
        %v1365 = vadd.f32 %v956, %v1355
        %vm1366 = vcmp.ge.s32.totalorder %v544, 4
        %1367 = vrot.lane.b32.xlu0 %v1358, 4
        %v1368 = vpop.permute.xlu0 %1367
        %1369 = vrot.lane.b32.xlu0 %v1359, 4
        %v1370 = vpop.permute.xlu0 %1369
        %1371 = vrot.lane.b32.xlu0 %v1360, 4
        %v1372 = vpop.permute.xlu0 %1371
        %1373 = vrot.lane.b32.xlu0 %v1361, 4
        %v1374 = vpop.permute.xlu0 %1373
        %v1375 = vsel %vm1366, %v1368, 0.0
        %v1376 = vsel %vm1366, %v1370, 0.0
        %v1377 = vsel %vm1366, %v1372, 0.0
        %v1378 = vsel %vm1366, %v1374, 0.0
        %vm1379 = vcmp.lt.s32.totalorder %v544, 124
        %1380 = vrot.lane.b32.xlu0 %v1358, 124
        %v1381 = vpop.permute.xlu0 %1380
        %1382 = vrot.lane.b32.xlu0 %v1359, 124
        %v1383 = vpop.permute.xlu0 %1382
        %1384 = vrot.lane.b32.xlu0 %v1360, 124
        %v1385 = vpop.permute.xlu0 %1384
        %1386 = vrot.lane.b32.xlu0 %v1361, 124
        %v1387 = vpop.permute.xlu0 %1386
        %v1388 = vsel %vm1379, %v1381, 0.0
        %v1389 = vsel %vm1379, %v1383, 0.0
        %v1390 = vsel %vm1379, %v1385, 0.0
        %v1391 = vsel %vm1379, %v1387, 0.0
        %v1392 = vpack.c.bf16 %v1376, %v1375
        %v1393 = vpack.c.bf16 %v1378, %v1377
        %v1394 = vpack.c.bf16 %v1359, %v1358
        %v1395 = vpack.c.bf16 %v1361, %v1360
        %v1396 = vpack.c.bf16 %v1389, %v1388
        %v1397 = vpack.c.bf16 %v1391, %v1390
        %s1398 = scalar_lea.vmem %s5, 64
        %v1399 = vld [vmem:[%s1398] sm:$0xf]
        %v1400 = vld [vmem:[%s1398 + $0x4] sm:$0xf]
        %v1401 = vld [vmem:[%s1398 + $0x8] sm:$0xf]
        %v1402 = vld [vmem:[%s1398 + $0xc] sm:$0xf]
        %v1403 = vld [vmem:[%s1398 + $0x10] sm:$0xf]
        %v1404 = vld [vmem:[%s1398 + $0x14] sm:$0xf]
        %v1405 = vld [vmem:[%s1398 + $0x18] sm:$0xf]
        %v1406 = vld [vmem:[%s1398 + $0x1c] sm:$0xf]
        %s1407 = scalar_lea.vmem %s6, 128
        %v1408 = vld [vmem:[%s1407] sm:$0xff]
        %v1409 = vld [vmem:[%s1407 + $0x8] sm:$0xff]
        %v1410 = vld [vmem:[%s1407 + $0x10] sm:$0xff]
        %v1411 = vld [vmem:[%s1407 + $0x18] sm:$0xff]
        %v1412 = vld [vmem:[%s1407 + $0x20] sm:$0xff]
        %v1413 = vld [vmem:[%s1407 + $0x28] sm:$0xff]
        %v1414 = vld [vmem:[%s1407 + $0x30] sm:$0xff]
        %v1415 = vld [vmem:[%s1407 + $0x38] sm:$0xff]
        %v1416 = vmul.f32 %v1408, %v594
        %v1417 = vmul.f32 %v1409, %v594
        %v1418 = vmul.f32 %v1410, %v594
        %v1419 = vmul.f32 %v1411, %v594
        %v1420 = vmul.f32 %v1412, %v594
        %v1421 = vmul.f32 %v1413, %v594
        %v1422 = vmul.f32 %v1414, %v594
        %v1423 = vmul.f32 %v1415, %v594
        %s1424 = scalar_lea.vmem %s7, 128
        %v1425 = vld [vmem:[%s1424] sm:$0xff]
        %v1426 = vld [vmem:[%s1424 + $0x8] sm:$0xff]
        %v1427 = vld [vmem:[%s1424 + $0x10] sm:$0xff]
        %v1428 = vld [vmem:[%s1424 + $0x18] sm:$0xff]
        %v1429 = vld [vmem:[%s1424 + $0x20] sm:$0xff]
        %v1430 = vld [vmem:[%s1424 + $0x28] sm:$0xff]
        %v1431 = vld [vmem:[%s1424 + $0x30] sm:$0xff]
        %v1432 = vld [vmem:[%s1424 + $0x38] sm:$0xff]
        %v1433 = vadd.f32 %v1416, %v1425
        %v1434 = vadd.f32 %v1417, %v1426
        %v1435 = vadd.f32 %v1418, %v1427
        %v1436 = vadd.f32 %v1419, %v1428
        %v1437 = vadd.f32 %v1420, %v1429
        %v1438 = vadd.f32 %v1421, %v1430
        %v1439 = vadd.f32 %v1422, %v1431
        %v1440 = vadd.f32 %v1423, %v1432
        %1442 = vset.pattern.permute.xlu0 0
        %1443 = vperm.xlu0 %1442, %v1433
        %v1444 = vpop.permute.xlu0 %1443
        %1447 = vset.pattern.permute.xlu0 0
        %1448 = vperm.xlu0 %1447, %v1434
        %v1449 = vpop.permute.xlu0 %1448
        %1452 = vset.pattern.permute.xlu0 0
        %1453 = vperm.xlu0 %1452, %v1435
        %v1454 = vpop.permute.xlu0 %1453
        %1457 = vset.pattern.permute.xlu0 0
        %1458 = vperm.xlu0 %1457, %v1436
        %v1459 = vpop.permute.xlu0 %1458
        %1462 = vset.pattern.permute.xlu0 0
        %1463 = vperm.xlu0 %1462, %v1437
        %v1464 = vpop.permute.xlu0 %1463
        %1467 = vset.pattern.permute.xlu0 0
        %1468 = vperm.xlu0 %1467, %v1438
        %v1469 = vpop.permute.xlu0 %1468
        %1472 = vset.pattern.permute.xlu0 0
        %1473 = vperm.xlu0 %1472, %v1439
        %v1474 = vpop.permute.xlu0 %1473
        %1477 = vset.pattern.permute.xlu0 0
        %1478 = vperm.xlu0 %1477, %v1440
        %v1479 = vpop.permute.xlu0 %1478
        %v1489 = vunpack.c.l.b16 %v1399
        %v1490 = vunpack.c.l.b16 %v1400
        %v1491 = vunpack.c.l.b16 %v1401
        %v1492 = vunpack.c.l.b16 %v1402
        %v1493 = vunpack.c.l.b16 %v1403
        %v1494 = vunpack.c.l.b16 %v1404
        %v1495 = vunpack.c.l.b16 %v1405
        %v1496 = vunpack.c.l.b16 %v1406
        %v1497 = vpack.c.b16 %v1490, %v1489
        %v1498 = vpack.c.b16 %v1492, %v1491
        %v1499 = vpack.c.b16 %v1494, %v1493
        %v1500 = vpack.c.b16 %v1496, %v1495
        %v1502 = vsel %vm679, %v1497, 0
        %v1505 = vsel %vm679, %v1498, 0
        %v1508 = vsel %vm679, %v1499, 0
        %v1511 = vsel %vm679, %v1500, 0
        %1513 = vmatprep.subr.bf16.mxu0 0
        %1514 = vmatpush1.bf16.msra.mxu0 %v1392
        %1515 = vmatprep.subr.bf16.mxu0 0
        %1516 = vmatpush1.bf16.msra.mxu0 %v1393
        %1517 = vmatprep.subr.bf16.mxu0 0
        %1518 = vmatpush1.bf16.msra.mxu0 %v1394
        %1519 = vmatprep.subr.bf16.mxu0 0
        %1520 = vmatpush1.bf16.msra.mxu0 %v1395
        %1521 = vmatprep.subr.bf16.mxu0 0
        %1522 = vmatpush1.bf16.msra.mxu0 %v1396
        %1523 = vmatprep.subr.bf16.mxu0 0
        %1524 = vmatpush1.bf16.msra.mxu0 %v1397
        %1525 = vmatprep.subr.bf16.mxu0 0
        %1526 = vmatpush1.bf16.msra.mxu0 %v694
        %1527 = vmatprep.subr.bf16.mxu0 0
        %1528 = vmatpush1.bf16.msra.mxu0 0
        %1529 = vmatprep.subr.bf16.mxu0 0
        %1530 = vmatpush1.bf16.msra.mxu0 0
        %1531 = vmatprep.subr.bf16.mxu0 0
        %1532 = vmatpush1.bf16.msra.mxu0 0
        %1533 = vmatprep.subr.bf16.mxu0 0
        %1534 = vmatpush1.bf16.msra.mxu0 0
        %1535 = vmatprep.subr.bf16.mxu0 0
        %1536 = vmatpush1.bf16.msra.mxu0 0
        %1537 = vmatprep.subr.bf16.mxu0 0
        %1538 = vmatpush1.bf16.msra.mxu0 0
        %1539 = vmatprep.subr.bf16.mxu0 0
        %1540 = vmatpush1.bf16.msra.mxu0 0
        %1541 = vmatprep.subr.bf16.mxu0 0
        %1542 = vmatpush1.bf16.msra.mxu0 0
        %1543 = vmatprep.subr.bf16.mxu0 0
        %1544 = vmatpush1.bf16.msra.mxu0 0
        %1545 = vmatprep.mubr.bf16.mxu0 0
        %1546 = vmatmul.mubr.bf16.gmra.mrb[0].mxu0 %v1502
        %v1547 = vpop.f32.mrb[0].mxu0
        %v1548 = vadd.f32 %v1444, %v1547
        %v1549 = vpop.f32.mrb[0].mxu0
        %v1550 = vpop.f32.mrb[0].mxu0
        %v1551 = vadd.f32 %v1449, %v1550
        %v1552 = vpop.f32.mrb[0].mxu0
        %1553 = vmatprep.mubr.bf16.mxu0 0
        %1554 = vmatmul.mubr.bf16.gmra.mrb[0].mxu0 %v1505
        %v1555 = vpop.f32.mrb[0].mxu0
        %v1556 = vadd.f32 %v1454, %v1555
        %v1557 = vpop.f32.mrb[0].mxu0
        %v1558 = vpop.f32.mrb[0].mxu0
        %v1559 = vadd.f32 %v1459, %v1558
        %v1560 = vpop.f32.mrb[0].mxu0
        %1561 = vmatprep.mubr.bf16.mxu0 0
        %1562 = vmatmul.mubr.bf16.gmra.mrb[0].mxu0 %v1508
        %v1563 = vpop.f32.mrb[0].mxu0
        %v1564 = vadd.f32 %v1464, %v1563
        %v1565 = vpop.f32.mrb[0].mxu0
        %v1566 = vpop.f32.mrb[0].mxu0
        %v1567 = vadd.f32 %v1469, %v1566
        %v1568 = vpop.f32.mrb[0].mxu0
        %1569 = vmatprep.mubr.bf16.mxu0 0
        %1570 = vmatmul.mubr.bf16.gmra.mrb[0].mxu0 %v1511
        %v1571 = vpop.f32.mrb[0].mxu0
        %v1572 = vadd.f32 %v1474, %v1571
        %v1573 = vpop.f32.mrb[0].mxu0
        %v1574 = vpop.f32.mrb[0].mxu0
        %v1575 = vadd.f32 %v1479, %v1574
        %v1576 = vpop.f32.mrb[0].mxu0
        %1577 = vdwg.mxu0
        %v1578 = vtanh.pop %v1548
        %v1579 = vtanh.pop %v1551
        %v1580 = vtanh.pop %v1556
        %v1581 = vtanh.pop %v1559
        %v1582 = vxor.u32 %v1564, 2147483648
        %v1583 = vxor.u32 %v1567, 2147483648
        %v1584 = vxor.u32 %v1572, 2147483648
        %v1585 = vxor.u32 %v1575, 2147483648
        %v1586 = vmul.f32 %v1582, 1.442695
        %v1587 = vpow.pop %v1586
        %v1588 = vmul.f32 %v1583, 1.442695
        %v1589 = vpow.pop %v1588
        %v1590 = vmul.f32 %v1584, 1.442695
        %v1591 = vpow.pop %v1590
        %v1592 = vmul.f32 %v1585, 1.442695
        %v1593 = vpow.pop %v1592
        %v1594 = vadd.f32 %v1587, 1.0
        %v1595 = vadd.f32 %v1589, 1.0
        %v1596 = vadd.f32 %v1591, 1.0
        %v1597 = vadd.f32 %v1593, 1.0
        %v1598 = vrcp.pop %v1594
        %v1599 = vmul.f32 1.0, %v1598
        %v1600 = vrcp.pop %v1595
        %v1601 = vmul.f32 1.0, %v1600
        %v1602 = vrcp.pop %v1596
        %v1603 = vmul.f32 1.0, %v1602
        %v1604 = vrcp.pop %v1597
        %v1605 = vmul.f32 1.0, %v1604
        %v1606 = vmul.f32 %v1578, %v1599
        %v1607 = vmul.f32 %v1579, %v1601
        %v1608 = vmul.f32 %v1580, %v1603
        %v1609 = vmul.f32 %v1581, %v1605
        %s1610 = scalar_lea.vmem %s8, 64
        %v1611 = vld [vmem:[%s1610] sm:$0xf]
        %v1612 = vld [vmem:[%s1610 + $0x4] sm:$0xf]
        %v1613 = vld [vmem:[%s1610 + $0x8] sm:$0xf]
        %v1614 = vld [vmem:[%s1610 + $0xc] sm:$0xf]
        %v1615 = vld [vmem:[%s1610 + $0x10] sm:$0xf]
        %v1616 = vld [vmem:[%s1610 + $0x14] sm:$0xf]
        %v1617 = vld [vmem:[%s1610 + $0x18] sm:$0xf]
        %v1618 = vld [vmem:[%s1610 + $0x1c] sm:$0xf]
        %v1619 = vpack.c.bf16 %v1607, %v1606
        %v1620 = vpack.c.bf16 %v1609, %v1608
        %s1621 = scalar_lea.vmem %s9, 128
        %v1622 = vld [vmem:[%s1621] sm:$0xff]
        %v1623 = vld [vmem:[%s1621 + $0x8] sm:$0xff]
        %v1624 = vld [vmem:[%s1621 + $0x10] sm:$0xff]
        %v1625 = vld [vmem:[%s1621 + $0x18] sm:$0xff]
        %v1626 = vld [vmem:[%s1621 + $0x20] sm:$0xff]
        %v1627 = vld [vmem:[%s1621 + $0x28] sm:$0xff]
        %v1628 = vld [vmem:[%s1621 + $0x30] sm:$0xff]
        %v1629 = vld [vmem:[%s1621 + $0x38] sm:$0xff]
        %1631 = vset.pattern.permute.xlu0 0
        %1632 = vperm.xlu0 %1631, %v1622
        %v1633 = vpop.permute.xlu0 %1632
        %1635 = vset.pattern.permute.xlu0 0
        %1636 = vperm.xlu0 %1635, %v1623
        %v1637 = vpop.permute.xlu0 %1636
        %1639 = vset.pattern.permute.xlu0 0
        %1640 = vperm.xlu0 %1639, %v1624
        %v1641 = vpop.permute.xlu0 %1640
        %1643 = vset.pattern.permute.xlu0 0
        %1644 = vperm.xlu0 %1643, %v1625
        %v1645 = vpop.permute.xlu0 %1644
        %1647 = vset.pattern.permute.xlu0 0
        %1648 = vperm.xlu0 %1647, %v1626
        %v1649 = vpop.permute.xlu0 %1648
        %1652 = vset.pattern.permute.xlu0 0
        %1653 = vperm.xlu0 %1652, %v1627
        %v1654 = vpop.permute.xlu0 %1653
        %1657 = vset.pattern.permute.xlu0 0
        %1658 = vperm.xlu0 %1657, %v1628
        %v1659 = vpop.permute.xlu0 %1658
        %1662 = vset.pattern.permute.xlu0 0
        %1663 = vperm.xlu0 %1662, %v1629
        %v1664 = vpop.permute.xlu0 %1663
        %v1674 = vunpack.c.l.b16 %v1611
        %v1675 = vunpack.c.l.b16 %v1612
        %v1676 = vunpack.c.l.b16 %v1613
        %v1677 = vunpack.c.l.b16 %v1614
        %v1678 = vunpack.c.l.b16 %v1615
        %v1679 = vunpack.c.l.b16 %v1616
        %v1680 = vunpack.c.l.b16 %v1617
        %v1681 = vunpack.c.l.b16 %v1618
        %v1682 = vpack.c.b16 %v1675, %v1674
        %v1683 = vpack.c.b16 %v1677, %v1676
        %v1684 = vpack.c.b16 %v1679, %v1678
        %v1685 = vpack.c.b16 %v1681, %v1680
        %v1687 = vsel %vm871, %v1682, 0
        %v1690 = vsel %vm871, %v1683, 0
        %v1693 = vsel %vm871, %v1684, 0
        %v1696 = vsel %vm871, %v1685, 0
        %1698 = vmatprep.subr.bf16.mxu0 0
        %1699 = vmatpush1.bf16.msra.mxu0 %v1619
        %1700 = vmatprep.subr.bf16.mxu0 0
        %1701 = vmatpush1.bf16.msra.mxu0 %v1620
        %1702 = vmatprep.subr.bf16.mxu0 0
        %1703 = vmatpush1.bf16.msra.mxu0 0
        %1704 = vmatprep.subr.bf16.mxu0 0
        %1705 = vmatpush1.bf16.msra.mxu0 0
        %1706 = vmatprep.subr.bf16.mxu0 0
        %1707 = vmatpush1.bf16.msra.mxu0 0
        %1708 = vmatprep.subr.bf16.mxu0 0
        %1709 = vmatpush1.bf16.msra.mxu0 0
        %1710 = vmatprep.subr.bf16.mxu0 0
        %1711 = vmatpush1.bf16.msra.mxu0 0
        %1712 = vmatprep.subr.bf16.mxu0 0
        %1713 = vmatpush1.bf16.msra.mxu0 0
        %1714 = vmatprep.subr.bf16.mxu0 0
        %1715 = vmatpush1.bf16.msra.mxu0 0
        %1716 = vmatprep.subr.bf16.mxu0 0
        %1717 = vmatpush1.bf16.msra.mxu0 0
        %1718 = vmatprep.subr.bf16.mxu0 0
        %1719 = vmatpush1.bf16.msra.mxu0 0
        %1720 = vmatprep.subr.bf16.mxu0 0
        %1721 = vmatpush1.bf16.msra.mxu0 0
        %1722 = vmatprep.subr.bf16.mxu0 0
        %1723 = vmatpush1.bf16.msra.mxu0 0
        %1724 = vmatprep.subr.bf16.mxu0 0
        %1725 = vmatpush1.bf16.msra.mxu0 0
        %1726 = vmatprep.subr.bf16.mxu0 0
        %1727 = vmatpush1.bf16.msra.mxu0 0
        %1728 = vmatprep.subr.bf16.mxu0 0
        %1729 = vmatpush1.bf16.msra.mxu0 0
        %1730 = vmatprep.mubr.bf16.mxu0 0
        %1731 = vmatmul.mubr.bf16.gmra.mrb[0].mxu0 %v1687
        %v1732 = vpop.f32.mrb[0].mxu0
        %v1733 = vpop.f32.mrb[0].mxu0
        %v1734 = vpop.f32.mrb[0].mxu0
        %v1735 = vpop.f32.mrb[0].mxu0
        %1736 = vmatprep.mubr.bf16.mxu0 0
        %1737 = vmatmul.mubr.bf16.gmra.mrb[0].mxu0 %v1690
        %v1738 = vpop.f32.mrb[0].mxu0
        %v1739 = vpop.f32.mrb[0].mxu0
        %v1740 = vpop.f32.mrb[0].mxu0
        %v1741 = vpop.f32.mrb[0].mxu0
        %1742 = vmatprep.mubr.bf16.mxu0 0
        %1743 = vmatmul.mubr.bf16.gmra.mrb[0].mxu0 %v1693
        %v1744 = vpop.f32.mrb[0].mxu0
        %v1745 = vadd.f32 %v1649, %v1744
        %v1746 = vpop.f32.mrb[0].mxu0
        %v1747 = vpop.f32.mrb[0].mxu0
        %v1748 = vadd.f32 %v1654, %v1747
        %v1749 = vpop.f32.mrb[0].mxu0
        %1750 = vmatprep.mubr.bf16.mxu0 0
        %1751 = vmatmul.mubr.bf16.gmra.mrb[0].mxu0 %v1696
        %v1752 = vpop.f32.mrb[0].mxu0
        %v1753 = vadd.f32 %v1659, %v1752
        %v1754 = vpop.f32.mrb[0].mxu0
        %v1755 = vpop.f32.mrb[0].mxu0
        %v1756 = vadd.f32 %v1664, %v1755
        %v1757 = vpop.f32.mrb[0].mxu0
        %1758 = vdwg.mxu0
        %v1759 = vadd.f32 %v1362, %v1745
        %v1760 = vadd.f32 %v1363, %v1748
        %v1761 = vadd.f32 %v1364, %v1753
        %v1762 = vadd.f32 %v1365, %v1756
        %v1763 = vld [vmem:[%s10] sm:$0x3]
        %v1764 = vpack.c.bf16 %v1760, %v1759
        %v1765 = vpack.c.bf16 %v1762, %v1761
        %v1766 = vld [vmem:[%s11] sm:$0xf]
        %1768 = vset.pattern.permute.xlu0 0
        %1769 = vperm.xlu0 %1768, %v1766
        %v1770 = vpop.permute.xlu0 %1769
        %v1773 = vsel %vm871, %v1763, 0
        %1775 = vmatprep.subr.bf16.mxu0 0
        %1776 = vmatpush1.bf16.msra.mxu0 %v1764
        %1777 = vmatprep.subr.bf16.mxu0 0
        %1778 = vmatpush1.bf16.msra.mxu0 %v1765
        %1779 = vmatprep.subr.bf16.mxu0 0
        %1780 = vmatpush1.bf16.msra.mxu0 0
        %1781 = vmatprep.subr.bf16.mxu0 0
        %1782 = vmatpush1.bf16.msra.mxu0 0
        %1783 = vmatprep.subr.bf16.mxu0 0
        %1784 = vmatpush1.bf16.msra.mxu0 0
        %1785 = vmatprep.subr.bf16.mxu0 0
        %1786 = vmatpush1.bf16.msra.mxu0 0
        %1787 = vmatprep.subr.bf16.mxu0 0
        %1788 = vmatpush1.bf16.msra.mxu0 0
        %1789 = vmatprep.subr.bf16.mxu0 0
        %1790 = vmatpush1.bf16.msra.mxu0 0
        %1791 = vmatprep.subr.bf16.mxu0 0
        %1792 = vmatpush1.bf16.msra.mxu0 0
        %1793 = vmatprep.subr.bf16.mxu0 0
        %1794 = vmatpush1.bf16.msra.mxu0 0
        %1795 = vmatprep.subr.bf16.mxu0 0
        %1796 = vmatpush1.bf16.msra.mxu0 0
        %1797 = vmatprep.subr.bf16.mxu0 0
        %1798 = vmatpush1.bf16.msra.mxu0 0
        %1799 = vmatprep.subr.bf16.mxu0 0
        %1800 = vmatpush1.bf16.msra.mxu0 0
        %1801 = vmatprep.subr.bf16.mxu0 0
        %1802 = vmatpush1.bf16.msra.mxu0 0
        %1803 = vmatprep.subr.bf16.mxu0 0
        %1804 = vmatpush1.bf16.msra.mxu0 0
        %1805 = vmatprep.subr.bf16.mxu0 0
        %1806 = vmatpush1.bf16.msra.mxu0 0
        %1807 = vmatprep.mubr.bf16.mxu0 0
        %1808 = vmatmul.mubr.bf16.gmra.mrb[0].mxu0 %v1773
        %v1809 = vpop.f32.mrb[0].mxu0
        %v1810 = vadd.f32 %v1770, %v1809
        %v1811 = vpop.f32.mrb[0].mxu0
        %v1812 = vpop.f32.mrb[0].mxu0
        %v1813 = vpop.f32.mrb[0].mxu0
        %1814 = vdwg.mxu0
        %1815 = vst [vmem:[%s431] sm:$0xf] %v1810
        %s1816 = sand.u32 %s297, 1
        %s1817 = scalar_lea.sflag [#allocation3], %s1816
        %s1818 = sand.u32 %s297, 1
        %s1819 = smul.addr %s1818, 4
        %s1820 = scalar_lea.vmem [#allocation5], %s1819
        // Predicated region
        $region73: #{tpu_custom_call.1} parent=67 // pred_check
          %p1821 = pneg %p307
        $region74: #{tpu_custom_call.1} parent=67 // pred_check_branch
          %1823 = sbr.rel (%p1821) target = $region76
        $region75: #{tpu_custom_call.1} parent=67 // pred_region
          %s1825 = ssub.s32 64, 64
          %1826 = vsyncadd %s1817, %s1825
          %s1827 = smul.addr %s27, 64
          %s1828 = scalar_lea.hbm %s12, %s1827
          %s1830 = sshll.u32 %s1820, 4
          %s1831 = int_to_ptr.vmem [resolvable:$true] %s1830
          %1833 = dma.vmem_to_hbm [thread:$0]  %s1831, 64, %s1828, %s1817
        $region76: #{tpu_custom_call.1} parent=67 // pred_fallthru
          _
      $region68: #{tpu_custom_call.1} parent=5 // pred_fallthru
        _
      %p1834 = scmp.le.s32.totalorder 2, %s22
      // Predicated region
      $region77: #{tpu_custom_call.1} parent=5 // pred_check
        %p1835 = pneg %p1834
      $region78: #{tpu_custom_call.1} parent=5 // pred_check_branch
        %1837 = sbr.rel (%p1835) target = $region80
      $region79: #{tpu_custom_call.1} parent=5 // pred_region
        %s1838 = ssub.s32 %s22, 2
        // Predicated region
        $region81: #{tpu_custom_call.1} parent=79 // pred_check
          %p1839 = pneg %p313
        $region82: #{tpu_custom_call.1} parent=79 // pred_check_branch
          %1841 = sbr.rel (%p1839) target = $region84
        $region83: #{tpu_custom_call.1} parent=79 // pred_region
          %s1842 = sand.u32 %s298, 1
          %s1843 = scalar_lea.sflag [#allocation3], %s1842
          %s1844 = sand.u32 %s298, 1
          %s1845 = smul.addr %s1844, 4
          %s1846 = scalar_lea.vmem [#allocation5], %s1845
          %1847 = dma.done %s1843, 64
        $region84: #{tpu_custom_call.1} parent=79 // pred_fallthru
          _
      $region80: #{tpu_custom_call.1} parent=5 // pred_fallthru
        _
    $region6: #{tpu_custom_call.1} parent=1 // loop_footer
      %s26 = sadd.s32 1, %s22
    $region7: #{tpu_custom_call.1} parent=1 // loop_footer_branch
      %21 = sbr.rel target = $region3
    $region8: #{tpu_custom_call.1} parent=1 // loop_exit
      _
    %1848 = vsyncpa [#allocation3], 1
    %s1849 = scalar_lea.sflag [#allocation3], 1
    %1850 = vsyncpa %s1849, 1
    %1851 = vsyncpa [#allocation4], 1
    %s1852 = scalar_lea.sflag [#allocation4], 1
    %1853 = vsyncpa %s1852, 1

// kernel: tpu_custom_call.1
$region0: #{tpu_custom_call.1}
  #allocation0 [shape = 'u32[]', space=smem, size = 0x4, offset = 0x4, fixed_abs, tag = 'smem constant byte address 0x4 - core index']
  #allocation1 [shape = 'u32[144,128]{1,0:T(1,128)}', space=vmem, size = 0x12000, scoped, tag = 'internal scratch']
  %s0 = inlined_call_operand.vmem [shape: f32[2,4,128], index: 0, kind: input, shape index: {}]
  %s1 = inlined_call_operand.vmem [shape: f32[2,8,128], index: 1, kind: input, shape index: {}]
  %s2 = inlined_call_operand.vmem [shape: f32[2], index: 2, kind: input, shape index: {}]
  %s3 = inlined_call_operand.vmem [shape: bf16[32,4], index: 3, kind: input, shape index: {}]
  %s4 = inlined_call_operand.vmem [shape: f32[32,1], index: 4, kind: input, shape index: {}]
  %s5 = inlined_call_operand.vmem [shape: bf16[3,64,104], index: 5, kind: input, shape index: {}]
  %s6 = inlined_call_operand.vmem [shape: f32[3,64,1], index: 6, kind: input, shape index: {}]
  %s7 = inlined_call_operand.vmem [shape: f32[3,64,1], index: 7, kind: input, shape index: {}]
  %s8 = inlined_call_operand.vmem [shape: bf16[3,64,32], index: 8, kind: input, shape index: {}]
  %s9 = inlined_call_operand.vmem [shape: f32[3,64,1], index: 9, kind: input, shape index: {}]
  %s10 = inlined_call_operand.vmem [shape: bf16[4,32], index: 10, kind: input, shape index: {}]
  %s11 = inlined_call_operand.vmem [shape: f32[4,1], index: 11, kind: input, shape index: {}]
  %s12 = inlined_call_operand.hbm [shape: f32[2,4,128], index: 12, kind: output, shape index: {}]
  %s13 = sld [smem:[#allocation0]]
  $region85: #{tpu_custom_call.1} parent=0
    _
  %s15 = ssub.s32 1, %s13
  %s16 = scalar_select 0, %s15, %s13
  $region1: #{tpu_custom_call.1} parent=0
    #allocation2 [shape = 'u8[512]{0}', space=smem, size = 0x200, scoped, tag = 'input window, operand 2, single buffered']
    #allocation3 [shape = 's32[2]{0}', space=sflag, size = 0x8, scoped, tag = 'scoped memory for tpu_custom_call.1']
    #allocation4 [shape = 's32[2]{0}', space=sflag, size = 0x8, scoped, tag = 'scoped memory for tpu_custom_call.1']
    #allocation5 [shape = 'u8[4096]{0}', space=vmem, size = 0x1000, scoped, tag = 'output window, operand 0']
    %17 = vsyncpa [#allocation4], 0
    %18 = vsyncpa [#allocation3], 0
    %s19 = scalar_lea.sflag [#allocation3], 1
    %20 = vsyncpa %s19, 0
    loop: start=0, step=1, limit=4
    $region2: #{tpu_custom_call.1} parent=1 // loop_pre_header
      _
    $region3: #{tpu_custom_call.1} parent=1 // loop_header
      %s22 = sphi 0, %s26
      %p23 = scmp.ge.s32.totalorder %s22, 4
      %s32 = sphi 0, %s34
      %s35 = sphi 0, %s32
      %s36 = sphi 0, %s35
      %s52 = sphi 0, %s36
      %s58 = sphi 0, %s60
      %s61 = sphi 0, %s58
      %s62 = sphi 0, %s61
      %s78 = sphi 0, %s62
      %s82 = sphi 0, %s82
      %s84 = sphi 0, %s82
      %s85 = sphi 0, %s84
      %s99 = sphi 0, %s85
      %s103 = sphi 0, %s103
      %s105 = sphi 0, %s103
      %s106 = sphi 0, %s105
      %s120 = sphi 0, %s106
      %s124 = sphi 0, %s124
      %s126 = sphi 0, %s124
      %s127 = sphi 0, %s126
      %s141 = sphi 0, %s127
      %s145 = sphi 0, %s145
      %s147 = sphi 0, %s145
      %s148 = sphi 0, %s147
      %s162 = sphi 0, %s148
      %s166 = sphi 0, %s166
      %s168 = sphi 0, %s166
      %s169 = sphi 0, %s168
      %s183 = sphi 0, %s169
      %s187 = sphi 0, %s187
      %s189 = sphi 0, %s187
      %s190 = sphi 0, %s189
      %s204 = sphi 0, %s190
      %s208 = sphi 0, %s208
      %s210 = sphi 0, %s208
      %s211 = sphi 0, %s210
      %s225 = sphi 0, %s211
      %s229 = sphi 0, %s229
      %s231 = sphi 0, %s229
      %s232 = sphi 0, %s231
      %s246 = sphi 0, %s232
      %s250 = sphi 0, %s250
      %s252 = sphi 0, %s250
      %s253 = sphi 0, %s252
      %s267 = sphi 0, %s253
      %s271 = sphi 0, %s271
      %s273 = sphi 0, %s271
      %s274 = sphi 0, %s273
      %s288 = sphi 0, %s274
      %s294 = sphi 0, %s296
      %s297 = sphi 0, %s294
      %s298 = sphi 0, %s297
      %s314 = sphi 0, %s298
    $region4: #{tpu_custom_call.1} parent=1 // loop_header_branch
      %25 = sbr.rel (%p23) target = $region8
    $region5: #{tpu_custom_call.1} parent=1 // loop_body
      %s27 = ssub.s32 %s22, 1
      %s28 = ssub.s32 %s22, 2
      %s29 = sadd.s32 %s22, 1
      %s30 = ssub.s32 %s22, %s29
      %p31 = scmp.eq.s32.totalorder %s30, 0
      %s33 = sadd.s32 %s32, 1
      %s34 = scalar_select %p31, %s32, %s33
      %p37 = pneg %p31
      %p38 = scmp.eq.s32.totalorder %s22, 1
      %p39 = por %p37, %p38
      %p40 = scmp.ne.s32.totalorder %s32, %s35
      %p41 = scmp.eq.s32.totalorder %s22, 0
      %p42 = por %p40, %p41
      %p43 = scmp.ne.s32.totalorder %s32, %s35
      %p44 = scmp.eq.s32.totalorder %s27, 1
      %p45 = por %p43, %p44
      %p46 = scmp.ne.s32.totalorder %s35, %s36
      %p47 = scmp.eq.s32.totalorder %s27, 0
      %p48 = por %p46, %p47
      %p49 = scmp.ne.s32.totalorder %s35, %s36
      %p50 = scmp.eq.s32.totalorder %s28, 1
      %p51 = por %p49, %p50
      %p53 = scmp.ne.s32.totalorder %s36, %s52
      %p54 = scmp.eq.s32.totalorder %s28, 0
      %p55 = por %p53, %p54
      %s56 = ssub.s32 %s22, %s29
      %p57 = scmp.eq.s32.totalorder %s56, 0
      %s59 = sadd.s32 %s58, 1
      %s60 = scalar_select %p57, %s58, %s59
      %p63 = pneg %p57
      %p64 = scmp.eq.s32.totalorder %s22, 1
      %p65 = por %p63, %p64
      %p66 = scmp.ne.s32.totalorder %s58, %s61
      %p67 = scmp.eq.s32.totalorder %s22, 0
      %p68 = por %p66, %p67
      %p69 = scmp.ne.s32.totalorder %s58, %s61
      %p70 = scmp.eq.s32.totalorder %s27, 1
      %p71 = por %p69, %p70
      %p72 = scmp.ne.s32.totalorder %s61, %s62
      %p73 = scmp.eq.s32.totalorder %s27, 0
      %p74 = por %p72, %p73
      %p75 = scmp.ne.s32.totalorder %s61, %s62
      %p76 = scmp.eq.s32.totalorder %s28, 1
      %p77 = por %p75, %p76
      %p79 = scmp.ne.s32.totalorder %s62, %s78
      %p80 = scmp.eq.s32.totalorder %s28, 0
      %p81 = por %p79, %p80
      %s83 = sadd.s32 %s82, 1
      %p86 = scmp.eq.s32.totalorder %s22, 1
      %p87 = scmp.ne.s32.totalorder %s82, %s84
      %p88 = scmp.eq.s32.totalorder %s22, 0
      %p89 = por %p87, %p88
      %p90 = scmp.ne.s32.totalorder %s82, %s84
      %p91 = scmp.eq.s32.totalorder %s27, 1
      %p92 = por %p90, %p91
      %p93 = scmp.ne.s32.totalorder %s84, %s85
      %p94 = scmp.eq.s32.totalorder %s27, 0
      %p95 = por %p93, %p94
      %p96 = scmp.ne.s32.totalorder %s84, %s85
      %p97 = scmp.eq.s32.totalorder %s28, 1
      %p98 = por %p96, %p97
      %p100 = scmp.ne.s32.totalorder %s85, %s99
      %p101 = scmp.eq.s32.totalorder %s28, 0
      %p102 = por %p100, %p101
      %s104 = sadd.s32 %s103, 1
      %p107 = scmp.eq.s32.totalorder %s22, 1
      %p108 = scmp.ne.s32.totalorder %s103, %s105
      %p109 = scmp.eq.s32.totalorder %s22, 0
      %p110 = por %p108, %p109
      %p111 = scmp.ne.s32.totalorder %s103, %s105
      %p112 = scmp.eq.s32.totalorder %s27, 1
      %p113 = por %p111, %p112
      %p114 = scmp.ne.s32.totalorder %s105, %s106
      %p115 = scmp.eq.s32.totalorder %s27, 0
      %p116 = por %p114, %p115
      %p117 = scmp.ne.s32.totalorder %s105, %s106
      %p118 = scmp.eq.s32.totalorder %s28, 1
      %p119 = por %p117, %p118
      %p121 = scmp.ne.s32.totalorder %s106, %s120
      %p122 = scmp.eq.s32.totalorder %s28, 0
      %p123 = por %p121, %p122
      %s125 = sadd.s32 %s124, 1
      %p128 = scmp.eq.s32.totalorder %s22, 1
      %p129 = scmp.ne.s32.totalorder %s124, %s126
      %p130 = scmp.eq.s32.totalorder %s22, 0
      %p131 = por %p129, %p130
      %p132 = scmp.ne.s32.totalorder %s124, %s126
      %p133 = scmp.eq.s32.totalorder %s27, 1
      %p134 = por %p132, %p133
      %p135 = scmp.ne.s32.totalorder %s126, %s127
      %p136 = scmp.eq.s32.totalorder %s27, 0
      %p137 = por %p135, %p136
      %p138 = scmp.ne.s32.totalorder %s126, %s127
      %p139 = scmp.eq.s32.totalorder %s28, 1
      %p140 = por %p138, %p139
      %p142 = scmp.ne.s32.totalorder %s127, %s141
      %p143 = scmp.eq.s32.totalorder %s28, 0
      %p144 = por %p142, %p143
      %s146 = sadd.s32 %s145, 1
      %p149 = scmp.eq.s32.totalorder %s22, 1
      %p150 = scmp.ne.s32.totalorder %s145, %s147
      %p151 = scmp.eq.s32.totalorder %s22, 0
      %p152 = por %p150, %p151
      %p153 = scmp.ne.s32.totalorder %s145, %s147
      %p154 = scmp.eq.s32.totalorder %s27, 1
      %p155 = por %p153, %p154
      %p156 = scmp.ne.s32.totalorder %s147, %s148
      %p157 = scmp.eq.s32.totalorder %s27, 0
      %p158 = por %p156, %p157
      %p159 = scmp.ne.s32.totalorder %s147, %s148
      %p160 = scmp.eq.s32.totalorder %s28, 1
      %p161 = por %p159, %p160
      %p163 = scmp.ne.s32.totalorder %s148, %s162
      %p164 = scmp.eq.s32.totalorder %s28, 0
      %p165 = por %p163, %p164
      %s167 = sadd.s32 %s166, 1
      %p170 = scmp.eq.s32.totalorder %s22, 1
      %p171 = scmp.ne.s32.totalorder %s166, %s168
      %p172 = scmp.eq.s32.totalorder %s22, 0
      %p173 = por %p171, %p172
      %p174 = scmp.ne.s32.totalorder %s166, %s168
      %p175 = scmp.eq.s32.totalorder %s27, 1
      %p176 = por %p174, %p175
      %p177 = scmp.ne.s32.totalorder %s168, %s169
      %p178 = scmp.eq.s32.totalorder %s27, 0
      %p179 = por %p177, %p178
      %p180 = scmp.ne.s32.totalorder %s168, %s169
      %p181 = scmp.eq.s32.totalorder %s28, 1
      %p182 = por %p180, %p181
      %p184 = scmp.ne.s32.totalorder %s169, %s183
      %p185 = scmp.eq.s32.totalorder %s28, 0
      %p186 = por %p184, %p185
      %s188 = sadd.s32 %s187, 1
      %p191 = scmp.eq.s32.totalorder %s22, 1
      %p192 = scmp.ne.s32.totalorder %s187, %s189
      %p193 = scmp.eq.s32.totalorder %s22, 0
      %p194 = por %p192, %p193
      %p195 = scmp.ne.s32.totalorder %s187, %s189
      %p196 = scmp.eq.s32.totalorder %s27, 1
      %p197 = por %p195, %p196
      %p198 = scmp.ne.s32.totalorder %s189, %s190
      %p199 = scmp.eq.s32.totalorder %s27, 0
      %p200 = por %p198, %p199
      %p201 = scmp.ne.s32.totalorder %s189, %s190
      %p202 = scmp.eq.s32.totalorder %s28, 1
      %p203 = por %p201, %p202
      %p205 = scmp.ne.s32.totalorder %s190, %s204
      %p206 = scmp.eq.s32.totalorder %s28, 0
      %p207 = por %p205, %p206
      %s209 = sadd.s32 %s208, 1
      %p212 = scmp.eq.s32.totalorder %s22, 1
      %p213 = scmp.ne.s32.totalorder %s208, %s210
      %p214 = scmp.eq.s32.totalorder %s22, 0
      %p215 = por %p213, %p214
      %p216 = scmp.ne.s32.totalorder %s208, %s210
      %p217 = scmp.eq.s32.totalorder %s27, 1
      %p218 = por %p216, %p217
      %p219 = scmp.ne.s32.totalorder %s210, %s211
      %p220 = scmp.eq.s32.totalorder %s27, 0
      %p221 = por %p219, %p220
      %p222 = scmp.ne.s32.totalorder %s210, %s211
      %p223 = scmp.eq.s32.totalorder %s28, 1
      %p224 = por %p222, %p223
      %p226 = scmp.ne.s32.totalorder %s211, %s225
      %p227 = scmp.eq.s32.totalorder %s28, 0
      %p228 = por %p226, %p227
      %s230 = sadd.s32 %s229, 1
      %p233 = scmp.eq.s32.totalorder %s22, 1
      %p234 = scmp.ne.s32.totalorder %s229, %s231
      %p235 = scmp.eq.s32.totalorder %s22, 0
      %p236 = por %p234, %p235
      %p237 = scmp.ne.s32.totalorder %s229, %s231
      %p238 = scmp.eq.s32.totalorder %s27, 1
      %p239 = por %p237, %p238
      %p240 = scmp.ne.s32.totalorder %s231, %s232
      %p241 = scmp.eq.s32.totalorder %s27, 0
      %p242 = por %p240, %p241
      %p243 = scmp.ne.s32.totalorder %s231, %s232
      %p244 = scmp.eq.s32.totalorder %s28, 1
      %p245 = por %p243, %p244
      %p247 = scmp.ne.s32.totalorder %s232, %s246
      %p248 = scmp.eq.s32.totalorder %s28, 0
      %p249 = por %p247, %p248
      %s251 = sadd.s32 %s250, 1
      %p254 = scmp.eq.s32.totalorder %s22, 1
      %p255 = scmp.ne.s32.totalorder %s250, %s252
      %p256 = scmp.eq.s32.totalorder %s22, 0
      %p257 = por %p255, %p256
      %p258 = scmp.ne.s32.totalorder %s250, %s252
      %p259 = scmp.eq.s32.totalorder %s27, 1
      %p260 = por %p258, %p259
      %p261 = scmp.ne.s32.totalorder %s252, %s253
      %p262 = scmp.eq.s32.totalorder %s27, 0
      %p263 = por %p261, %p262
      %p264 = scmp.ne.s32.totalorder %s252, %s253
      %p265 = scmp.eq.s32.totalorder %s28, 1
      %p266 = por %p264, %p265
      %p268 = scmp.ne.s32.totalorder %s253, %s267
      %p269 = scmp.eq.s32.totalorder %s28, 0
      %p270 = por %p268, %p269
      %s272 = sadd.s32 %s271, 1
      %p275 = scmp.eq.s32.totalorder %s22, 1
      %p276 = scmp.ne.s32.totalorder %s271, %s273
      %p277 = scmp.eq.s32.totalorder %s22, 0
      %p278 = por %p276, %p277
      %p279 = scmp.ne.s32.totalorder %s271, %s273
      %p280 = scmp.eq.s32.totalorder %s27, 1
      %p281 = por %p279, %p280
      %p282 = scmp.ne.s32.totalorder %s273, %s274
      %p283 = scmp.eq.s32.totalorder %s27, 0
      %p284 = por %p282, %p283
      %p285 = scmp.ne.s32.totalorder %s273, %s274
      %p286 = scmp.eq.s32.totalorder %s28, 1
      %p287 = por %p285, %p286
      %p289 = scmp.ne.s32.totalorder %s274, %s288
      %p290 = scmp.eq.s32.totalorder %s28, 0
      %p291 = por %p289, %p290
      %s292 = ssub.s32 %s22, %s29
      %p293 = scmp.eq.s32.totalorder %s292, 0
      %s295 = sadd.s32 %s294, 1
      %s296 = scalar_select %p293, %s294, %s295
      %p299 = pneg %p293
      %p300 = scmp.eq.s32.totalorder %s22, 1
      %p301 = por %p299, %p300
      %p302 = scmp.ne.s32.totalorder %s294, %s297
      %p303 = scmp.eq.s32.totalorder %s22, 0
      %p304 = por %p302, %p303
      %p305 = scmp.ne.s32.totalorder %s294, %s297
      %p306 = scmp.eq.s32.totalorder %s27, 1
      %p307 = por %p305, %p306
      %p308 = scmp.ne.s32.totalorder %s297, %s298
      %p309 = scmp.eq.s32.totalorder %s27, 0
      %p310 = por %p308, %p309
      %p311 = scmp.ne.s32.totalorder %s297, %s298
      %p312 = scmp.eq.s32.totalorder %s28, 1
      %p313 = por %p311, %p312
      %p315 = scmp.ne.s32.totalorder %s298, %s314
      %p316 = scmp.eq.s32.totalorder %s28, 0
      %p317 = por %p315, %p316
      %p318 = scmp.le.s32.totalorder 1, %s22
      %p319 = scmp.lt.s32.totalorder %s22, 3
      %p320 = pnand %p318, %p319
      %p321 = pneg %p320
      // Predicated region
      $region9: #{tpu_custom_call.1} parent=5 // pred_check
        _
      $region10: #{tpu_custom_call.1} parent=5 // pred_check_branch
        %323 = sbr.rel (%p320) target = $region12
      $region11: #{tpu_custom_call.1} parent=5 // pred_region
        %s324 = ssub.s32 %s22, 1
        // Predicated region
        $region13: #{tpu_custom_call.1} parent=11 // pred_check
          %p325 = pneg %p95
        $region14: #{tpu_custom_call.1} parent=11 // pred_check_branch
          %327 = sbr.rel (%p325) target = $region16
        $region15: #{tpu_custom_call.1} parent=11 // pred_region
          %s329 = ssub.s32 16, 16
          %330 = vsyncadd [#allocation4], %s329
          %s332 = sshll.u32 %s2, 4
          %s333 = int_to_ptr.vmem [resolvable:$true] %s332
          %335 = dma.vmem_to_smem %s333, 16, [#allocation2], [#allocation4]
        $region16: #{tpu_custom_call.1} parent=11 // pred_fallthru
          _
        // Predicated region
        $region17: #{tpu_custom_call.1} parent=11 // pred_check
          %p336 = pneg %p116
        $region18: #{tpu_custom_call.1} parent=11 // pred_check_branch
          %338 = sbr.rel (%p336) target = $region20
        $region19: #{tpu_custom_call.1} parent=11 // pred_region
          _
        $region20: #{tpu_custom_call.1} parent=11 // pred_fallthru
          _
        // Predicated region
        $region21: #{tpu_custom_call.1} parent=11 // pred_check
          %p339 = pneg %p137
        $region22: #{tpu_custom_call.1} parent=11 // pred_check_branch
          %341 = sbr.rel (%p339) target = $region24
        $region23: #{tpu_custom_call.1} parent=11 // pred_region
          _
        $region24: #{tpu_custom_call.1} parent=11 // pred_fallthru
          _
        // Predicated region
        $region25: #{tpu_custom_call.1} parent=11 // pred_check
          %p342 = pneg %p158
        $region26: #{tpu_custom_call.1} parent=11 // pred_check_branch
          %344 = sbr.rel (%p342) target = $region28
        $region27: #{tpu_custom_call.1} parent=11 // pred_region
          _
        $region28: #{tpu_custom_call.1} parent=11 // pred_fallthru
          _
        // Predicated region
        $region29: #{tpu_custom_call.1} parent=11 // pred_check
          %p345 = pneg %p179
        $region30: #{tpu_custom_call.1} parent=11 // pred_check_branch
          %347 = sbr.rel (%p345) target = $region32
        $region31: #{tpu_custom_call.1} parent=11 // pred_region
          _
        $region32: #{tpu_custom_call.1} parent=11 // pred_fallthru
          _
        // Predicated region
        $region33: #{tpu_custom_call.1} parent=11 // pred_check
          %p348 = pneg %p200
        $region34: #{tpu_custom_call.1} parent=11 // pred_check_branch
          %350 = sbr.rel (%p348) target = $region36
        $region35: #{tpu_custom_call.1} parent=11 // pred_region
          _
        $region36: #{tpu_custom_call.1} parent=11 // pred_fallthru
          _
        // Predicated region
        $region37: #{tpu_custom_call.1} parent=11 // pred_check
          %p351 = pneg %p221
        $region38: #{tpu_custom_call.1} parent=11 // pred_check_branch
          %353 = sbr.rel (%p351) target = $region40
        $region39: #{tpu_custom_call.1} parent=11 // pred_region
          _
        $region40: #{tpu_custom_call.1} parent=11 // pred_fallthru
          _
        // Predicated region
        $region41: #{tpu_custom_call.1} parent=11 // pred_check
          %p354 = pneg %p242
        $region42: #{tpu_custom_call.1} parent=11 // pred_check_branch
          %356 = sbr.rel (%p354) target = $region44
        $region43: #{tpu_custom_call.1} parent=11 // pred_region
          _
        $region44: #{tpu_custom_call.1} parent=11 // pred_fallthru
          _
        // Predicated region
        $region45: #{tpu_custom_call.1} parent=11 // pred_check
          %p357 = pneg %p263
        $region46: #{tpu_custom_call.1} parent=11 // pred_check_branch
          %359 = sbr.rel (%p357) target = $region48
        $region47: #{tpu_custom_call.1} parent=11 // pred_region
          _
        $region48: #{tpu_custom_call.1} parent=11 // pred_fallthru
          _
        // Predicated region
        $region49: #{tpu_custom_call.1} parent=11 // pred_check
          %p360 = pneg %p284
        $region50: #{tpu_custom_call.1} parent=11 // pred_check_branch
          %362 = sbr.rel (%p360) target = $region52
        $region51: #{tpu_custom_call.1} parent=11 // pred_region
          _
        $region52: #{tpu_custom_call.1} parent=11 // pred_fallthru
          _
      $region12: #{tpu_custom_call.1} parent=5 // pred_fallthru
        _
      %p363 = scmp.lt.s32.totalorder %s22, 2
      // Predicated region
      $region53: #{tpu_custom_call.1} parent=5 // pred_check
        %p364 = pneg %p363
      $region54: #{tpu_custom_call.1} parent=5 // pred_check_branch
        %366 = sbr.rel (%p364) target = $region56
      $region55: #{tpu_custom_call.1} parent=5 // pred_region
        // Predicated region
        $region57: #{tpu_custom_call.1} parent=55 // pred_check
          %p367 = pneg %p42
        $region58: #{tpu_custom_call.1} parent=55 // pred_check_branch
          %369 = sbr.rel (%p367) target = $region60
        $region59: #{tpu_custom_call.1} parent=55 // pred_region
          %p370 = scmp.lt.s32.totalorder %s22, 1
          %s371 = scalar_select %p370, %s22, 1
          %s372 = smul.addr %s371, 4
          %s373 = scalar_lea.vmem %s0, %s372
        $region60: #{tpu_custom_call.1} parent=55 // pred_fallthru
          _
        // Predicated region
        $region61: #{tpu_custom_call.1} parent=55 // pred_check
          %p374 = pneg %p68
        $region62: #{tpu_custom_call.1} parent=55 // pred_check_branch
          %376 = sbr.rel (%p374) target = $region64
        $region63: #{tpu_custom_call.1} parent=55 // pred_region
          %p377 = scmp.lt.s32.totalorder %s22, 1
          %s378 = scalar_select %p377, %s22, 1
          %s379 = smul.addr %s378, 8
          %s380 = scalar_lea.vmem %s1, %s379
        $region64: #{tpu_custom_call.1} parent=55 // pred_fallthru
          _
      $region56: #{tpu_custom_call.1} parent=5 // pred_fallthru
        _
      %p381 = scmp.le.s32.totalorder 1, %s22
      %p382 = scmp.lt.s32.totalorder %s22, 3
      %p383 = pnand %p381, %p382
      %p384 = pneg %p383
      // Predicated region
      $region65: #{tpu_custom_call.1} parent=5 // pred_check
        _
      $region66: #{tpu_custom_call.1} parent=5 // pred_check_branch
        %386 = sbr.rel (%p383) target = $region68
      $region67: #{tpu_custom_call.1} parent=5 // pred_region
        %s387 = ssub.s32 %s22, 1
        // Predicated region
        $region69: #{tpu_custom_call.1} parent=67 // pred_check
          %p388 = pneg %p95
        $region70: #{tpu_custom_call.1} parent=67 // pred_check_branch
          %390 = sbr.rel (%p388) target = $region72
        $region71: #{tpu_custom_call.1} parent=67 // pred_region
          %391 = dma.done [#allocation4], 16
        $region72: #{tpu_custom_call.1} parent=67 // pred_fallthru
          _
        %392 = sfence
        %p393 = scmp.lt.s32.totalorder %s27, 1
        %s394 = scalar_select %p393, %s27, 1
        %s395 = smul.addr %s394, 4
        %s396 = scalar_lea.vmem %s0, %s395
        %p397 = pneg %p48
        %p398 = pneg %p45
        %p399 = scmp.lt.s32.totalorder %s27, 1
        %s400 = scalar_select %p399, %s27, 1
        %s401 = smul.addr %s400, 8
        %s402 = scalar_lea.vmem %s1, %s401
        %p403 = pneg %p74
        %p404 = pneg %p71
        %p405 = pneg %p95
        %p406 = pneg %p92
        %p407 = pneg %p116
        %p408 = pneg %p113
        %p409 = pneg %p137
        %p410 = pneg %p134
        %p411 = pneg %p158
        %p412 = pneg %p155
        %p413 = pneg %p179
        %p414 = pneg %p176
        %p415 = pneg %p200
        %p416 = pneg %p197
        %p417 = pneg %p221
        %p418 = pneg %p218
        %p419 = pneg %p242
        %p420 = pneg %p239
        %p421 = pneg %p263
        %p422 = pneg %p260
        %p423 = pneg %p284
        %p424 = pneg %p281
        %p425 = pneg %p310
        %p426 = pneg %p307
        %s427 = sand.u32 %s297, 1
        %s428 = scalar_lea.sflag [#allocation3], %s427
        %s429 = sand.u32 %s297, 1
        %s430 = smul.addr %s429, 4
        %s431 = scalar_lea.vmem [#allocation5], %s430
        %p432 = scmp.lt.s32.totalorder %s27, 1
        %s433 = scalar_select %p432, %s27, 1
        %s434 = smul.addr %s433, 4
        %s435 = scalar_lea.vmem %s0, %s434
        %p436 = scmp.lt.s32.totalorder %s27, 1
        %s437 = scalar_select %p436, %s27, 1
        %s438 = smul.addr %s437, 8
        %s439 = scalar_lea.vmem %s1, %s438
        %s441 = sld [smem:[#allocation2 + %s27]]
        %v442 = vld [vmem:[%s435] sm:$0xf]
        %v443 = vpack.c.bf16 %v442, %v442
        %v444 = vld [vmem:[%s439] sm:$0xff]
        %v445 = vld [vmem:[%s3] sm:$0xf]
        %v446 = vld [vmem:[%s3 + $0x4] sm:$0xf]
        %v447 = vld [vmem:[%s3 + $0x8] sm:$0xf]
        %v448 = vld [vmem:[%s3 + $0xc] sm:$0xf]
        %v449 = vld [vmem:[%s4] sm:$0xff]
        %v450 = vld [vmem:[%s4 + $0x8] sm:$0xff]
        %v451 = vld [vmem:[%s4 + $0x10] sm:$0xff]
        %v452 = vld [vmem:[%s4 + $0x18] sm:$0xff]
        %454 = vset.pattern.permute.xlu0 0
        %455 = vperm.xlu0 %454, %v449
        %v456 = vpop.permute.xlu0 %455
        %459 = vset.pattern.permute.xlu0 0
        %460 = vperm.xlu0 %459, %v450
        %v461 = vpop.permute.xlu0 %460
        %464 = vset.pattern.permute.xlu0 0
        %465 = vperm.xlu0 %464, %v451
        %v466 = vpop.permute.xlu0 %465
        %469 = vset.pattern.permute.xlu0 0
        %470 = vperm.xlu0 %469, %v452
        %v471 = vpop.permute.xlu0 %470
        %v477 = vunpack.c.l.b16 %v445
        %v478 = vunpack.c.l.b16 %v446
        %v479 = vunpack.c.l.b16 %v447
        %v480 = vunpack.c.l.b16 %v448
        %v481 = vpack.c.b16 %v478, %v477
        %v482 = vpack.c.b16 %v480, %v479
        %vm483 = vcmask 31744
        %v485 = vsel %vm483, %v481, 0
        %v488 = vsel %vm483, %v482, 0
        %vm490 = vcmask 1041408
        %v492 = vsel %vm490, %v443, 0
        %494 = vmatprep.subr.bf16.mxu0 0
        %495 = vmatpush1.bf16.msra.mxu0 %v492
        %496 = vmatprep.subr.bf16.mxu0 0
        %497 = vmatpush1.bf16.msra.mxu0 0
        %498 = vmatprep.subr.bf16.mxu0 0
        %499 = vmatpush1.bf16.msra.mxu0 0
        %500 = vmatprep.subr.bf16.mxu0 0
        %501 = vmatpush1.bf16.msra.mxu0 0
        %502 = vmatprep.subr.bf16.mxu0 0
        %503 = vmatpush1.bf16.msra.mxu0 0
        %504 = vmatprep.subr.bf16.mxu0 0
        %505 = vmatpush1.bf16.msra.mxu0 0
        %506 = vmatprep.subr.bf16.mxu0 0
        %507 = vmatpush1.bf16.msra.mxu0 0
        %508 = vmatprep.subr.bf16.mxu0 0
        %509 = vmatpush1.bf16.msra.mxu0 0
        %510 = vmatprep.subr.bf16.mxu0 0
        %511 = vmatpush1.bf16.msra.mxu0 0
        %512 = vmatprep.subr.bf16.mxu0 0
        %513 = vmatpush1.bf16.msra.mxu0 0
        %514 = vmatprep.subr.bf16.mxu0 0
        %515 = vmatpush1.bf16.msra.mxu0 0
        %516 = vmatprep.subr.bf16.mxu0 0
        %517 = vmatpush1.bf16.msra.mxu0 0
        %518 = vmatprep.subr.bf16.mxu0 0
        %519 = vmatpush1.bf16.msra.mxu0 0
        %520 = vmatprep.subr.bf16.mxu0 0
        %521 = vmatpush1.bf16.msra.mxu0 0
        %522 = vmatprep.subr.bf16.mxu0 0
        %523 = vmatpush1.bf16.msra.mxu0 0
        %524 = vmatprep.subr.bf16.mxu0 0
        %525 = vmatpush1.bf16.msra.mxu0 0
        %526 = vmatprep.mubr.bf16.mxu0 0
        %527 = vmatmul.mubr.bf16.gmra.mrb[0].mxu0 %v485
        %v528 = vpop.f32.mrb[0].mxu0
        %v529 = vadd.f32 %v456, %v528
        %v530 = vpop.f32.mrb[0].mxu0
        %v531 = vpop.f32.mrb[0].mxu0
        %v532 = vadd.f32 %v461, %v531
        %v533 = vpop.f32.mrb[0].mxu0
        %534 = vmatprep.mubr.bf16.mxu0 0
        %535 = vmatmul.mubr.bf16.gmra.mrb[0].mxu0 %v488
        %v536 = vpop.f32.mrb[0].mxu0
        %v537 = vadd.f32 %v466, %v536
        %v538 = vpop.f32.mrb[0].mxu0
        %v539 = vpop.f32.mrb[0].mxu0
        %v540 = vadd.f32 %v471, %v539
        %v541 = vpop.f32.mrb[0].mxu0
        %542 = vdwg.mxu0
        %v543 = vlaneseq
        %v544 = vand.u32 %v543, 127
        %vm545 = vcmp.ge.s32.totalorder %v544, 1
        %546 = vrot.lane.b32.xlu0 %v529, 1
        %v547 = vpop.permute.xlu0 %546
        %548 = vrot.lane.b32.xlu0 %v532, 1
        %v549 = vpop.permute.xlu0 %548
        %550 = vrot.lane.b32.xlu0 %v537, 1
        %v551 = vpop.permute.xlu0 %550
        %552 = vrot.lane.b32.xlu0 %v540, 1
        %v553 = vpop.permute.xlu0 %552
        %v554 = vsel %vm545, %v547, 0.0
        %v555 = vsel %vm545, %v549, 0.0
        %v556 = vsel %vm545, %v551, 0.0
        %v557 = vsel %vm545, %v553, 0.0
        %vm558 = vcmp.lt.s32.totalorder %v544, 127
        %559 = vrot.lane.b32.xlu0 %v529, 127
        %v560 = vpop.permute.xlu0 %559
        %561 = vrot.lane.b32.xlu0 %v532, 127
        %v562 = vpop.permute.xlu0 %561
        %563 = vrot.lane.b32.xlu0 %v537, 127
        %v564 = vpop.permute.xlu0 %563
        %565 = vrot.lane.b32.xlu0 %v540, 127
        %v566 = vpop.permute.xlu0 %565
        %v567 = vsel %vm558, %v560, 0.0
        %v568 = vsel %vm558, %v562, 0.0
        %v569 = vsel %vm558, %v564, 0.0
        %v570 = vsel %vm558, %v566, 0.0
        %v571 = vpack.c.bf16 %v555, %v554
        %v572 = vpack.c.bf16 %v557, %v556
        %v573 = vpack.c.bf16 %v532, %v529
        %v574 = vpack.c.bf16 %v540, %v537
        %v575 = vpack.c.bf16 %v568, %v567
        %v576 = vpack.c.bf16 %v570, %v569
        %v577 = vpack.c.bf16 %v444, %v444
        %v578 = vld [vmem:[%s5] sm:$0xf]
        %v579 = vld [vmem:[%s5 + $0x4] sm:$0xf]
        %v580 = vld [vmem:[%s5 + $0x8] sm:$0xf]
        %v581 = vld [vmem:[%s5 + $0xc] sm:$0xf]
        %v582 = vld [vmem:[%s5 + $0x10] sm:$0xf]
        %v583 = vld [vmem:[%s5 + $0x14] sm:$0xf]
        %v584 = vld [vmem:[%s5 + $0x18] sm:$0xf]
        %v585 = vld [vmem:[%s5 + $0x1c] sm:$0xf]
        %v586 = vld [vmem:[%s6] sm:$0xff]
        %v587 = vld [vmem:[%s6 + $0x8] sm:$0xff]
        %v588 = vld [vmem:[%s6 + $0x10] sm:$0xff]
        %v589 = vld [vmem:[%s6 + $0x18] sm:$0xff]
        %v590 = vld [vmem:[%s6 + $0x20] sm:$0xff]
        %v591 = vld [vmem:[%s6 + $0x28] sm:$0xff]
        %v592 = vld [vmem:[%s6 + $0x30] sm:$0xff]
        %v593 = vld [vmem:[%s6 + $0x38] sm:$0xff]
        %v594 = vstv %s441
        %v595 = vmul.f32 %v586, %v594
        %v596 = vmul.f32 %v587, %v594
        %v597 = vmul.f32 %v588, %v594
        %v598 = vmul.f32 %v589, %v594
        %v599 = vmul.f32 %v590, %v594
        %v600 = vmul.f32 %v591, %v594
        %v601 = vmul.f32 %v592, %v594
        %v602 = vmul.f32 %v593, %v594
        %v603 = vld [vmem:[%s7] sm:$0xff]
        %v604 = vld [vmem:[%s7 + $0x8] sm:$0xff]
        %v605 = vld [vmem:[%s7 + $0x10] sm:$0xff]
        %v606 = vld [vmem:[%s7 + $0x18] sm:$0xff]
        %v607 = vld [vmem:[%s7 + $0x20] sm:$0xff]
        %v608 = vld [vmem:[%s7 + $0x28] sm:$0xff]
        %v609 = vld [vmem:[%s7 + $0x30] sm:$0xff]
        %v610 = vld [vmem:[%s7 + $0x38] sm:$0xff]
        %v611 = vadd.f32 %v595, %v603
        %v612 = vadd.f32 %v596, %v604
        %v613 = vadd.f32 %v597, %v605
        %v614 = vadd.f32 %v598, %v606
        %v615 = vadd.f32 %v599, %v607
        %v616 = vadd.f32 %v600, %v608
        %v617 = vadd.f32 %v601, %v609
        %v618 = vadd.f32 %v602, %v610
        %620 = vset.pattern.permute.xlu0 0
        %621 = vperm.xlu0 %620, %v611
        %v622 = vpop.permute.xlu0 %621
        %625 = vset.pattern.permute.xlu0 0
        %626 = vperm.xlu0 %625, %v612
        %v627 = vpop.permute.xlu0 %626
        %630 = vset.pattern.permute.xlu0 0
        %631 = vperm.xlu0 %630, %v613
        %v632 = vpop.permute.xlu0 %631
        %635 = vset.pattern.permute.xlu0 0
        %636 = vperm.xlu0 %635, %v614
        %v637 = vpop.permute.xlu0 %636
        %640 = vset.pattern.permute.xlu0 0
        %641 = vperm.xlu0 %640, %v615
        %v642 = vpop.permute.xlu0 %641
        %645 = vset.pattern.permute.xlu0 0
        %646 = vperm.xlu0 %645, %v616
        %v647 = vpop.permute.xlu0 %646
        %650 = vset.pattern.permute.xlu0 0
        %651 = vperm.xlu0 %650, %v617
        %v652 = vpop.permute.xlu0 %651
        %655 = vset.pattern.permute.xlu0 0
        %656 = vperm.xlu0 %655, %v618
        %v657 = vpop.permute.xlu0 %656
        %v667 = vunpack.c.l.b16 %v578
        %v668 = vunpack.c.l.b16 %v579
        %v669 = vunpack.c.l.b16 %v580
        %v670 = vunpack.c.l.b16 %v581
        %v671 = vunpack.c.l.b16 %v582
        %v672 = vunpack.c.l.b16 %v583
        %v673 = vunpack.c.l.b16 %v584
        %v674 = vunpack.c.l.b16 %v585
        %v675 = vpack.c.b16 %v668, %v667
        %v676 = vpack.c.b16 %v670, %v669
        %v677 = vpack.c.b16 %v672, %v671
        %v678 = vpack.c.b16 %v674, %v673
        %vm679 = vcmask 850944
        %v681 = vsel %vm679, %v675, 0
        %v684 = vsel %vm679, %v676, 0
        %v687 = vsel %vm679, %v677, 0
        %v690 = vsel %vm679, %v678, 0
        %vm692 = vcmask 1043456
        %v694 = vsel %vm692, %v577, 0
        %696 = vmatprep.subr.bf16.mxu0 0
        %697 = vmatpush1.bf16.msra.mxu0 %v571
        %698 = vmatprep.subr.bf16.mxu0 0
        %699 = vmatpush1.bf16.msra.mxu0 %v572
        %700 = vmatprep.subr.bf16.mxu0 0
        %701 = vmatpush1.bf16.msra.mxu0 %v573
        %702 = vmatprep.subr.bf16.mxu0 0
        %703 = vmatpush1.bf16.msra.mxu0 %v574
        %704 = vmatprep.subr.bf16.mxu0 0
        %705 = vmatpush1.bf16.msra.mxu0 %v575
        %706 = vmatprep.subr.bf16.mxu0 0
        %707 = vmatpush1.bf16.msra.mxu0 %v576
        %708 = vmatprep.subr.bf16.mxu0 0
        %709 = vmatpush1.bf16.msra.mxu0 %v694
        %710 = vmatprep.subr.bf16.mxu0 0
        %711 = vmatpush1.bf16.msra.mxu0 0
        %712 = vmatprep.subr.bf16.mxu0 0
        %713 = vmatpush1.bf16.msra.mxu0 0
        %714 = vmatprep.subr.bf16.mxu0 0
        %715 = vmatpush1.bf16.msra.mxu0 0
        %716 = vmatprep.subr.bf16.mxu0 0
        %717 = vmatpush1.bf16.msra.mxu0 0
        %718 = vmatprep.subr.bf16.mxu0 0
        %719 = vmatpush1.bf16.msra.mxu0 0
        %720 = vmatprep.subr.bf16.mxu0 0
        %721 = vmatpush1.bf16.msra.mxu0 0
        %722 = vmatprep.subr.bf16.mxu0 0
        %723 = vmatpush1.bf16.msra.mxu0 0
        %724 = vmatprep.subr.bf16.mxu0 0
        %725 = vmatpush1.bf16.msra.mxu0 0
        %726 = vmatprep.subr.bf16.mxu0 0
        %727 = vmatpush1.bf16.msra.mxu0 0
        %728 = vmatprep.mubr.bf16.mxu0 0
        %729 = vmatmul.mubr.bf16.gmra.mrb[0].mxu0 %v681
        %v730 = vpop.f32.mrb[0].mxu0
        %v731 = vadd.f32 %v622, %v730
        %v732 = vpop.f32.mrb[0].mxu0
        %v733 = vpop.f32.mrb[0].mxu0
        %v734 = vadd.f32 %v627, %v733
        %v735 = vpop.f32.mrb[0].mxu0
        %736 = vmatprep.mubr.bf16.mxu0 0
        %737 = vmatmul.mubr.bf16.gmra.mrb[0].mxu0 %v684
        %v738 = vpop.f32.mrb[0].mxu0
        %v739 = vadd.f32 %v632, %v738
        %v740 = vpop.f32.mrb[0].mxu0
        %v741 = vpop.f32.mrb[0].mxu0
        %v742 = vadd.f32 %v637, %v741
        %v743 = vpop.f32.mrb[0].mxu0
        %744 = vmatprep.mubr.bf16.mxu0 0
        %745 = vmatmul.mubr.bf16.gmra.mrb[0].mxu0 %v687
        %v746 = vpop.f32.mrb[0].mxu0
        %v747 = vadd.f32 %v642, %v746
        %v748 = vpop.f32.mrb[0].mxu0
        %v749 = vpop.f32.mrb[0].mxu0
        %v750 = vadd.f32 %v647, %v749
        %v751 = vpop.f32.mrb[0].mxu0
        %752 = vmatprep.mubr.bf16.mxu0 0
        %753 = vmatmul.mubr.bf16.gmra.mrb[0].mxu0 %v690
        %v754 = vpop.f32.mrb[0].mxu0
        %v755 = vadd.f32 %v652, %v754
        %v756 = vpop.f32.mrb[0].mxu0
        %v757 = vpop.f32.mrb[0].mxu0
        %v758 = vadd.f32 %v657, %v757
        %v759 = vpop.f32.mrb[0].mxu0
        %760 = vdwg.mxu0
        %v761 = vtanh.pop %v731
        %v762 = vtanh.pop %v734
        %v763 = vtanh.pop %v739
        %v764 = vtanh.pop %v742
        %v765 = vxor.u32 %v747, 2147483648
        %v766 = vxor.u32 %v750, 2147483648
        %v767 = vxor.u32 %v755, 2147483648
        %v768 = vxor.u32 %v758, 2147483648
        %v769 = vmul.f32 %v765, 1.442695
        %v770 = vpow.pop %v769
        %v771 = vmul.f32 %v766, 1.442695
        %v772 = vpow.pop %v771
        %v773 = vmul.f32 %v767, 1.442695
        %v774 = vpow.pop %v773
        %v775 = vmul.f32 %v768, 1.442695
        %v776 = vpow.pop %v775
        %v777 = vadd.f32 %v770, 1.0
        %v778 = vadd.f32 %v772, 1.0
        %v779 = vadd.f32 %v774, 1.0
        %v780 = vadd.f32 %v776, 1.0
        %v781 = vrcp.pop %v777
        %v782 = vmul.f32 1.0, %v781
        %v783 = vrcp.pop %v778
        %v784 = vmul.f32 1.0, %v783
        %v785 = vrcp.pop %v779
        %v786 = vmul.f32 1.0, %v785
        %v787 = vrcp.pop %v780
        %v788 = vmul.f32 1.0, %v787
        %v789 = vmul.f32 %v761, %v782
        %v790 = vmul.f32 %v762, %v784
        %v791 = vmul.f32 %v763, %v786
        %v792 = vmul.f32 %v764, %v788
        %v793 = vld [vmem:[%s8] sm:$0xf]
        %v794 = vld [vmem:[%s8 + $0x4] sm:$0xf]
        %v795 = vld [vmem:[%s8 + $0x8] sm:$0xf]
        %v796 = vld [vmem:[%s8 + $0xc] sm:$0xf]
        %v797 = vld [vmem:[%s8 + $0x10] sm:$0xf]
        %v798 = vld [vmem:[%s8 + $0x14] sm:$0xf]
        %v799 = vld [vmem:[%s8 + $0x18] sm:$0xf]
        %v800 = vld [vmem:[%s8 + $0x1c] sm:$0xf]
        %v801 = vpack.c.bf16 %v790, %v789
        %v802 = vpack.c.bf16 %v792, %v791
        %v803 = vld [vmem:[%s9] sm:$0xff]
        %v804 = vld [vmem:[%s9 + $0x8] sm:$0xff]
        %v805 = vld [vmem:[%s9 + $0x10] sm:$0xff]
        %v806 = vld [vmem:[%s9 + $0x18] sm:$0xff]
        %v807 = vld [vmem:[%s9 + $0x20] sm:$0xff]
        %v808 = vld [vmem:[%s9 + $0x28] sm:$0xff]
        %v809 = vld [vmem:[%s9 + $0x30] sm:$0xff]
        %v810 = vld [vmem:[%s9 + $0x38] sm:$0xff]
        %812 = vset.pattern.permute.xlu0 0
        %813 = vperm.xlu0 %812, %v803
        %v814 = vpop.permute.xlu0 %813
        %817 = vset.pattern.permute.xlu0 0
        %818 = vperm.xlu0 %817, %v804
        %v819 = vpop.permute.xlu0 %818
        %822 = vset.pattern.permute.xlu0 0
        %823 = vperm.xlu0 %822, %v805
        %v824 = vpop.permute.xlu0 %823
        %827 = vset.pattern.permute.xlu0 0
        %828 = vperm.xlu0 %827, %v806
        %v829 = vpop.permute.xlu0 %828
        %832 = vset.pattern.permute.xlu0 0
        %833 = vperm.xlu0 %832, %v807
        %v834 = vpop.permute.xlu0 %833
        %837 = vset.pattern.permute.xlu0 0
        %838 = vperm.xlu0 %837, %v808
        %v839 = vpop.permute.xlu0 %838
        %842 = vset.pattern.permute.xlu0 0
        %843 = vperm.xlu0 %842, %v809
        %v844 = vpop.permute.xlu0 %843
        %847 = vset.pattern.permute.xlu0 0
        %848 = vperm.xlu0 %847, %v810
        %v849 = vpop.permute.xlu0 %848
        %v859 = vunpack.c.l.b16 %v793
        %v860 = vunpack.c.l.b16 %v794
        %v861 = vunpack.c.l.b16 %v795
        %v862 = vunpack.c.l.b16 %v796
        %v863 = vunpack.c.l.b16 %v797
        %v864 = vunpack.c.l.b16 %v798
        %v865 = vunpack.c.l.b16 %v799
        %v866 = vunpack.c.l.b16 %v800
        %v867 = vpack.c.b16 %v860, %v859
        %v868 = vpack.c.b16 %v862, %v861
        %v869 = vpack.c.b16 %v864, %v863
        %v870 = vpack.c.b16 %v866, %v865
        %vm871 = vcmask 261120
        %v873 = vsel %vm871, %v867, 0
        %v876 = vsel %vm871, %v868, 0
        %v879 = vsel %vm871, %v869, 0
        %v882 = vsel %vm871, %v870, 0
        %884 = vmatprep.subr.bf16.mxu0 0
        %885 = vmatpush1.bf16.msra.mxu0 %v801
        %886 = vmatprep.subr.bf16.mxu0 0
        %887 = vmatpush1.bf16.msra.mxu0 %v802
        %888 = vmatprep.subr.bf16.mxu0 0
        %889 = vmatpush1.bf16.msra.mxu0 0
        %890 = vmatprep.subr.bf16.mxu0 0
        %891 = vmatpush1.bf16.msra.mxu0 0
        %892 = vmatprep.subr.bf16.mxu0 0
        %893 = vmatpush1.bf16.msra.mxu0 0
        %894 = vmatprep.subr.bf16.mxu0 0
        %895 = vmatpush1.bf16.msra.mxu0 0
        %896 = vmatprep.subr.bf16.mxu0 0
        %897 = vmatpush1.bf16.msra.mxu0 0
        %898 = vmatprep.subr.bf16.mxu0 0
        %899 = vmatpush1.bf16.msra.mxu0 0
        %900 = vmatprep.subr.bf16.mxu0 0
        %901 = vmatpush1.bf16.msra.mxu0 0
        %902 = vmatprep.subr.bf16.mxu0 0
        %903 = vmatpush1.bf16.msra.mxu0 0
        %904 = vmatprep.subr.bf16.mxu0 0
        %905 = vmatpush1.bf16.msra.mxu0 0
        %906 = vmatprep.subr.bf16.mxu0 0
        %907 = vmatpush1.bf16.msra.mxu0 0
        %908 = vmatprep.subr.bf16.mxu0 0
        %909 = vmatpush1.bf16.msra.mxu0 0
        %910 = vmatprep.subr.bf16.mxu0 0
        %911 = vmatpush1.bf16.msra.mxu0 0
        %912 = vmatprep.subr.bf16.mxu0 0
        %913 = vmatpush1.bf16.msra.mxu0 0
        %914 = vmatprep.subr.bf16.mxu0 0
        %915 = vmatpush1.bf16.msra.mxu0 0
        %916 = vmatprep.mubr.bf16.mxu0 0
        %917 = vmatmul.mubr.bf16.gmra.mrb[0].mxu0 %v873
        %v918 = vpop.f32.mrb[0].mxu0
        %v919 = vadd.f32 %v814, %v918
        %v920 = vpop.f32.mrb[0].mxu0
        %v921 = vpop.f32.mrb[0].mxu0
        %v922 = vadd.f32 %v819, %v921
        %v923 = vpop.f32.mrb[0].mxu0
        %924 = vmatprep.mubr.bf16.mxu0 0
        %925 = vmatmul.mubr.bf16.gmra.mrb[0].mxu0 %v876
        %v926 = vpop.f32.mrb[0].mxu0
        %v927 = vadd.f32 %v824, %v926
        %v928 = vpop.f32.mrb[0].mxu0
        %v929 = vpop.f32.mrb[0].mxu0
        %v930 = vadd.f32 %v829, %v929
        %v931 = vpop.f32.mrb[0].mxu0
        %932 = vmatprep.mubr.bf16.mxu0 0
        %933 = vmatmul.mubr.bf16.gmra.mrb[0].mxu0 %v879
        %v934 = vpop.f32.mrb[0].mxu0
        %v935 = vadd.f32 %v834, %v934
        %v936 = vpop.f32.mrb[0].mxu0
        %v937 = vpop.f32.mrb[0].mxu0
        %v938 = vadd.f32 %v839, %v937
        %v939 = vpop.f32.mrb[0].mxu0
        %940 = vmatprep.mubr.bf16.mxu0 0
        %941 = vmatmul.mubr.bf16.gmra.mrb[0].mxu0 %v882
        %v942 = vpop.f32.mrb[0].mxu0
        %v943 = vadd.f32 %v844, %v942
        %v944 = vpop.f32.mrb[0].mxu0
        %v945 = vpop.f32.mrb[0].mxu0
        %v946 = vadd.f32 %v849, %v945
        %v947 = vpop.f32.mrb[0].mxu0
        %948 = vdwg.mxu0
        %v949 = vadd.f32 %v529, %v919
        %v950 = vadd.f32 %v532, %v922
        %v951 = vadd.f32 %v537, %v927
        %v952 = vadd.f32 %v540, %v930
        %v953 = vadd.f32 %v935, 0.0
        %v954 = vadd.f32 %v938, 0.0
        %v955 = vadd.f32 %v943, 0.0
        %v956 = vadd.f32 %v946, 0.0
        %vm957 = vcmp.ge.s32.totalorder %v544, 2
        %958 = vrot.lane.b32.xlu0 %v949, 2
        %v959 = vpop.permute.xlu0 %958
        %960 = vrot.lane.b32.xlu0 %v950, 2
        %v961 = vpop.permute.xlu0 %960
        %962 = vrot.lane.b32.xlu0 %v951, 2
        %v963 = vpop.permute.xlu0 %962
        %964 = vrot.lane.b32.xlu0 %v952, 2
        %v965 = vpop.permute.xlu0 %964
        %v966 = vsel %vm957, %v959, 0.0
        %v967 = vsel %vm957, %v961, 0.0
        %v968 = vsel %vm957, %v963, 0.0
        %v969 = vsel %vm957, %v965, 0.0
        %vm970 = vcmp.lt.s32.totalorder %v544, 126
        %971 = vrot.lane.b32.xlu0 %v949, 126
        %v972 = vpop.permute.xlu0 %971
        %973 = vrot.lane.b32.xlu0 %v950, 126
        %v974 = vpop.permute.xlu0 %973
        %975 = vrot.lane.b32.xlu0 %v951, 126
        %v976 = vpop.permute.xlu0 %975
        %977 = vrot.lane.b32.xlu0 %v952, 126
        %v978 = vpop.permute.xlu0 %977
        %v979 = vsel %vm970, %v972, 0.0
        %v980 = vsel %vm970, %v974, 0.0
        %v981 = vsel %vm970, %v976, 0.0
        %v982 = vsel %vm970, %v978, 0.0
        %v983 = vpack.c.bf16 %v967, %v966
        %v984 = vpack.c.bf16 %v969, %v968
        %v985 = vpack.c.bf16 %v950, %v949
        %v986 = vpack.c.bf16 %v952, %v951
        %v987 = vpack.c.bf16 %v980, %v979
        %v988 = vpack.c.bf16 %v982, %v981
        %s989 = scalar_lea.vmem %s5, 32
        %v990 = vld [vmem:[%s989] sm:$0xf]
        %v991 = vld [vmem:[%s989 + $0x4] sm:$0xf]
        %v992 = vld [vmem:[%s989 + $0x8] sm:$0xf]
        %v993 = vld [vmem:[%s989 + $0xc] sm:$0xf]
        %v994 = vld [vmem:[%s989 + $0x10] sm:$0xf]
        %v995 = vld [vmem:[%s989 + $0x14] sm:$0xf]
        %v996 = vld [vmem:[%s989 + $0x18] sm:$0xf]
        %v997 = vld [vmem:[%s989 + $0x1c] sm:$0xf]
        %s998 = scalar_lea.vmem %s6, 64
        %v999 = vld [vmem:[%s998] sm:$0xff]
        %v1000 = vld [vmem:[%s998 + $0x8] sm:$0xff]
        %v1001 = vld [vmem:[%s998 + $0x10] sm:$0xff]
        %v1002 = vld [vmem:[%s998 + $0x18] sm:$0xff]
        %v1003 = vld [vmem:[%s998 + $0x20] sm:$0xff]
        %v1004 = vld [vmem:[%s998 + $0x28] sm:$0xff]
        %v1005 = vld [vmem:[%s998 + $0x30] sm:$0xff]
        %v1006 = vld [vmem:[%s998 + $0x38] sm:$0xff]
        %v1007 = vmul.f32 %v999, %v594
        %v1008 = vmul.f32 %v1000, %v594
        %v1009 = vmul.f32 %v1001, %v594
        %v1010 = vmul.f32 %v1002, %v594
        %v1011 = vmul.f32 %v1003, %v594
        %v1012 = vmul.f32 %v1004, %v594
        %v1013 = vmul.f32 %v1005, %v594
        %v1014 = vmul.f32 %v1006, %v594
        %s1015 = scalar_lea.vmem %s7, 64
        %v1016 = vld [vmem:[%s1015] sm:$0xff]
        %v1017 = vld [vmem:[%s1015 + $0x8] sm:$0xff]
        %v1018 = vld [vmem:[%s1015 + $0x10] sm:$0xff]
        %v1019 = vld [vmem:[%s1015 + $0x18] sm:$0xff]
        %v1020 = vld [vmem:[%s1015 + $0x20] sm:$0xff]
        %v1021 = vld [vmem:[%s1015 + $0x28] sm:$0xff]
        %v1022 = vld [vmem:[%s1015 + $0x30] sm:$0xff]
        %v1023 = vld [vmem:[%s1015 + $0x38] sm:$0xff]
        %v1024 = vadd.f32 %v1007, %v1016
        %v1025 = vadd.f32 %v1008, %v1017
        %v1026 = vadd.f32 %v1009, %v1018
        %v1027 = vadd.f32 %v1010, %v1019
        %v1028 = vadd.f32 %v1011, %v1020
        %v1029 = vadd.f32 %v1012, %v1021
        %v1030 = vadd.f32 %v1013, %v1022
        %v1031 = vadd.f32 %v1014, %v1023
        %1033 = vset.pattern.permute.xlu0 0
        %1034 = vperm.xlu0 %1033, %v1024
        %v1035 = vpop.permute.xlu0 %1034
        %1038 = vset.pattern.permute.xlu0 0
        %1039 = vperm.xlu0 %1038, %v1025
        %v1040 = vpop.permute.xlu0 %1039
        %1043 = vset.pattern.permute.xlu0 0
        %1044 = vperm.xlu0 %1043, %v1026
        %v1045 = vpop.permute.xlu0 %1044
        %1048 = vset.pattern.permute.xlu0 0
        %1049 = vperm.xlu0 %1048, %v1027
        %v1050 = vpop.permute.xlu0 %1049
        %1053 = vset.pattern.permute.xlu0 0
        %1054 = vperm.xlu0 %1053, %v1028
        %v1055 = vpop.permute.xlu0 %1054
        %1058 = vset.pattern.permute.xlu0 0
        %1059 = vperm.xlu0 %1058, %v1029
        %v1060 = vpop.permute.xlu0 %1059
        %1063 = vset.pattern.permute.xlu0 0
        %1064 = vperm.xlu0 %1063, %v1030
        %v1065 = vpop.permute.xlu0 %1064
        %1068 = vset.pattern.permute.xlu0 0
        %1069 = vperm.xlu0 %1068, %v1031
        %v1070 = vpop.permute.xlu0 %1069
        %v1080 = vunpack.c.l.b16 %v990
        %v1081 = vunpack.c.l.b16 %v991
        %v1082 = vunpack.c.l.b16 %v992
        %v1083 = vunpack.c.l.b16 %v993
        %v1084 = vunpack.c.l.b16 %v994
        %v1085 = vunpack.c.l.b16 %v995
        %v1086 = vunpack.c.l.b16 %v996
        %v1087 = vunpack.c.l.b16 %v997
        %v1088 = vpack.c.b16 %v1081, %v1080
        %v1089 = vpack.c.b16 %v1083, %v1082
        %v1090 = vpack.c.b16 %v1085, %v1084
        %v1091 = vpack.c.b16 %v1087, %v1086
        %v1093 = vsel %vm679, %v1088, 0
        %v1096 = vsel %vm679, %v1089, 0
        %v1099 = vsel %vm679, %v1090, 0
        %v1102 = vsel %vm679, %v1091, 0
        %1104 = vmatprep.subr.bf16.mxu0 0
        %1105 = vmatpush1.bf16.msra.mxu0 %v983
        %1106 = vmatprep.subr.bf16.mxu0 0
        %1107 = vmatpush1.bf16.msra.mxu0 %v984
        %1108 = vmatprep.subr.bf16.mxu0 0
        %1109 = vmatpush1.bf16.msra.mxu0 %v985
        %1110 = vmatprep.subr.bf16.mxu0 0
        %1111 = vmatpush1.bf16.msra.mxu0 %v986
        %1112 = vmatprep.subr.bf16.mxu0 0
        %1113 = vmatpush1.bf16.msra.mxu0 %v987
        %1114 = vmatprep.subr.bf16.mxu0 0
        %1115 = vmatpush1.bf16.msra.mxu0 %v988
        %1116 = vmatprep.subr.bf16.mxu0 0
        %1117 = vmatpush1.bf16.msra.mxu0 %v694
        %1118 = vmatprep.subr.bf16.mxu0 0
        %1119 = vmatpush1.bf16.msra.mxu0 0
        %1120 = vmatprep.subr.bf16.mxu0 0
        %1121 = vmatpush1.bf16.msra.mxu0 0
        %1122 = vmatprep.subr.bf16.mxu0 0
        %1123 = vmatpush1.bf16.msra.mxu0 0
        %1124 = vmatprep.subr.bf16.mxu0 0
        %1125 = vmatpush1.bf16.msra.mxu0 0
        %1126 = vmatprep.subr.bf16.mxu0 0
        %1127 = vmatpush1.bf16.msra.mxu0 0
        %1128 = vmatprep.subr.bf16.mxu0 0
        %1129 = vmatpush1.bf16.msra.mxu0 0
        %1130 = vmatprep.subr.bf16.mxu0 0
        %1131 = vmatpush1.bf16.msra.mxu0 0
        %1132 = vmatprep.subr.bf16.mxu0 0
        %1133 = vmatpush1.bf16.msra.mxu0 0
        %1134 = vmatprep.subr.bf16.mxu0 0
        %1135 = vmatpush1.bf16.msra.mxu0 0
        %1136 = vmatprep.mubr.bf16.mxu0 0
        %1137 = vmatmul.mubr.bf16.gmra.mrb[0].mxu0 %v1093
        %v1138 = vpop.f32.mrb[0].mxu0
        %v1139 = vadd.f32 %v1035, %v1138
        %v1140 = vpop.f32.mrb[0].mxu0
        %v1141 = vpop.f32.mrb[0].mxu0
        %v1142 = vadd.f32 %v1040, %v1141
        %v1143 = vpop.f32.mrb[0].mxu0
        %1144 = vmatprep.mubr.bf16.mxu0 0
        %1145 = vmatmul.mubr.bf16.gmra.mrb[0].mxu0 %v1096
        %v1146 = vpop.f32.mrb[0].mxu0
        %v1147 = vadd.f32 %v1045, %v1146
        %v1148 = vpop.f32.mrb[0].mxu0
        %v1149 = vpop.f32.mrb[0].mxu0
        %v1150 = vadd.f32 %v1050, %v1149
        %v1151 = vpop.f32.mrb[0].mxu0
        %1152 = vmatprep.mubr.bf16.mxu0 0
        %1153 = vmatmul.mubr.bf16.gmra.mrb[0].mxu0 %v1099
        %v1154 = vpop.f32.mrb[0].mxu0
        %v1155 = vadd.f32 %v1055, %v1154
        %v1156 = vpop.f32.mrb[0].mxu0
        %v1157 = vpop.f32.mrb[0].mxu0
        %v1158 = vadd.f32 %v1060, %v1157
        %v1159 = vpop.f32.mrb[0].mxu0
        %1160 = vmatprep.mubr.bf16.mxu0 0
        %1161 = vmatmul.mubr.bf16.gmra.mrb[0].mxu0 %v1102
        %v1162 = vpop.f32.mrb[0].mxu0
        %v1163 = vadd.f32 %v1065, %v1162
        %v1164 = vpop.f32.mrb[0].mxu0
        %v1165 = vpop.f32.mrb[0].mxu0
        %v1166 = vadd.f32 %v1070, %v1165
        %v1167 = vpop.f32.mrb[0].mxu0
        %1168 = vdwg.mxu0
        %v1169 = vtanh.pop %v1139
        %v1170 = vtanh.pop %v1142
        %v1171 = vtanh.pop %v1147
        %v1172 = vtanh.pop %v1150
        %v1173 = vxor.u32 %v1155, 2147483648
        %v1174 = vxor.u32 %v1158, 2147483648
        %v1175 = vxor.u32 %v1163, 2147483648
        %v1176 = vxor.u32 %v1166, 2147483648
        %v1177 = vmul.f32 %v1173, 1.442695
        %v1178 = vpow.pop %v1177
        %v1179 = vmul.f32 %v1174, 1.442695
        %v1180 = vpow.pop %v1179
        %v1181 = vmul.f32 %v1175, 1.442695
        %v1182 = vpow.pop %v1181
        %v1183 = vmul.f32 %v1176, 1.442695
        %v1184 = vpow.pop %v1183
        %v1185 = vadd.f32 %v1178, 1.0
        %v1186 = vadd.f32 %v1180, 1.0
        %v1187 = vadd.f32 %v1182, 1.0
        %v1188 = vadd.f32 %v1184, 1.0
        %v1189 = vrcp.pop %v1185
        %v1190 = vmul.f32 1.0, %v1189
        %v1191 = vrcp.pop %v1186
        %v1192 = vmul.f32 1.0, %v1191
        %v1193 = vrcp.pop %v1187
        %v1194 = vmul.f32 1.0, %v1193
        %v1195 = vrcp.pop %v1188
        %v1196 = vmul.f32 1.0, %v1195
        %v1197 = vmul.f32 %v1169, %v1190
        %v1198 = vmul.f32 %v1170, %v1192
        %v1199 = vmul.f32 %v1171, %v1194
        %v1200 = vmul.f32 %v1172, %v1196
        %s1201 = scalar_lea.vmem %s8, 32
        %v1202 = vld [vmem:[%s1201] sm:$0xf]
        %v1203 = vld [vmem:[%s1201 + $0x4] sm:$0xf]
        %v1204 = vld [vmem:[%s1201 + $0x8] sm:$0xf]
        %v1205 = vld [vmem:[%s1201 + $0xc] sm:$0xf]
        %v1206 = vld [vmem:[%s1201 + $0x10] sm:$0xf]
        %v1207 = vld [vmem:[%s1201 + $0x14] sm:$0xf]
        %v1208 = vld [vmem:[%s1201 + $0x18] sm:$0xf]
        %v1209 = vld [vmem:[%s1201 + $0x1c] sm:$0xf]
        %v1210 = vpack.c.bf16 %v1198, %v1197
        %v1211 = vpack.c.bf16 %v1200, %v1199
        %s1212 = scalar_lea.vmem %s9, 64
        %v1213 = vld [vmem:[%s1212] sm:$0xff]
        %v1214 = vld [vmem:[%s1212 + $0x8] sm:$0xff]
        %v1215 = vld [vmem:[%s1212 + $0x10] sm:$0xff]
        %v1216 = vld [vmem:[%s1212 + $0x18] sm:$0xff]
        %v1217 = vld [vmem:[%s1212 + $0x20] sm:$0xff]
        %v1218 = vld [vmem:[%s1212 + $0x28] sm:$0xff]
        %v1219 = vld [vmem:[%s1212 + $0x30] sm:$0xff]
        %v1220 = vld [vmem:[%s1212 + $0x38] sm:$0xff]
        %1222 = vset.pattern.permute.xlu0 0
        %1223 = vperm.xlu0 %1222, %v1213
        %v1224 = vpop.permute.xlu0 %1223
        %1227 = vset.pattern.permute.xlu0 0
        %1228 = vperm.xlu0 %1227, %v1214
        %v1229 = vpop.permute.xlu0 %1228
        %1232 = vset.pattern.permute.xlu0 0
        %1233 = vperm.xlu0 %1232, %v1215
        %v1234 = vpop.permute.xlu0 %1233
        %1237 = vset.pattern.permute.xlu0 0
        %1238 = vperm.xlu0 %1237, %v1216
        %v1239 = vpop.permute.xlu0 %1238
        %1242 = vset.pattern.permute.xlu0 0
        %1243 = vperm.xlu0 %1242, %v1217
        %v1244 = vpop.permute.xlu0 %1243
        %1247 = vset.pattern.permute.xlu0 0
        %1248 = vperm.xlu0 %1247, %v1218
        %v1249 = vpop.permute.xlu0 %1248
        %1252 = vset.pattern.permute.xlu0 0
        %1253 = vperm.xlu0 %1252, %v1219
        %v1254 = vpop.permute.xlu0 %1253
        %1257 = vset.pattern.permute.xlu0 0
        %1258 = vperm.xlu0 %1257, %v1220
        %v1259 = vpop.permute.xlu0 %1258
        %v1269 = vunpack.c.l.b16 %v1202
        %v1270 = vunpack.c.l.b16 %v1203
        %v1271 = vunpack.c.l.b16 %v1204
        %v1272 = vunpack.c.l.b16 %v1205
        %v1273 = vunpack.c.l.b16 %v1206
        %v1274 = vunpack.c.l.b16 %v1207
        %v1275 = vunpack.c.l.b16 %v1208
        %v1276 = vunpack.c.l.b16 %v1209
        %v1277 = vpack.c.b16 %v1270, %v1269
        %v1278 = vpack.c.b16 %v1272, %v1271
        %v1279 = vpack.c.b16 %v1274, %v1273
        %v1280 = vpack.c.b16 %v1276, %v1275
        %v1282 = vsel %vm871, %v1277, 0
        %v1285 = vsel %vm871, %v1278, 0
        %v1288 = vsel %vm871, %v1279, 0
        %v1291 = vsel %vm871, %v1280, 0
        %1293 = vmatprep.subr.bf16.mxu0 0
        %1294 = vmatpush1.bf16.msra.mxu0 %v1210
        %1295 = vmatprep.subr.bf16.mxu0 0
        %1296 = vmatpush1.bf16.msra.mxu0 %v1211
        %1297 = vmatprep.subr.bf16.mxu0 0
        %1298 = vmatpush1.bf16.msra.mxu0 0
        %1299 = vmatprep.subr.bf16.mxu0 0
        %1300 = vmatpush1.bf16.msra.mxu0 0
        %1301 = vmatprep.subr.bf16.mxu0 0
        %1302 = vmatpush1.bf16.msra.mxu0 0
        %1303 = vmatprep.subr.bf16.mxu0 0
        %1304 = vmatpush1.bf16.msra.mxu0 0
        %1305 = vmatprep.subr.bf16.mxu0 0
        %1306 = vmatpush1.bf16.msra.mxu0 0
        %1307 = vmatprep.subr.bf16.mxu0 0
        %1308 = vmatpush1.bf16.msra.mxu0 0
        %1309 = vmatprep.subr.bf16.mxu0 0
        %1310 = vmatpush1.bf16.msra.mxu0 0
        %1311 = vmatprep.subr.bf16.mxu0 0
        %1312 = vmatpush1.bf16.msra.mxu0 0
        %1313 = vmatprep.subr.bf16.mxu0 0
        %1314 = vmatpush1.bf16.msra.mxu0 0
        %1315 = vmatprep.subr.bf16.mxu0 0
        %1316 = vmatpush1.bf16.msra.mxu0 0
        %1317 = vmatprep.subr.bf16.mxu0 0
        %1318 = vmatpush1.bf16.msra.mxu0 0
        %1319 = vmatprep.subr.bf16.mxu0 0
        %1320 = vmatpush1.bf16.msra.mxu0 0
        %1321 = vmatprep.subr.bf16.mxu0 0
        %1322 = vmatpush1.bf16.msra.mxu0 0
        %1323 = vmatprep.subr.bf16.mxu0 0
        %1324 = vmatpush1.bf16.msra.mxu0 0
        %1325 = vmatprep.mubr.bf16.mxu0 0
        %1326 = vmatmul.mubr.bf16.gmra.mrb[0].mxu0 %v1282
        %v1327 = vpop.f32.mrb[0].mxu0
        %v1328 = vadd.f32 %v1224, %v1327
        %v1329 = vpop.f32.mrb[0].mxu0
        %v1330 = vpop.f32.mrb[0].mxu0
        %v1331 = vadd.f32 %v1229, %v1330
        %v1332 = vpop.f32.mrb[0].mxu0
        %1333 = vmatprep.mubr.bf16.mxu0 0
        %1334 = vmatmul.mubr.bf16.gmra.mrb[0].mxu0 %v1285
        %v1335 = vpop.f32.mrb[0].mxu0
        %v1336 = vadd.f32 %v1234, %v1335
        %v1337 = vpop.f32.mrb[0].mxu0
        %v1338 = vpop.f32.mrb[0].mxu0
        %v1339 = vadd.f32 %v1239, %v1338
        %v1340 = vpop.f32.mrb[0].mxu0
        %1341 = vmatprep.mubr.bf16.mxu0 0
        %1342 = vmatmul.mubr.bf16.gmra.mrb[0].mxu0 %v1288
        %v1343 = vpop.f32.mrb[0].mxu0
        %v1344 = vadd.f32 %v1244, %v1343
        %v1345 = vpop.f32.mrb[0].mxu0
        %v1346 = vpop.f32.mrb[0].mxu0
        %v1347 = vadd.f32 %v1249, %v1346
        %v1348 = vpop.f32.mrb[0].mxu0
        %1349 = vmatprep.mubr.bf16.mxu0 0
        %1350 = vmatmul.mubr.bf16.gmra.mrb[0].mxu0 %v1291
        %v1351 = vpop.f32.mrb[0].mxu0
        %v1352 = vadd.f32 %v1254, %v1351
        %v1353 = vpop.f32.mrb[0].mxu0
        %v1354 = vpop.f32.mrb[0].mxu0
        %v1355 = vadd.f32 %v1259, %v1354
        %v1356 = vpop.f32.mrb[0].mxu0
        %1357 = vdwg.mxu0
        %v1358 = vadd.f32 %v949, %v1328
        %v1359 = vadd.f32 %v950, %v1331
        %v1360 = vadd.f32 %v951, %v1336
        %v1361 = vadd.f32 %v952, %v1339
        %v1362 = vadd.f32 %v953, %v1344
        %v1363 = vadd.f32 %v954, %v1347
        %v1364 = vadd.f32 %v955, %v1352
        %v1365 = vadd.f32 %v956, %v1355
        %vm1366 = vcmp.ge.s32.totalorder %v544, 4
        %1367 = vrot.lane.b32.xlu0 %v1358, 4
        %v1368 = vpop.permute.xlu0 %1367
        %1369 = vrot.lane.b32.xlu0 %v1359, 4
        %v1370 = vpop.permute.xlu0 %1369
        %1371 = vrot.lane.b32.xlu0 %v1360, 4
        %v1372 = vpop.permute.xlu0 %1371
        %1373 = vrot.lane.b32.xlu0 %v1361, 4
        %v1374 = vpop.permute.xlu0 %1373
        %v1375 = vsel %vm1366, %v1368, 0.0
        %v1376 = vsel %vm1366, %v1370, 0.0
        %v1377 = vsel %vm1366, %v1372, 0.0
        %v1378 = vsel %vm1366, %v1374, 0.0
        %vm1379 = vcmp.lt.s32.totalorder %v544, 124
        %1380 = vrot.lane.b32.xlu0 %v1358, 124
        %v1381 = vpop.permute.xlu0 %1380
        %1382 = vrot.lane.b32.xlu0 %v1359, 124
        %v1383 = vpop.permute.xlu0 %1382
        %1384 = vrot.lane.b32.xlu0 %v1360, 124
        %v1385 = vpop.permute.xlu0 %1384
        %1386 = vrot.lane.b32.xlu0 %v1361, 124
        %v1387 = vpop.permute.xlu0 %1386
        %v1388 = vsel %vm1379, %v1381, 0.0
        %v1389 = vsel %vm1379, %v1383, 0.0
        %v1390 = vsel %vm1379, %v1385, 0.0
        %v1391 = vsel %vm1379, %v1387, 0.0
        %v1392 = vpack.c.bf16 %v1376, %v1375
        %v1393 = vpack.c.bf16 %v1378, %v1377
        %v1394 = vpack.c.bf16 %v1359, %v1358
        %v1395 = vpack.c.bf16 %v1361, %v1360
        %v1396 = vpack.c.bf16 %v1389, %v1388
        %v1397 = vpack.c.bf16 %v1391, %v1390
        %s1398 = scalar_lea.vmem %s5, 64
        %v1399 = vld [vmem:[%s1398] sm:$0xf]
        %v1400 = vld [vmem:[%s1398 + $0x4] sm:$0xf]
        %v1401 = vld [vmem:[%s1398 + $0x8] sm:$0xf]
        %v1402 = vld [vmem:[%s1398 + $0xc] sm:$0xf]
        %v1403 = vld [vmem:[%s1398 + $0x10] sm:$0xf]
        %v1404 = vld [vmem:[%s1398 + $0x14] sm:$0xf]
        %v1405 = vld [vmem:[%s1398 + $0x18] sm:$0xf]
        %v1406 = vld [vmem:[%s1398 + $0x1c] sm:$0xf]
        %s1407 = scalar_lea.vmem %s6, 128
        %v1408 = vld [vmem:[%s1407] sm:$0xff]
        %v1409 = vld [vmem:[%s1407 + $0x8] sm:$0xff]
        %v1410 = vld [vmem:[%s1407 + $0x10] sm:$0xff]
        %v1411 = vld [vmem:[%s1407 + $0x18] sm:$0xff]
        %v1412 = vld [vmem:[%s1407 + $0x20] sm:$0xff]
        %v1413 = vld [vmem:[%s1407 + $0x28] sm:$0xff]
        %v1414 = vld [vmem:[%s1407 + $0x30] sm:$0xff]
        %v1415 = vld [vmem:[%s1407 + $0x38] sm:$0xff]
        %v1416 = vmul.f32 %v1408, %v594
        %v1417 = vmul.f32 %v1409, %v594
        %v1418 = vmul.f32 %v1410, %v594
        %v1419 = vmul.f32 %v1411, %v594
        %v1420 = vmul.f32 %v1412, %v594
        %v1421 = vmul.f32 %v1413, %v594
        %v1422 = vmul.f32 %v1414, %v594
        %v1423 = vmul.f32 %v1415, %v594
        %s1424 = scalar_lea.vmem %s7, 128
        %v1425 = vld [vmem:[%s1424] sm:$0xff]
        %v1426 = vld [vmem:[%s1424 + $0x8] sm:$0xff]
        %v1427 = vld [vmem:[%s1424 + $0x10] sm:$0xff]
        %v1428 = vld [vmem:[%s1424 + $0x18] sm:$0xff]
        %v1429 = vld [vmem:[%s1424 + $0x20] sm:$0xff]
        %v1430 = vld [vmem:[%s1424 + $0x28] sm:$0xff]
        %v1431 = vld [vmem:[%s1424 + $0x30] sm:$0xff]
        %v1432 = vld [vmem:[%s1424 + $0x38] sm:$0xff]
        %v1433 = vadd.f32 %v1416, %v1425
        %v1434 = vadd.f32 %v1417, %v1426
        %v1435 = vadd.f32 %v1418, %v1427
        %v1436 = vadd.f32 %v1419, %v1428
        %v1437 = vadd.f32 %v1420, %v1429
        %v1438 = vadd.f32 %v1421, %v1430
        %v1439 = vadd.f32 %v1422, %v1431
        %v1440 = vadd.f32 %v1423, %v1432
        %1442 = vset.pattern.permute.xlu0 0
        %1443 = vperm.xlu0 %1442, %v1433
        %v1444 = vpop.permute.xlu0 %1443
        %1447 = vset.pattern.permute.xlu0 0
        %1448 = vperm.xlu0 %1447, %v1434
        %v1449 = vpop.permute.xlu0 %1448
        %1452 = vset.pattern.permute.xlu0 0
        %1453 = vperm.xlu0 %1452, %v1435
        %v1454 = vpop.permute.xlu0 %1453
        %1457 = vset.pattern.permute.xlu0 0
        %1458 = vperm.xlu0 %1457, %v1436
        %v1459 = vpop.permute.xlu0 %1458
        %1462 = vset.pattern.permute.xlu0 0
        %1463 = vperm.xlu0 %1462, %v1437
        %v1464 = vpop.permute.xlu0 %1463
        %1467 = vset.pattern.permute.xlu0 0
        %1468 = vperm.xlu0 %1467, %v1438
        %v1469 = vpop.permute.xlu0 %1468
        %1472 = vset.pattern.permute.xlu0 0
        %1473 = vperm.xlu0 %1472, %v1439
        %v1474 = vpop.permute.xlu0 %1473
        %1477 = vset.pattern.permute.xlu0 0
        %1478 = vperm.xlu0 %1477, %v1440
        %v1479 = vpop.permute.xlu0 %1478
        %v1489 = vunpack.c.l.b16 %v1399
        %v1490 = vunpack.c.l.b16 %v1400
        %v1491 = vunpack.c.l.b16 %v1401
        %v1492 = vunpack.c.l.b16 %v1402
        %v1493 = vunpack.c.l.b16 %v1403
        %v1494 = vunpack.c.l.b16 %v1404
        %v1495 = vunpack.c.l.b16 %v1405
        %v1496 = vunpack.c.l.b16 %v1406
        %v1497 = vpack.c.b16 %v1490, %v1489
        %v1498 = vpack.c.b16 %v1492, %v1491
        %v1499 = vpack.c.b16 %v1494, %v1493
        %v1500 = vpack.c.b16 %v1496, %v1495
        %v1502 = vsel %vm679, %v1497, 0
        %v1505 = vsel %vm679, %v1498, 0
        %v1508 = vsel %vm679, %v1499, 0
        %v1511 = vsel %vm679, %v1500, 0
        %1513 = vmatprep.subr.bf16.mxu0 0
        %1514 = vmatpush1.bf16.msra.mxu0 %v1392
        %1515 = vmatprep.subr.bf16.mxu0 0
        %1516 = vmatpush1.bf16.msra.mxu0 %v1393
        %1517 = vmatprep.subr.bf16.mxu0 0
        %1518 = vmatpush1.bf16.msra.mxu0 %v1394
        %1519 = vmatprep.subr.bf16.mxu0 0
        %1520 = vmatpush1.bf16.msra.mxu0 %v1395
        %1521 = vmatprep.subr.bf16.mxu0 0
        %1522 = vmatpush1.bf16.msra.mxu0 %v1396
        %1523 = vmatprep.subr.bf16.mxu0 0
        %1524 = vmatpush1.bf16.msra.mxu0 %v1397
        %1525 = vmatprep.subr.bf16.mxu0 0
        %1526 = vmatpush1.bf16.msra.mxu0 %v694
        %1527 = vmatprep.subr.bf16.mxu0 0
        %1528 = vmatpush1.bf16.msra.mxu0 0
        %1529 = vmatprep.subr.bf16.mxu0 0
        %1530 = vmatpush1.bf16.msra.mxu0 0
        %1531 = vmatprep.subr.bf16.mxu0 0
        %1532 = vmatpush1.bf16.msra.mxu0 0
        %1533 = vmatprep.subr.bf16.mxu0 0
        %1534 = vmatpush1.bf16.msra.mxu0 0
        %1535 = vmatprep.subr.bf16.mxu0 0
        %1536 = vmatpush1.bf16.msra.mxu0 0
        %1537 = vmatprep.subr.bf16.mxu0 0
        %1538 = vmatpush1.bf16.msra.mxu0 0
        %1539 = vmatprep.subr.bf16.mxu0 0
        %1540 = vmatpush1.bf16.msra.mxu0 0
        %1541 = vmatprep.subr.bf16.mxu0 0
        %1542 = vmatpush1.bf16.msra.mxu0 0
        %1543 = vmatprep.subr.bf16.mxu0 0
        %1544 = vmatpush1.bf16.msra.mxu0 0
        %1545 = vmatprep.mubr.bf16.mxu0 0
        %1546 = vmatmul.mubr.bf16.gmra.mrb[0].mxu0 %v1502
        %v1547 = vpop.f32.mrb[0].mxu0
        %v1548 = vadd.f32 %v1444, %v1547
        %v1549 = vpop.f32.mrb[0].mxu0
        %v1550 = vpop.f32.mrb[0].mxu0
        %v1551 = vadd.f32 %v1449, %v1550
        %v1552 = vpop.f32.mrb[0].mxu0
        %1553 = vmatprep.mubr.bf16.mxu0 0
        %1554 = vmatmul.mubr.bf16.gmra.mrb[0].mxu0 %v1505
        %v1555 = vpop.f32.mrb[0].mxu0
        %v1556 = vadd.f32 %v1454, %v1555
        %v1557 = vpop.f32.mrb[0].mxu0
        %v1558 = vpop.f32.mrb[0].mxu0
        %v1559 = vadd.f32 %v1459, %v1558
        %v1560 = vpop.f32.mrb[0].mxu0
        %1561 = vmatprep.mubr.bf16.mxu0 0
        %1562 = vmatmul.mubr.bf16.gmra.mrb[0].mxu0 %v1508
        %v1563 = vpop.f32.mrb[0].mxu0
        %v1564 = vadd.f32 %v1464, %v1563
        %v1565 = vpop.f32.mrb[0].mxu0
        %v1566 = vpop.f32.mrb[0].mxu0
        %v1567 = vadd.f32 %v1469, %v1566
        %v1568 = vpop.f32.mrb[0].mxu0
        %1569 = vmatprep.mubr.bf16.mxu0 0
        %1570 = vmatmul.mubr.bf16.gmra.mrb[0].mxu0 %v1511
        %v1571 = vpop.f32.mrb[0].mxu0
        %v1572 = vadd.f32 %v1474, %v1571
        %v1573 = vpop.f32.mrb[0].mxu0
        %v1574 = vpop.f32.mrb[0].mxu0
        %v1575 = vadd.f32 %v1479, %v1574
        %v1576 = vpop.f32.mrb[0].mxu0
        %1577 = vdwg.mxu0
        %v1578 = vtanh.pop %v1548
        %v1579 = vtanh.pop %v1551
        %v1580 = vtanh.pop %v1556
        %v1581 = vtanh.pop %v1559
        %v1582 = vxor.u32 %v1564, 2147483648
        %v1583 = vxor.u32 %v1567, 2147483648
        %v1584 = vxor.u32 %v1572, 2147483648
        %v1585 = vxor.u32 %v1575, 2147483648
        %v1586 = vmul.f32 %v1582, 1.442695
        %v1587 = vpow.pop %v1586
        %v1588 = vmul.f32 %v1583, 1.442695
        %v1589 = vpow.pop %v1588
        %v1590 = vmul.f32 %v1584, 1.442695
        %v1591 = vpow.pop %v1590
        %v1592 = vmul.f32 %v1585, 1.442695
        %v1593 = vpow.pop %v1592
        %v1594 = vadd.f32 %v1587, 1.0
        %v1595 = vadd.f32 %v1589, 1.0
        %v1596 = vadd.f32 %v1591, 1.0
        %v1597 = vadd.f32 %v1593, 1.0
        %v1598 = vrcp.pop %v1594
        %v1599 = vmul.f32 1.0, %v1598
        %v1600 = vrcp.pop %v1595
        %v1601 = vmul.f32 1.0, %v1600
        %v1602 = vrcp.pop %v1596
        %v1603 = vmul.f32 1.0, %v1602
        %v1604 = vrcp.pop %v1597
        %v1605 = vmul.f32 1.0, %v1604
        %v1606 = vmul.f32 %v1578, %v1599
        %v1607 = vmul.f32 %v1579, %v1601
        %v1608 = vmul.f32 %v1580, %v1603
        %v1609 = vmul.f32 %v1581, %v1605
        %s1610 = scalar_lea.vmem %s8, 64
        %v1611 = vld [vmem:[%s1610] sm:$0xf]
        %v1612 = vld [vmem:[%s1610 + $0x4] sm:$0xf]
        %v1613 = vld [vmem:[%s1610 + $0x8] sm:$0xf]
        %v1614 = vld [vmem:[%s1610 + $0xc] sm:$0xf]
        %v1615 = vld [vmem:[%s1610 + $0x10] sm:$0xf]
        %v1616 = vld [vmem:[%s1610 + $0x14] sm:$0xf]
        %v1617 = vld [vmem:[%s1610 + $0x18] sm:$0xf]
        %v1618 = vld [vmem:[%s1610 + $0x1c] sm:$0xf]
        %v1619 = vpack.c.bf16 %v1607, %v1606
        %v1620 = vpack.c.bf16 %v1609, %v1608
        %s1621 = scalar_lea.vmem %s9, 128
        %v1622 = vld [vmem:[%s1621] sm:$0xff]
        %v1623 = vld [vmem:[%s1621 + $0x8] sm:$0xff]
        %v1624 = vld [vmem:[%s1621 + $0x10] sm:$0xff]
        %v1625 = vld [vmem:[%s1621 + $0x18] sm:$0xff]
        %v1626 = vld [vmem:[%s1621 + $0x20] sm:$0xff]
        %v1627 = vld [vmem:[%s1621 + $0x28] sm:$0xff]
        %v1628 = vld [vmem:[%s1621 + $0x30] sm:$0xff]
        %v1629 = vld [vmem:[%s1621 + $0x38] sm:$0xff]
        %1631 = vset.pattern.permute.xlu0 0
        %1632 = vperm.xlu0 %1631, %v1622
        %v1633 = vpop.permute.xlu0 %1632
        %1635 = vset.pattern.permute.xlu0 0
        %1636 = vperm.xlu0 %1635, %v1623
        %v1637 = vpop.permute.xlu0 %1636
        %1639 = vset.pattern.permute.xlu0 0
        %1640 = vperm.xlu0 %1639, %v1624
        %v1641 = vpop.permute.xlu0 %1640
        %1643 = vset.pattern.permute.xlu0 0
        %1644 = vperm.xlu0 %1643, %v1625
        %v1645 = vpop.permute.xlu0 %1644
        %1647 = vset.pattern.permute.xlu0 0
        %1648 = vperm.xlu0 %1647, %v1626
        %v1649 = vpop.permute.xlu0 %1648
        %1652 = vset.pattern.permute.xlu0 0
        %1653 = vperm.xlu0 %1652, %v1627
        %v1654 = vpop.permute.xlu0 %1653
        %1657 = vset.pattern.permute.xlu0 0
        %1658 = vperm.xlu0 %1657, %v1628
        %v1659 = vpop.permute.xlu0 %1658
        %1662 = vset.pattern.permute.xlu0 0
        %1663 = vperm.xlu0 %1662, %v1629
        %v1664 = vpop.permute.xlu0 %1663
        %v1674 = vunpack.c.l.b16 %v1611
        %v1675 = vunpack.c.l.b16 %v1612
        %v1676 = vunpack.c.l.b16 %v1613
        %v1677 = vunpack.c.l.b16 %v1614
        %v1678 = vunpack.c.l.b16 %v1615
        %v1679 = vunpack.c.l.b16 %v1616
        %v1680 = vunpack.c.l.b16 %v1617
        %v1681 = vunpack.c.l.b16 %v1618
        %v1682 = vpack.c.b16 %v1675, %v1674
        %v1683 = vpack.c.b16 %v1677, %v1676
        %v1684 = vpack.c.b16 %v1679, %v1678
        %v1685 = vpack.c.b16 %v1681, %v1680
        %v1687 = vsel %vm871, %v1682, 0
        %v1690 = vsel %vm871, %v1683, 0
        %v1693 = vsel %vm871, %v1684, 0
        %v1696 = vsel %vm871, %v1685, 0
        %1698 = vmatprep.subr.bf16.mxu0 0
        %1699 = vmatpush1.bf16.msra.mxu0 %v1619
        %1700 = vmatprep.subr.bf16.mxu0 0
        %1701 = vmatpush1.bf16.msra.mxu0 %v1620
        %1702 = vmatprep.subr.bf16.mxu0 0
        %1703 = vmatpush1.bf16.msra.mxu0 0
        %1704 = vmatprep.subr.bf16.mxu0 0
        %1705 = vmatpush1.bf16.msra.mxu0 0
        %1706 = vmatprep.subr.bf16.mxu0 0
        %1707 = vmatpush1.bf16.msra.mxu0 0
        %1708 = vmatprep.subr.bf16.mxu0 0
        %1709 = vmatpush1.bf16.msra.mxu0 0
        %1710 = vmatprep.subr.bf16.mxu0 0
        %1711 = vmatpush1.bf16.msra.mxu0 0
        %1712 = vmatprep.subr.bf16.mxu0 0
        %1713 = vmatpush1.bf16.msra.mxu0 0
        %1714 = vmatprep.subr.bf16.mxu0 0
        %1715 = vmatpush1.bf16.msra.mxu0 0
        %1716 = vmatprep.subr.bf16.mxu0 0
        %1717 = vmatpush1.bf16.msra.mxu0 0
        %1718 = vmatprep.subr.bf16.mxu0 0
        %1719 = vmatpush1.bf16.msra.mxu0 0
        %1720 = vmatprep.subr.bf16.mxu0 0
        %1721 = vmatpush1.bf16.msra.mxu0 0
        %1722 = vmatprep.subr.bf16.mxu0 0
        %1723 = vmatpush1.bf16.msra.mxu0 0
        %1724 = vmatprep.subr.bf16.mxu0 0
        %1725 = vmatpush1.bf16.msra.mxu0 0
        %1726 = vmatprep.subr.bf16.mxu0 0
        %1727 = vmatpush1.bf16.msra.mxu0 0
        %1728 = vmatprep.subr.bf16.mxu0 0
        %1729 = vmatpush1.bf16.msra.mxu0 0
        %1730 = vmatprep.mubr.bf16.mxu0 0
        %1731 = vmatmul.mubr.bf16.gmra.mrb[0].mxu0 %v1687
        %v1732 = vpop.f32.mrb[0].mxu0
        %v1733 = vpop.f32.mrb[0].mxu0
        %v1734 = vpop.f32.mrb[0].mxu0
        %v1735 = vpop.f32.mrb[0].mxu0
        %1736 = vmatprep.mubr.bf16.mxu0 0
        %1737 = vmatmul.mubr.bf16.gmra.mrb[0].mxu0 %v1690
        %v1738 = vpop.f32.mrb[0].mxu0
        %v1739 = vpop.f32.mrb[0].mxu0
        %v1740 = vpop.f32.mrb[0].mxu0
        %v1741 = vpop.f32.mrb[0].mxu0
        %1742 = vmatprep.mubr.bf16.mxu0 0
        %1743 = vmatmul.mubr.bf16.gmra.mrb[0].mxu0 %v1693
        %v1744 = vpop.f32.mrb[0].mxu0
        %v1745 = vadd.f32 %v1649, %v1744
        %v1746 = vpop.f32.mrb[0].mxu0
        %v1747 = vpop.f32.mrb[0].mxu0
        %v1748 = vadd.f32 %v1654, %v1747
        %v1749 = vpop.f32.mrb[0].mxu0
        %1750 = vmatprep.mubr.bf16.mxu0 0
        %1751 = vmatmul.mubr.bf16.gmra.mrb[0].mxu0 %v1696
        %v1752 = vpop.f32.mrb[0].mxu0
        %v1753 = vadd.f32 %v1659, %v1752
        %v1754 = vpop.f32.mrb[0].mxu0
        %v1755 = vpop.f32.mrb[0].mxu0
        %v1756 = vadd.f32 %v1664, %v1755
        %v1757 = vpop.f32.mrb[0].mxu0
        %1758 = vdwg.mxu0
        %v1759 = vadd.f32 %v1362, %v1745
        %v1760 = vadd.f32 %v1363, %v1748
        %v1761 = vadd.f32 %v1364, %v1753
        %v1762 = vadd.f32 %v1365, %v1756
        %v1763 = vld [vmem:[%s10] sm:$0x3]
        %v1764 = vpack.c.bf16 %v1760, %v1759
        %v1765 = vpack.c.bf16 %v1762, %v1761
        %v1766 = vld [vmem:[%s11] sm:$0xf]
        %1768 = vset.pattern.permute.xlu0 0
        %1769 = vperm.xlu0 %1768, %v1766
        %v1770 = vpop.permute.xlu0 %1769
        %v1773 = vsel %vm871, %v1763, 0
        %1775 = vmatprep.subr.bf16.mxu0 0
        %1776 = vmatpush1.bf16.msra.mxu0 %v1764
        %1777 = vmatprep.subr.bf16.mxu0 0
        %1778 = vmatpush1.bf16.msra.mxu0 %v1765
        %1779 = vmatprep.subr.bf16.mxu0 0
        %1780 = vmatpush1.bf16.msra.mxu0 0
        %1781 = vmatprep.subr.bf16.mxu0 0
        %1782 = vmatpush1.bf16.msra.mxu0 0
        %1783 = vmatprep.subr.bf16.mxu0 0
        %1784 = vmatpush1.bf16.msra.mxu0 0
        %1785 = vmatprep.subr.bf16.mxu0 0
        %1786 = vmatpush1.bf16.msra.mxu0 0
        %1787 = vmatprep.subr.bf16.mxu0 0
        %1788 = vmatpush1.bf16.msra.mxu0 0
        %1789 = vmatprep.subr.bf16.mxu0 0
        %1790 = vmatpush1.bf16.msra.mxu0 0
        %1791 = vmatprep.subr.bf16.mxu0 0
        %1792 = vmatpush1.bf16.msra.mxu0 0
        %1793 = vmatprep.subr.bf16.mxu0 0
        %1794 = vmatpush1.bf16.msra.mxu0 0
        %1795 = vmatprep.subr.bf16.mxu0 0
        %1796 = vmatpush1.bf16.msra.mxu0 0
        %1797 = vmatprep.subr.bf16.mxu0 0
        %1798 = vmatpush1.bf16.msra.mxu0 0
        %1799 = vmatprep.subr.bf16.mxu0 0
        %1800 = vmatpush1.bf16.msra.mxu0 0
        %1801 = vmatprep.subr.bf16.mxu0 0
        %1802 = vmatpush1.bf16.msra.mxu0 0
        %1803 = vmatprep.subr.bf16.mxu0 0
        %1804 = vmatpush1.bf16.msra.mxu0 0
        %1805 = vmatprep.subr.bf16.mxu0 0
        %1806 = vmatpush1.bf16.msra.mxu0 0
        %1807 = vmatprep.mubr.bf16.mxu0 0
        %1808 = vmatmul.mubr.bf16.gmra.mrb[0].mxu0 %v1773
        %v1809 = vpop.f32.mrb[0].mxu0
        %v1810 = vadd.f32 %v1770, %v1809
        %v1811 = vpop.f32.mrb[0].mxu0
        %v1812 = vpop.f32.mrb[0].mxu0
        %v1813 = vpop.f32.mrb[0].mxu0
        %1814 = vdwg.mxu0
        %1815 = vst [vmem:[%s431] sm:$0xf] %v1810
        %s1816 = sand.u32 %s297, 1
        %s1817 = scalar_lea.sflag [#allocation3], %s1816
        %s1818 = sand.u32 %s297, 1
        %s1819 = smul.addr %s1818, 4
        %s1820 = scalar_lea.vmem [#allocation5], %s1819
        // Predicated region
        $region73: #{tpu_custom_call.1} parent=67 // pred_check
          %p1821 = pneg %p307
        $region74: #{tpu_custom_call.1} parent=67 // pred_check_branch
          %1823 = sbr.rel (%p1821) target = $region76
        $region75: #{tpu_custom_call.1} parent=67 // pred_region
          %s1825 = ssub.s32 64, 64
          %1826 = vsyncadd %s1817, %s1825
          %s1827 = smul.addr %s27, 64
          %s1828 = scalar_lea.hbm %s12, %s1827
          %s1830 = sshll.u32 %s1820, 4
          %s1831 = int_to_ptr.vmem [resolvable:$true] %s1830
          %1833 = dma.vmem_to_hbm [thread:$0]  %s1831, 64, %s1828, %s1817
        $region76: #{tpu_custom_call.1} parent=67 // pred_fallthru
          _
      $region68: #{tpu_custom_call.1} parent=5 // pred_fallthru
        _
      %p1834 = scmp.le.s32.totalorder 2, %s22
      // Predicated region
      $region77: #{tpu_custom_call.1} parent=5 // pred_check
        %p1835 = pneg %p1834
      $region78: #{tpu_custom_call.1} parent=5 // pred_check_branch
        %1837 = sbr.rel (%p1835) target = $region80
      $region79: #{tpu_custom_call.1} parent=5 // pred_region
        %s1838 = ssub.s32 %s22, 2
        // Predicated region
        $region81: #{tpu_custom_call.1} parent=79 // pred_check
          %p1839 = pneg %p313
        $region82: #{tpu_custom_call.1} parent=79 // pred_check_branch
          %1841 = sbr.rel (%p1839) target = $region84
        $region83: #{tpu_custom_call.1} parent=79 // pred_region
          %s1842 = sand.u32 %s298, 1
          %s1843 = scalar_lea.sflag [#allocation3], %s1842
          %s1844 = sand.u32 %s298, 1
          %s1845 = smul.addr %s1844, 4
          %s1846 = scalar_lea.vmem [#allocation5], %s1845
          %1847 = dma.done %s1843, 64
        $region84: #{tpu_custom_call.1} parent=79 // pred_fallthru
          _
      $region80: #{tpu_custom_call.1} parent=5 // pred_fallthru
        _
    $region6: #{tpu_custom_call.1} parent=1 // loop_footer
      %s26 = sadd.s32 1, %s22
    $region7: #{tpu_custom_call.1} parent=1 // loop_footer_branch
      %21 = sbr.rel target = $region3
    $region8: #{tpu_custom_call.1} parent=1 // loop_exit
      _
    %1848 = vsyncpa [#allocation3], 1
    %s1849 = scalar_lea.sflag [#allocation3], 1
    %1850 = vsyncpa %s1849, 1
    %1851 = vsyncpa [#allocation4], 1
    %s1852 = scalar_lea.sflag [#allocation4], 1
    %1853 = vsyncpa %s1852, 1

</llo_original>
